<compile_context>
chip_gen: v5e
topology: v5e:2x2
jax: 0.10.0
libtpu: 0.0.40
codegen_flags: <defaults>
</compile_context>

<pallas_src>
import math
import jax
import jax.numpy as jnp
from jax.experimental import pallas as pl
from jax.experimental.pallas import tpu as pltpu

NUM_HEADS = 8
LN_EPS = 1e-5

# ---- constants slab (CROWS, E) f32 row layout -------------------------------
ROW_LN = 0      # 8 rows: sa_w, sa_b, ca_w, ca_b, ffn_w, ffn_b, iln_w, iln_b
ROW_SENT = 8    # 1 row : sentence-token parameter
ROW_BIAS = 16   # 10 rows: sa_q, sa_k, sa_v, sa_out, ca_q, ca_k, ca_v, ca_out, fc1, fc2
ROW_SEL = 32    # 8 rows: selT[h, e] = 1.0 iff feature e belongs to head h
CROWS = 40

# ---- transposed-weight slab (E, 10E) bf16 column blocks (each E wide) --------
COL_SA_Q, COL_SA_K, COL_SA_V, COL_SA_O = 0, 1, 2, 3
COL_CA_Q, COL_CA_K, COL_CA_V, COL_CA_O = 4, 5, 6, 7
COL_FC1, COL_FC2 = 8, 9


def _gelu(x):
    # TODO(synk): PyTorch F.gelu defaults to the exact erf form; the tanh
    # approximation is used here for guaranteed Mosaic lowering (~1e-3 close).
    c = math.sqrt(2.0 / math.pi)
    return 0.5 * x * (1.0 + jnp.tanh(c * (x + 0.044715 * x * x * x)))


# ---------------------------------------------------------------------------
# the Pallas kernel: full ExisEcoderLayer, sentence-token row only, Bb batches
# per grid step
# ---------------------------------------------------------------------------
def exis_sent_kernel(txt_ref, img_ref, mask_ref, c_ref, w_ref, out_ref):
    Bb, T, E = txt_ref.shape
    S = img_ref.shape[1]
    H = NUM_HEADS
    dh = E // H
    scale = 1.0 / math.sqrt(dh)

    selT = c_ref[ROW_SEL:ROW_SEL + H, :]                  # (H, E) f32

    def ln(v, idx):                                       # LayerNorm, rows of v
        w = c_ref[ROW_LN + idx:ROW_LN + idx + 1, :]
        b = c_ref[ROW_LN + idx + 1:ROW_LN + idx + 2, :]
        mu = jnp.mean(v, axis=-1, keepdims=True)
        var = jnp.mean(jnp.square(v - mu), axis=-1, keepdims=True)
        return (v - mu) * jax.lax.rsqrt(var + LN_EPS) * w + b

    def bias(i):
        return c_ref[ROW_BIAS + i:ROW_BIAS + i + 1, :]    # (1, E)

    def mm(a, col, n=1):
        # a:(M,E) f32 -> bf16, weights stored W^T (E, n*E) bf16: standard
        # K-on-rows contraction (no weight transpose), f32 accumulation.
        w = w_ref[:, col * E:(col + n) * E]
        return jax.lax.dot_general(a.astype(jnp.bfloat16), w,
                                   (((1,), (0,)), ((), ())),
                                   preferred_element_type=jnp.float32)

    def head_scores(kq2d):                                # (M, E) -> (M, H)
        # per-head score: sum of k*q within each head's feature slice
        return jax.lax.dot_general(kq2d, selT, (((1,), (1,)), ((), ())),
                                   preferred_element_type=jnp.float32)

    mask = mask_ref[...]                                  # (Bb, T)  1.0 = padded
    keep = 1.0 - mask
    neg_bias = mask * jnp.float32(-1e30)                  # additive key-pad bias

    txt = txt_ref[...]                                    # (Bb, T, E)
    sent = c_ref[ROW_SENT:ROW_SENT + 1, :]                # (1, E) sentence token

    # ---------- self-attention: keys/values = [masked LN(txt) ; LN(sent)],
    # ---------- query = sentence-token row (batch-shared) --------------------
    h_txt = ln(txt, 0) * keep[:, :, None]                 # (Bb, T, E)
    kv_t = mm(h_txt.reshape(Bb * T, E), COL_SA_K, 2)      # one (Bb*T,E)x(E,2E)
    kv_t = kv_t.reshape(Bb, T, 2 * E)
    k_t = kv_t[:, :, 0:E] + bias(1)
    v_t = kv_t[:, :, E:2 * E] + bias(2)

    h_sent = ln(sent, 0)                                  # never padded
    qkv_s = mm(h_sent, COL_SA_Q, 3)                       # fused (1,E)x(E,3E)
    q_s = (qkv_s[:, 0:E] + bias(0)) * scale               # (1, E)
    k_s = qkv_s[:, E:2 * E] + bias(1)
    v_s = qkv_s[:, 2 * E:3 * E] + bias(2)

    s_t = head_scores((k_t * q_s).reshape(Bb * T, E)).reshape(Bb, T, H)
    s_t = s_t + neg_bias[:, :, None]                      # key-padding mask
    s_s = head_scores(k_s * q_s)                          # (1, H), batch-shared

    m = jnp.maximum(jnp.max(s_t, axis=1), s_s)            # (Bb, H)
    p_t = jnp.exp(s_t - m[:, None, :])                    # (Bb, T, H)
    p_s = jnp.exp(s_s - m)                                # (Bb, H)
    inv = pl.reciprocal(jnp.sum(p_t, axis=1) + p_s, approx=True)

    # deep-K p^T V combine, then per-head selection back to (Bb, E)
    pv = jnp.einsum('bth,bte->bhe', p_t, v_t,
                    preferred_element_type=jnp.float32)
    pv = (pv + p_s[:, :, None] * v_s[None, :, :]) * inv[:, :, None]
    attn = jnp.sum(pv * selT[None, :, :], axis=1)         # (Bb, E)

    x_s = sent + mm(attn, COL_SA_O) + bias(3)             # residual = sent token

    # ---------- cross-attention: query = sentence row, K/V = image features ---
    h = ln(x_s, 2)                                        # its mask entry is 0
    q_c = (mm(h, COL_CA_Q) + bias(4)) * scale             # (Bb, E)

    img = img_ref[...]                                    # (Bb, S, E)
    kv_i = mm(img.reshape(Bb * S, E), COL_CA_K, 2).reshape(Bb, S, 2 * E)
    k_i = kv_i[:, :, 0:E] + bias(5)
    v_i = kv_i[:, :, E:2 * E] + bias(6)

    s_c = head_scores((k_i * q_c[:, None, :]).reshape(Bb * S, E)).reshape(Bb, S, H)
    m_c = jnp.max(s_c, axis=1, keepdims=True)             # (Bb, 1, H)
    p_c = jnp.exp(s_c - m_c)
    inv_c = pl.reciprocal(jnp.sum(p_c, axis=1), approx=True)
    pv_c = jnp.einsum('bsh,bse->bhe', p_c, v_i,
                      preferred_element_type=jnp.float32) * inv_c[:, :, None]
    attn_c = jnp.sum(pv_c * selT[None, :, :], axis=1)     # (Bb, E)

    x_s = x_s + mm(attn_c, COL_CA_O) + bias(7)

    # ---------- FFN: fc1 -> gelu -> inner LayerNorm (subln) -> fc2 ------------
    h = ln(x_s, 4)
    h = mm(h, COL_FC1) + bias(8)
    h = _gelu(h)
    h = ln(h, 6)
    h = mm(h, COL_FC2) + bias(9)

    out_ref[...] = x_s + h                                # (Bb, E), lane-dense


# ---------------------------------------------------------------------------
# parameter construction (deterministic, synthetic) + packing into 2 slabs
# ---------------------------------------------------------------------------
def init_params(key, E):
    ks = jax.random.split(key, 8)

    def w(k, shape, scale=0.02):
        return (scale * jax.random.normal(k, shape)).astype(jnp.float32)

    ones = lambda s: jnp.ones(s, jnp.float32)
    zeros = lambda s: jnp.zeros(s, jnp.float32)
    return dict(
        sa_ln_w=ones((1, E)),   sa_ln_b=zeros((1, E)),
        sa_in_w=w(ks[0], (3 * E, E)), sa_in_b=w(ks[1], (3 * E,)),
        sa_out_w=w(ks[2], (E, E)),    sa_out_b=zeros((E,)),
        ca_ln_w=ones((1, E)),   ca_ln_b=zeros((1, E)),
        ca_in_w=w(ks[3], (3 * E, E)), ca_in_b=w(ks[4], (3 * E,)),
        ca_out_w=w(ks[5], (E, E)),    ca_out_b=zeros((E,)),
        ffn_ln_w=ones((1, E)),  ffn_ln_b=zeros((1, E)),
        fc1_w=w(ks[6], (E, E)),  fc1_b=zeros((E,)),
        ffn_iln_w=ones((1, E)), ffn_iln_b=zeros((1, E)),
        fc2_w=w(ks[7], (E, E)),  fc2_b=zeros((E,)),
        sentence_token=zeros((1, 1, E)),   # nn.Parameter(torch.zeros(1,1,E))
    )


def pack_params(params, E):
    H = NUM_HEADS
    dh = E // H
    ln_rows = jnp.concatenate([
        params["sa_ln_w"], params["sa_ln_b"],
        params["ca_ln_w"], params["ca_ln_b"],
        params["ffn_ln_w"], params["ffn_ln_b"],
        params["ffn_iln_w"], params["ffn_iln_b"]], axis=0).astype(jnp.float32)
    bias_rows = jnp.concatenate([
        params["sa_in_b"].reshape(3, E), params["sa_out_b"].reshape(1, E),
        params["ca_in_b"].reshape(3, E), params["ca_out_b"].reshape(1, E),
        params["fc1_b"].reshape(1, E), params["fc2_b"].reshape(1, E)],
        axis=0).astype(jnp.float32)
    # head-selection matrix (hoisted out of the kernel): selT[h, e] = [e//dh == h]
    selT = (jax.lax.broadcasted_iota(jnp.int32, (H, E), 1) // dh
            == jax.lax.broadcasted_iota(jnp.int32, (H, E), 0)).astype(jnp.float32)

    consts = jnp.zeros((CROWS, E), jnp.float32)
    consts = consts.at[ROW_LN:ROW_LN + 8].set(ln_rows)
    consts = consts.at[ROW_SENT].set(params["sentence_token"].reshape(E))
    consts = consts.at[ROW_BIAS:ROW_BIAS + 10].set(bias_rows)
    consts = consts.at[ROW_SEL:ROW_SEL + H].set(selT)

    # W^T (in, out) orientation -> every in-kernel matmul is a plain
    # K-on-rows contraction; column blocks: q,k,v,out (sa), q,k,v,out (ca), fc1, fc2
    weights = jnp.concatenate([
        params["sa_in_w"].T, params["sa_out_w"].T,
        params["ca_in_w"].T, params["ca_out_w"].T,
        params["fc1_w"].T, params["fc2_w"].T], axis=1).astype(jnp.bfloat16)  # (E,10E)
    return consts, weights


# ---------------------------------------------------------------------------
# wrapper: ExisEcoder.forward with sentence_token_flag=True
# ---------------------------------------------------------------------------
def _build_call(B, T, S, E, Bb, single_buffer_params):
    pkw = {"pipeline_mode": pl.Buffered(1)} if single_buffer_params else {}
    return pl.pallas_call(
        exis_sent_kernel,
        out_shape=jax.ShapeDtypeStruct((B, E), jnp.float32),
        grid=(B // Bb,),
        in_specs=[
            pl.BlockSpec((Bb, T, E), lambda i: (i, 0, 0)),           # text features
            pl.BlockSpec((Bb, S, E), lambda i: (i, 0, 0)),           # image features
            pl.BlockSpec((Bb, T), lambda i: (i, 0)),                 # padding mask
            pl.BlockSpec((CROWS, E), lambda i: (0, 0), **pkw),       # LN/bias/sent/sel
            pl.BlockSpec((E, 10 * E), lambda i: (0, 0), **pkw),      # W^T slab (bf16)
        ],
        out_specs=pl.BlockSpec((Bb, E), lambda i: (i, 0)),
        compiler_params=pltpu.CompilerParams(
            # grid is tiny (B/Bb steps); keep it on one core so the weight slab
            # is not DMA'd once per TensorCore on v7x.
            dimension_semantics=("arbitrary",),
            vmem_limit_bytes=48 * 1024 * 1024,
        ),
    )


def exis_encoder_forward(img_feature, txt_feature, text_mask, params, block_b=None):
    B, T, E = txt_feature.shape
    S = img_feature.shape[1]
    assert E % NUM_HEADS == 0
    Bb = B if block_b is None else block_b
    assert B % Bb == 0 and (Bb == B or Bb % 8 == 0)   # keep blocks (8,128)-legal

    consts, weights = pack_params(params, E)
    args = (txt_feature.astype(jnp.float32),
            img_feature.astype(jnp.float32),
            text_mask.astype(jnp.float32),
            consts, weights)
    try:
        out = _build_call(B, T, S, E, Bb, True)(*args)
    except Exception:
        # TODO(synk): pl.Buffered(1) single-buffering of the constant parameter
        # slabs is not available on every jax version; fall back to default
        # double buffering (only costs extra VMEM for the small slabs).
        out = _build_call(B, T, S, E, Bb, False)(*args)

    # sentence_token_flag == True -> return the sentence-token feature (B, E)
    return out
    # TODO(synk): the sentence_token_flag=False branch of the reference module is
    # unreachable/broken (bare name `concat` -> NameError), so it is not implemented.


if __name__ == "__main__":
    key = jax.random.PRNGKey(0)
    # E is a multiple of 128 so every block / store is lane-dense.
    B, T, S, E = 2, 8, 16, 128
    k_img, k_txt, k_par = jax.random.split(key, 3)

    img_feature = jax.random.normal(k_img, (B, S, E), jnp.float32)
    txt_feature = jax.random.normal(k_txt, (B, T, E), jnp.float32)
    lengths = jnp.array([5, 7])  # 1 = padded position
    text_mask = (jnp.arange(T)[None, :] >= lengths[:, None]).astype(jnp.float32)

    params = init_params(k_par, E)

    sent_feat = exis_encoder_forward(img_feature, txt_feature, text_mask, params)
    jax.block_until_ready(sent_feat)
    assert sent_feat.shape == (B, E) and sent_feat.dtype == jnp.float32
    assert bool(jnp.all(jnp.isfinite(sent_feat)))
    print("KERNEL_OK")
</pallas_src>

<mosaic_0001>
module attributes {stable_mosaic.version = 11 : i64} {
  func.func @exis_sent_kernel(%arg0: i32, %arg1: memref<2x8x128xf32, #tpu.memory_space<vmem>>, %arg2: memref<2x16x128xf32, #tpu.memory_space<vmem>>, %arg3: memref<2x8xf32, #tpu.memory_space<vmem>>, %arg4: memref<40x128xf32, #tpu.memory_space<vmem>>, %arg5: memref<128x1280xbf16, #tpu.memory_space<vmem>>, %arg6: memref<2x128xf32, #tpu.memory_space<vmem>>) attributes {dimension_semantics = [#tpu.dimension_semantics<arbitrary>], iteration_bounds = array<i64: 1>, scalar_prefetch = 0 : i64, scratch_operands = 0 : i64, tpu.core_type = #tpu.core_type<tc>, window_params = [{transform_indices = @transform_0, window_bounds = array<i64: 2, 8, 128>}, {transform_indices = @transform_1, window_bounds = array<i64: 2, 16, 128>}, {transform_indices = @transform_2, window_bounds = array<i64: 2, 8>}, {pipeline_mode = #tpu.pipeline_mode<synchronous>, transform_indices = @transform_3, window_bounds = array<i64: 40, 128>}, {pipeline_mode = #tpu.pipeline_mode<synchronous>, transform_indices = @transform_4, window_bounds = array<i64: 128, 1280>}, {transform_indices = @transform_5, window_bounds = array<i64: 2, 128>}]} {
    %c32 = arith.constant 32 : index
    %c0 = arith.constant 0 : index
    %0 = vector.load %arg4[%c32, %c0] : memref<40x128xf32, #tpu.memory_space<vmem>>, vector<8x128xf32>
    %c0_0 = arith.constant 0 : index
    %c0_1 = arith.constant 0 : index
    %1 = vector.load %arg3[%c0_0, %c0_1] : memref<2x8xf32, #tpu.memory_space<vmem>>, vector<2x8xf32>
    %cst = arith.constant 1.000000e+00 : f32
    %2 = vector.broadcast %cst : f32 to vector<2x8xf32>
    %3 = arith.subf %2, %1 : vector<2x8xf32>
    %cst_2 = arith.constant -1.000000e+30 : f32
    %4 = vector.broadcast %cst_2 : f32 to vector<2x8xf32>
    %5 = arith.mulf %1, %4 : vector<2x8xf32>
    %c0_3 = arith.constant 0 : index
    %c0_4 = arith.constant 0 : index
    %c0_5 = arith.constant 0 : index
    %6 = vector.load %arg1[%c0_3, %c0_4, %c0_5] : memref<2x8x128xf32, #tpu.memory_space<vmem>>, vector<2x8x128xf32>
    %c8 = arith.constant 8 : index
    %c0_6 = arith.constant 0 : index
    %7 = vector.load %arg4[%c8, %c0_6] : memref<40x128xf32, #tpu.memory_space<vmem>>, vector<1x128xf32>
    %c0_7 = arith.constant 0 : index
    %c0_8 = arith.constant 0 : index
    %8 = vector.load %arg4[%c0_7, %c0_8] : memref<40x128xf32, #tpu.memory_space<vmem>>, vector<1x128xf32>
    %c1 = arith.constant 1 : index
    %c0_9 = arith.constant 0 : index
    %9 = vector.load %arg4[%c1, %c0_9] : memref<40x128xf32, #tpu.memory_space<vmem>>, vector<1x128xf32>
    %cst_10 = arith.constant dense<0.000000e+00> : vector<2x8xf32>
    %10 = vector.multi_reduction <add>, %6, %cst_10 [2] : vector<2x8x128xf32> to vector<2x8xf32>
    %11 = vector.shape_cast %10 : vector<2x8xf32> to vector<2x8x1xf32>
    %cst_11 = arith.constant 1.280000e+02 : f32
    %12 = vector.broadcast %cst_11 : f32 to vector<2x8x1xf32>
    %13 = arith.divf %11, %12 : vector<2x8x1xf32>
    %14 = vector.broadcast %13 : vector<2x8x1xf32> to vector<2x8x128xf32>
    %15 = arith.subf %6, %14 : vector<2x8x128xf32>
    %16 = arith.mulf %15, %15 : vector<2x8x128xf32>
    %cst_12 = arith.constant dense<0.000000e+00> : vector<2x8xf32>
    %17 = vector.multi_reduction <add>, %16, %cst_12 [2] : vector<2x8x128xf32> to vector<2x8xf32>
    %18 = vector.shape_cast %17 : vector<2x8xf32> to vector<2x8x1xf32>
    %cst_13 = arith.constant 1.280000e+02 : f32
    %19 = vector.broadcast %cst_13 : f32 to vector<2x8x1xf32>
    %20 = arith.divf %18, %19 : vector<2x8x1xf32>
    %21 = vector.broadcast %13 : vector<2x8x1xf32> to vector<2x8x128xf32>
    %22 = arith.subf %6, %21 : vector<2x8x128xf32>
    %cst_14 = arith.constant 9.99999974E-6 : f32
    %23 = vector.broadcast %cst_14 : f32 to vector<2x8x1xf32>
    %24 = arith.addf %20, %23 : vector<2x8x1xf32>
    %25 = math.rsqrt %24 : vector<2x8x1xf32>
    %26 = vector.broadcast %25 : vector<2x8x1xf32> to vector<2x8x128xf32>
    %27 = arith.mulf %22, %26 : vector<2x8x128xf32>
    %28 = vector.shape_cast %8 : vector<1x128xf32> to vector<1x1x128xf32>
    %29 = vector.broadcast %28 : vector<1x1x128xf32> to vector<2x8x128xf32>
    %30 = arith.mulf %27, %29 : vector<2x8x128xf32>
    %31 = vector.shape_cast %9 : vector<1x128xf32> to vector<1x1x128xf32>
    %32 = vector.broadcast %31 : vector<1x1x128xf32> to vector<2x8x128xf32>
    %33 = arith.addf %30, %32 : vector<2x8x128xf32>
    %34 = vector.shape_cast %3 : vector<2x8xf32> to vector<2x8x1xf32>
    %35 = vector.broadcast %34 : vector<2x8x1xf32> to vector<2x8x128xf32>
    %36 = arith.mulf %33, %35 : vector<2x8x128xf32>
    %37 = vector.shape_cast %36 : vector<2x8x128xf32> to vector<16x128xf32>
    %c0_15 = arith.constant 0 : index
    %c128 = arith.constant 128 : index
    %38 = vector.load %arg5[%c0_15, %c128] : memref<128x1280xbf16, #tpu.memory_space<vmem>>, vector<128x256xbf16>
    %39 = arith.truncf %37 : vector<16x128xf32> to vector<16x128xbf16>
    %cst_16 = arith.constant dense<0.000000e+00> : vector<16x256xf32>
    %40 = tpu.matmul %39, %38, %cst_16 {dimension_numbers = #tpu.dot_dimension_numbers<[1], [0], [0], [1], [0, 0, 1, 1], [], []>} : vector<16x128xbf16>, vector<128x256xbf16>, vector<16x256xf32> -> vector<16x256xf32>
    %41 = vector.shape_cast %40 : vector<16x256xf32> to vector<2x8x256xf32>
    %42 = vector.extract_strided_slice %41 {offsets = [0, 0, 0], sizes = [2, 8, 128], strides = [1, 1, 1]} : vector<2x8x256xf32> to vector<2x8x128xf32>
    %c17 = arith.constant 17 : index
    %c0_17 = arith.constant 0 : index
    %43 = vector.load %arg4[%c17, %c0_17] : memref<40x128xf32, #tpu.memory_space<vmem>>, vector<1x128xf32>
    %44 = vector.shape_cast %43 : vector<1x128xf32> to vector<1x1x128xf32>
    %45 = vector.broadcast %44 : vector<1x1x128xf32> to vector<2x8x128xf32>
    %46 = arith.addf %42, %45 : vector<2x8x128xf32>
    %47 = vector.extract_strided_slice %41 {offsets = [0, 0, 128], sizes = [2, 8, 128], strides = [1, 1, 1]} : vector<2x8x256xf32> to vector<2x8x128xf32>
    %c18 = arith.constant 18 : index
    %c0_18 = arith.constant 0 : index
    %48 = vector.load %arg4[%c18, %c0_18] : memref<40x128xf32, #tpu.memory_space<vmem>>, vector<1x128xf32>
    %49 = vector.shape_cast %48 : vector<1x128xf32> to vector<1x1x128xf32>
    %50 = vector.broadcast %49 : vector<1x1x128xf32> to vector<2x8x128xf32>
    %51 = arith.addf %47, %50 : vector<2x8x128xf32>
    %c0_19 = arith.constant 0 : index
    %c0_20 = arith.constant 0 : index
    %52 = vector.load %arg4[%c0_19, %c0_20] : memref<40x128xf32, #tpu.memory_space<vmem>>, vector<1x128xf32>
    %c1_21 = arith.constant 1 : index
    %c0_22 = arith.constant 0 : index
    %53 = vector.load %arg4[%c1_21, %c0_22] : memref<40x128xf32, #tpu.memory_space<vmem>>, vector<1x128xf32>
    %cst_23 = arith.constant dense<0.000000e+00> : vector<1xf32>
    %54 = vector.multi_reduction <add>, %7, %cst_23 [1] : vector<1x128xf32> to vector<1xf32>
    %55 = vector.shape_cast %54 : vector<1xf32> to vector<1x1xf32>
    %cst_24 = arith.constant 1.280000e+02 : f32
    %56 = vector.broadcast %cst_24 : f32 to vector<1x1xf32>
    %57 = arith.divf %55, %56 : vector<1x1xf32>
    %58 = vector.broadcast %57 : vector<1x1xf32> to vector<1x128xf32>
    %59 = arith.subf %7, %58 : vector<1x128xf32>
    %60 = arith.mulf %59, %59 : vector<1x128xf32>
    %cst_25 = arith.constant dense<0.000000e+00> : vector<1xf32>
    %61 = vector.multi_reduction <add>, %60, %cst_25 [1] : vector<1x128xf32> to vector<1xf32>
    %62 = vector.shape_cast %61 : vector<1xf32> to vector<1x1xf32>
    %cst_26 = arith.constant 1.280000e+02 : f32
    %63 = vector.broadcast %cst_26 : f32 to vector<1x1xf32>
    %64 = arith.divf %62, %63 : vector<1x1xf32>
    %65 = vector.broadcast %57 : vector<1x1xf32> to vector<1x128xf32>
    %66 = arith.subf %7, %65 : vector<1x128xf32>
    %cst_27 = arith.constant 9.99999974E-6 : f32
    %67 = vector.broadcast %cst_27 : f32 to vector<1x1xf32>
    %68 = arith.addf %64, %67 : vector<1x1xf32>
    %69 = math.rsqrt %68 : vector<1x1xf32>
    %70 = vector.broadcast %69 : vector<1x1xf32> to vector<1x128xf32>
    %71 = arith.mulf %66, %70 : vector<1x128xf32>
    %72 = arith.mulf %71, %52 : vector<1x128xf32>
    %73 = arith.addf %72, %53 : vector<1x128xf32>
    %c0_28 = arith.constant 0 : index
    %c0_29 = arith.constant 0 : index
    %74 = vector.load %arg5[%c0_28, %c0_29] : memref<128x1280xbf16, #tpu.memory_space<vmem>>, vector<128x384xbf16>
    %75 = arith.truncf %73 : vector<1x128xf32> to vector<1x128xbf16>
    %cst_30 = arith.constant dense<0.000000e+00> : vector<1x384xf32>
    %76 = tpu.matmul %75, %74, %cst_30 {dimension_numbers = #tpu.dot_dimension_numbers<[1], [0], [0], [1], [0, 0, 1, 1], [], []>} : vector<1x128xbf16>, vector<128x384xbf16>, vector<1x384xf32> -> vector<1x384xf32>
    %77 = vector.extract_strided_slice %76 {offsets = [0, 0], sizes = [1, 128], strides = [1, 1]} : vector<1x384xf32> to vector<1x128xf32>
    %c16 = arith.constant 16 : index
    %c0_31 = arith.constant 0 : index
    %78 = vector.load %arg4[%c16, %c0_31] : memref<40x128xf32, #tpu.memory_space<vmem>>, vector<1x128xf32>
    %79 = arith.addf %77, %78 : vector<1x128xf32>
    %cst_32 = arith.constant 2.500000e-01 : f32
    %80 = vector.broadcast %cst_32 : f32 to vector<1x128xf32>
    %81 = arith.mulf %79, %80 : vector<1x128xf32>
    %82 = vector.extract_strided_slice %76 {offsets = [0, 128], sizes = [1, 128], strides = [1, 1]} : vector<1x384xf32> to vector<1x128xf32>
    %c17_33 = arith.constant 17 : index
    %c0_34 = arith.constant 0 : index
    %83 = vector.load %arg4[%c17_33, %c0_34] : memref<40x128xf32, #tpu.memory_space<vmem>>, vector<1x128xf32>
    %84 = arith.addf %82, %83 : vector<1x128xf32>
    %85 = vector.extract_strided_slice %76 {offsets = [0, 256], sizes = [1, 128], strides = [1, 1]} : vector<1x384xf32> to vector<1x128xf32>
    %c18_35 = arith.constant 18 : index
    %c0_36 = arith.constant 0 : index
    %86 = vector.load %arg4[%c18_35, %c0_36] : memref<40x128xf32, #tpu.memory_space<vmem>>, vector<1x128xf32>
    %87 = arith.addf %85, %86 : vector<1x128xf32>
    %88 = vector.shape_cast %81 : vector<1x128xf32> to vector<1x1x128xf32>
    %89 = vector.broadcast %88 : vector<1x1x128xf32> to vector<2x8x128xf32>
    %90 = arith.mulf %46, %89 : vector<2x8x128xf32>
    %91 = vector.shape_cast %90 : vector<2x8x128xf32> to vector<16x128xf32>
    %cst_37 = arith.constant dense<0.000000e+00> : vector<16x8xf32>
    %92 = tpu.matmul %91, %0, %cst_37 {dimension_numbers = #tpu.dot_dimension_numbers<[1], [1], [0], [0], [0, 0, 1, 0], [], []>} : vector<16x128xf32>, vector<8x128xf32>, vector<16x8xf32> -> vector<16x8xf32>
    %93 = vector.shape_cast %92 : vector<16x8xf32> to vector<2x8x8xf32>
    %94 = vector.shape_cast %5 : vector<2x8xf32> to vector<2x8x1xf32>
    %95 = vector.broadcast %94 : vector<2x8x1xf32> to vector<2x8x8xf32>
    %96 = arith.addf %93, %95 : vector<2x8x8xf32>
    %97 = arith.mulf %84, %81 : vector<1x128xf32>
    %cst_38 = arith.constant dense<0.000000e+00> : vector<1x8xf32>
    %98 = tpu.matmul %97, %0, %cst_38 {dimension_numbers = #tpu.dot_dimension_numbers<[1], [1], [0], [0], [0, 0, 1, 0], [], []>} : vector<1x128xf32>, vector<8x128xf32>, vector<1x8xf32> -> vector<1x8xf32>
    %cst_39 = arith.constant dense<0xFF800000> : vector<2x8xf32>
    %99 = vector.multi_reduction <maximumf>, %96, %cst_39 [1] : vector<2x8x8xf32> to vector<2x8xf32>
    %100 = vector.broadcast %98 : vector<1x8xf32> to vector<2x8xf32>
    %101 = arith.maximumf %99, %100 : vector<2x8xf32>
    %102 = vector.shape_cast %101 : vector<2x8xf32> to vector<2x1x8xf32>
    %103 = vector.broadcast %102 : vector<2x1x8xf32> to vector<2x8x8xf32>
    %104 = arith.subf %96, %103 : vector<2x8x8xf32>
    %105 = math.exp %104 : vector<2x8x8xf32>
    %106 = vector.broadcast %98 : vector<1x8xf32> to vector<2x8xf32>
    %107 = arith.subf %106, %101 : vector<2x8xf32>
    %108 = math.exp %107 : vector<2x8xf32>
    %cst_40 = arith.constant dense<0.000000e+00> : vector<2x8xf32>
    %109 = vector.multi_reduction <add>, %105, %cst_40 [1] : vector<2x8x8xf32> to vector<2x8xf32>
    %110 = arith.addf %109, %108 : vector<2x8xf32>
    %111 = tpu.reciprocal %110 {approx = true} : vector<2x8xf32> -> vector<2x8xf32>
    "tpu.trace_start"() <{level = 10 : i32, message = "bth,bte->bhe"}> : () -> ()
    %cst_41 = arith.constant dense<0.000000e+00> : vector<2x8x128xf32>
    %112 = tpu.matmul %105, %51, %cst_41 {dimension_numbers = #tpu.dot_dimension_numbers<[1], [1], [2], [2], [0, 0, 0, 2, 1, 2], [0], [0]>} : vector<2x8x8xf32>, vector<2x8x128xf32>, vector<2x8x128xf32> -> vector<2x8x128xf32>
    "tpu.trace_stop"() : () -> ()
    %113 = vector.shape_cast %108 : vector<2x8xf32> to vector<2x8x1xf32>
    %114 = vector.shape_cast %87 : vector<1x128xf32> to vector<1x1x128xf32>
    %115 = vector.broadcast %113 : vector<2x8x1xf32> to vector<2x8x128xf32>
    %116 = vector.broadcast %114 : vector<1x1x128xf32> to vector<2x8x128xf32>
    %117 = arith.mulf %115, %116 : vector<2x8x128xf32>
    %118 = arith.addf %112, %117 : vector<2x8x128xf32>
    %119 = vector.shape_cast %111 : vector<2x8xf32> to vector<2x8x1xf32>
    %120 = vector.broadcast %119 : vector<2x8x1xf32> to vector<2x8x128xf32>
    %121 = arith.mulf %118, %120 : vector<2x8x128xf32>
    %122 = vector.shape_cast %0 : vector<8x128xf32> to vector<1x8x128xf32>
    %123 = vector.broadcast %122 : vector<1x8x128xf32> to vector<2x8x128xf32>
    %124 = arith.mulf %121, %123 : vector<2x8x128xf32>
    %cst_42 = arith.constant dense<0.000000e+00> : vector<2x128xf32>
    %125 = vector.multi_reduction <add>, %124, %cst_42 [1] : vector<2x8x128xf32> to vector<2x128xf32>
    %c0_43 = arith.constant 0 : index
    %c384 = arith.constant 384 : index
    %126 = vector.load %arg5[%c0_43, %c384] : memref<128x1280xbf16, #tpu.memory_space<vmem>>, vector<128x128xbf16>
    %127 = arith.truncf %125 : vector<2x128xf32> to vector<2x128xbf16>
    %cst_44 = arith.constant dense<0.000000e+00> : vector<2x128xf32>
    %128 = tpu.matmul %127, %126, %cst_44 {dimension_numbers = #tpu.dot_dimension_numbers<[1], [0], [0], [1], [0, 0, 1, 1], [], []>} : vector<2x128xbf16>, vector<128x128xbf16>, vector<2x128xf32> -> vector<2x128xf32>
    %129 = vector.broadcast %7 : vector<1x128xf32> to vector<2x128xf32>
    %130 = arith.addf %129, %128 : vector<2x128xf32>
    %c19 = arith.constant 19 : index
    %c0_45 = arith.constant 0 : index
    %131 = vector.load %arg4[%c19, %c0_45] : memref<40x128xf32, #tpu.memory_space<vmem>>, vector<1x128xf32>
    %132 = vector.broadcast %131 : vector<1x128xf32> to vector<2x128xf32>
    %133 = arith.addf %130, %132 : vector<2x128xf32>
    %c2 = arith.constant 2 : index
    %c0_46 = arith.constant 0 : index
    %134 = vector.load %arg4[%c2, %c0_46] : memref<40x128xf32, #tpu.memory_space<vmem>>, vector<1x128xf32>
    %c3 = arith.constant 3 : index
    %c0_47 = arith.constant 0 : index
    %135 = vector.load %arg4[%c3, %c0_47] : memref<40x128xf32, #tpu.memory_space<vmem>>, vector<1x128xf32>
    %cst_48 = arith.constant dense<0.000000e+00> : vector<2xf32>
    %136 = vector.multi_reduction <add>, %133, %cst_48 [1] : vector<2x128xf32> to vector<2xf32>
    %137 = vector.shape_cast %136 : vector<2xf32> to vector<2x1xf32>
    %cst_49 = arith.constant 1.280000e+02 : f32
    %138 = vector.broadcast %cst_49 : f32 to vector<2x1xf32>
    %139 = arith.divf %137, %138 : vector<2x1xf32>
    %140 = vector.broadcast %139 : vector<2x1xf32> to vector<2x128xf32>
    %141 = arith.subf %133, %140 : vector<2x128xf32>
    %142 = arith.mulf %141, %141 : vector<2x128xf32>
    %cst_50 = arith.constant dense<0.000000e+00> : vector<2xf32>
    %143 = vector.multi_reduction <add>, %142, %cst_50 [1] : vector<2x128xf32> to vector<2xf32>
    %144 = vector.shape_cast %143 : vector<2xf32> to vector<2x1xf32>
    %cst_51 = arith.constant 1.280000e+02 : f32
    %145 = vector.broadcast %cst_51 : f32 to vector<2x1xf32>
    %146 = arith.divf %144, %145 : vector<2x1xf32>
    %147 = vector.broadcast %139 : vector<2x1xf32> to vector<2x128xf32>
    %148 = arith.subf %133, %147 : vector<2x128xf32>
    %cst_52 = arith.constant 9.99999974E-6 : f32
    %149 = vector.broadcast %cst_52 : f32 to vector<2x1xf32>
    %150 = arith.addf %146, %149 : vector<2x1xf32>
    %151 = math.rsqrt %150 : vector<2x1xf32>
    %152 = vector.broadcast %151 : vector<2x1xf32> to vector<2x128xf32>
    %153 = arith.mulf %148, %152 : vector<2x128xf32>
    %154 = vector.broadcast %134 : vector<1x128xf32> to vector<2x128xf32>
    %155 = arith.mulf %153, %154 : vector<2x128xf32>
    %156 = vector.broadcast %135 : vector<1x128xf32> to vector<2x128xf32>
    %157 = arith.addf %155, %156 : vector<2x128xf32>
    %c0_53 = arith.constant 0 : index
    %c512 = arith.constant 512 : index
    %158 = vector.load %arg5[%c0_53, %c512] : memref<128x1280xbf16, #tpu.memory_space<vmem>>, vector<128x128xbf16>
    %159 = arith.truncf %157 : vector<2x128xf32> to vector<2x128xbf16>
    %cst_54 = arith.constant dense<0.000000e+00> : vector<2x128xf32>
    %160 = tpu.matmul %159, %158, %cst_54 {dimension_numbers = #tpu.dot_dimension_numbers<[1], [0], [0], [1], [0, 0, 1, 1], [], []>} : vector<2x128xbf16>, vector<128x128xbf16>, vector<2x128xf32> -> vector<2x128xf32>
    %c20 = arith.constant 20 : index
    %c0_55 = arith.constant 0 : index
    %161 = vector.load %arg4[%c20, %c0_55] : memref<40x128xf32, #tpu.memory_space<vmem>>, vector<1x128xf32>
    %162 = vector.broadcast %161 : vector<1x128xf32> to vector<2x128xf32>
    %163 = arith.addf %160, %162 : vector<2x128xf32>
    %cst_56 = arith.constant 2.500000e-01 : f32
    %164 = vector.broadcast %cst_56 : f32 to vector<2x128xf32>
    %165 = arith.mulf %163, %164 : vector<2x128xf32>
    %c0_57 = arith.constant 0 : index
    %c0_58 = arith.constant 0 : index
    %c0_59 = arith.constant 0 : index
    %166 = vector.load %arg2[%c0_57, %c0_58, %c0_59] : memref<2x16x128xf32, #tpu.memory_space<vmem>>, vector<2x16x128xf32>
    %167 = vector.shape_cast %166 : vector<2x16x128xf32> to vector<32x128xf32>
    %c0_60 = arith.constant 0 : index
    %c640 = arith.constant 640 : index
    %168 = vector.load %arg5[%c0_60, %c640] : memref<128x1280xbf16, #tpu.memory_space<vmem>>, vector<128x256xbf16>
    %169 = arith.truncf %167 : vector<32x128xf32> to vector<32x128xbf16>
    %cst_61 = arith.constant dense<0.000000e+00> : vector<32x256xf32>
    %170 = tpu.matmul %169, %168, %cst_61 {dimension_numbers = #tpu.dot_dimension_numbers<[1], [0], [0], [1], [0, 0, 1, 1], [], []>} : vector<32x128xbf16>, vector<128x256xbf16>, vector<32x256xf32> -> vector<32x256xf32>
    %171 = vector.shape_cast %170 : vector<32x256xf32> to vector<2x16x256xf32>
    %172 = vector.extract_strided_slice %171 {offsets = [0, 0, 0], sizes = [2, 16, 128], strides = [1, 1, 1]} : vector<2x16x256xf32> to vector<2x16x128xf32>
    %c21 = arith.constant 21 : index
    %c0_62 = arith.constant 0 : index
    %173 = vector.load %arg4[%c21, %c0_62] : memref<40x128xf32, #tpu.memory_space<vmem>>, vector<1x128xf32>
    %174 = vector.shape_cast %173 : vector<1x128xf32> to vector<1x1x128xf32>
    %175 = vector.broadcast %174 : vector<1x1x128xf32> to vector<2x16x128xf32>
    %176 = arith.addf %172, %175 : vector<2x16x128xf32>
    %177 = vector.extract_strided_slice %171 {offsets = [0, 0, 128], sizes = [2, 16, 128], strides = [1, 1, 1]} : vector<2x16x256xf32> to vector<2x16x128xf32>
    %c22 = arith.constant 22 : index
    %c0_63 = arith.constant 0 : index
    %178 = vector.load %arg4[%c22, %c0_63] : memref<40x128xf32, #tpu.memory_space<vmem>>, vector<1x128xf32>
    %179 = vector.shape_cast %178 : vector<1x128xf32> to vector<1x1x128xf32>
    %180 = vector.broadcast %179 : vector<1x1x128xf32> to vector<2x16x128xf32>
    %181 = arith.addf %177, %180 : vector<2x16x128xf32>
    %182 = vector.shape_cast %165 : vector<2x128xf32> to vector<2x1x128xf32>
    %183 = vector.broadcast %182 : vector<2x1x128xf32> to vector<2x16x128xf32>
    %184 = arith.mulf %176, %183 : vector<2x16x128xf32>
    %185 = vector.shape_cast %184 : vector<2x16x128xf32> to vector<32x128xf32>
    %cst_64 = arith.constant dense<0.000000e+00> : vector<32x8xf32>
    %186 = tpu.matmul %185, %0, %cst_64 {dimension_numbers = #tpu.dot_dimension_numbers<[1], [1], [0], [0], [0, 0, 1, 0], [], []>} : vector<32x128xf32>, vector<8x128xf32>, vector<32x8xf32> -> vector<32x8xf32>
    %187 = vector.shape_cast %186 : vector<32x8xf32> to vector<2x16x8xf32>
    %cst_65 = arith.constant dense<0xFF800000> : vector<2x8xf32>
    %188 = vector.multi_reduction <maximumf>, %187, %cst_65 [1] : vector<2x16x8xf32> to vector<2x8xf32>
    %189 = vector.shape_cast %188 : vector<2x8xf32> to vector<2x1x8xf32>
    %190 = vector.broadcast %189 : vector<2x1x8xf32> to vector<2x16x8xf32>
    %191 = arith.subf %187, %190 : vector<2x16x8xf32>
    %192 = math.exp %191 : vector<2x16x8xf32>
    %cst_66 = arith.constant dense<0.000000e+00> : vector<2x8xf32>
    %193 = vector.multi_reduction <add>, %192, %cst_66 [1] : vector<2x16x8xf32> to vector<2x8xf32>
    %194 = tpu.reciprocal %193 {approx = true} : vector<2x8xf32> -> vector<2x8xf32>
    "tpu.trace_start"() <{level = 10 : i32, message = "bsh,bse->bhe"}> : () -> ()
    %cst_67 = arith.constant dense<0.000000e+00> : vector<2x8x128xf32>
    %195 = tpu.matmul %192, %181, %cst_67 {dimension_numbers = #tpu.dot_dimension_numbers<[1], [1], [2], [2], [0, 0, 0, 2, 1, 2], [0], [0]>} : vector<2x16x8xf32>, vector<2x16x128xf32>, vector<2x8x128xf32> -> vector<2x8x128xf32>
    "tpu.trace_stop"() : () -> ()
    %196 = vector.shape_cast %194 : vector<2x8xf32> to vector<2x8x1xf32>
    %197 = vector.broadcast %196 : vector<2x8x1xf32> to vector<2x8x128xf32>
    %198 = arith.mulf %195, %197 : vector<2x8x128xf32>
    %199 = vector.shape_cast %0 : vector<8x128xf32> to vector<1x8x128xf32>
    %200 = vector.broadcast %199 : vector<1x8x128xf32> to vector<2x8x128xf32>
    %201 = arith.mulf %198, %200 : vector<2x8x128xf32>
    %cst_68 = arith.constant dense<0.000000e+00> : vector<2x128xf32>
    %202 = vector.multi_reduction <add>, %201, %cst_68 [1] : vector<2x8x128xf32> to vector<2x128xf32>
    %c0_69 = arith.constant 0 : index
    %c896 = arith.constant 896 : index
    %203 = vector.load %arg5[%c0_69, %c896] : memref<128x1280xbf16, #tpu.memory_space<vmem>>, vector<128x128xbf16>
    %204 = arith.truncf %202 : vector<2x128xf32> to vector<2x128xbf16>
    %cst_70 = arith.constant dense<0.000000e+00> : vector<2x128xf32>
    %205 = tpu.matmul %204, %203, %cst_70 {dimension_numbers = #tpu.dot_dimension_numbers<[1], [0], [0], [1], [0, 0, 1, 1], [], []>} : vector<2x128xbf16>, vector<128x128xbf16>, vector<2x128xf32> -> vector<2x128xf32>
    %206 = arith.addf %133, %205 : vector<2x128xf32>
    %c23 = arith.constant 23 : index
    %c0_71 = arith.constant 0 : index
    %207 = vector.load %arg4[%c23, %c0_71] : memref<40x128xf32, #tpu.memory_space<vmem>>, vector<1x128xf32>
    %208 = vector.broadcast %207 : vector<1x128xf32> to vector<2x128xf32>
    %209 = arith.addf %206, %208 : vector<2x128xf32>
    %c4 = arith.constant 4 : index
    %c0_72 = arith.constant 0 : index
    %210 = vector.load %arg4[%c4, %c0_72] : memref<40x128xf32, #tpu.memory_space<vmem>>, vector<1x128xf32>
    %c5 = arith.constant 5 : index
    %c0_73 = arith.constant 0 : index
    %211 = vector.load %arg4[%c5, %c0_73] : memref<40x128xf32, #tpu.memory_space<vmem>>, vector<1x128xf32>
    %cst_74 = arith.constant dense<0.000000e+00> : vector<2xf32>
    %212 = vector.multi_reduction <add>, %209, %cst_74 [1] : vector<2x128xf32> to vector<2xf32>
    %213 = vector.shape_cast %212 : vector<2xf32> to vector<2x1xf32>
    %cst_75 = arith.constant 1.280000e+02 : f32
    %214 = vector.broadcast %cst_75 : f32 to vector<2x1xf32>
    %215 = arith.divf %213, %214 : vector<2x1xf32>
    %216 = vector.broadcast %215 : vector<2x1xf32> to vector<2x128xf32>
    %217 = arith.subf %209, %216 : vector<2x128xf32>
    %218 = arith.mulf %217, %217 : vector<2x128xf32>
    %cst_76 = arith.constant dense<0.000000e+00> : vector<2xf32>
    %219 = vector.multi_reduction <add>, %218, %cst_76 [1] : vector<2x128xf32> to vector<2xf32>
    %220 = vector.shape_cast %219 : vector<2xf32> to vector<2x1xf32>
    %cst_77 = arith.constant 1.280000e+02 : f32
    %221 = vector.broadcast %cst_77 : f32 to vector<2x1xf32>
    %222 = arith.divf %220, %221 : vector<2x1xf32>
    %223 = vector.broadcast %215 : vector<2x1xf32> to vector<2x128xf32>
    %224 = arith.subf %209, %223 : vector<2x128xf32>
    %cst_78 = arith.constant 9.99999974E-6 : f32
    %225 = vector.broadcast %cst_78 : f32 to vector<2x1xf32>
    %226 = arith.addf %222, %225 : vector<2x1xf32>
    %227 = math.rsqrt %226 : vector<2x1xf32>
    %228 = vector.broadcast %227 : vector<2x1xf32> to vector<2x128xf32>
    %229 = arith.mulf %224, %228 : vector<2x128xf32>
    %230 = vector.broadcast %210 : vector<1x128xf32> to vector<2x128xf32>
    %231 = arith.mulf %229, %230 : vector<2x128xf32>
    %232 = vector.broadcast %211 : vector<1x128xf32> to vector<2x128xf32>
    %233 = arith.addf %231, %232 : vector<2x128xf32>
    %c0_79 = arith.constant 0 : index
    %c1024 = arith.constant 1024 : index
    %234 = vector.load %arg5[%c0_79, %c1024] : memref<128x1280xbf16, #tpu.memory_space<vmem>>, vector<128x128xbf16>
    %235 = arith.truncf %233 : vector<2x128xf32> to vector<2x128xbf16>
    %cst_80 = arith.constant dense<0.000000e+00> : vector<2x128xf32>
    %236 = tpu.matmul %235, %234, %cst_80 {dimension_numbers = #tpu.dot_dimension_numbers<[1], [0], [0], [1], [0, 0, 1, 1], [], []>} : vector<2x128xbf16>, vector<128x128xbf16>, vector<2x128xf32> -> vector<2x128xf32>
    %c24 = arith.constant 24 : index
    %c0_81 = arith.constant 0 : index
    %237 = vector.load %arg4[%c24, %c0_81] : memref<40x128xf32, #tpu.memory_space<vmem>>, vector<1x128xf32>
    %238 = vector.broadcast %237 : vector<1x128xf32> to vector<2x128xf32>
    %239 = arith.addf %236, %238 : vector<2x128xf32>
    %cst_82 = arith.constant 5.000000e-01 : f32
    %240 = vector.broadcast %cst_82 : f32 to vector<2x128xf32>
    %241 = arith.mulf %240, %239 : vector<2x128xf32>
    %cst_83 = arith.constant 4.471500e-02 : f32
    %242 = vector.broadcast %cst_83 : f32 to vector<2x128xf32>
    %243 = arith.mulf %242, %239 : vector<2x128xf32>
    %244 = arith.mulf %243, %239 : vector<2x128xf32>
    %245 = arith.mulf %244, %239 : vector<2x128xf32>
    %246 = arith.addf %239, %245 : vector<2x128xf32>
    %cst_84 = arith.constant 0.797884583 : f32
    %247 = vector.broadcast %cst_84 : f32 to vector<2x128xf32>
    %248 = arith.mulf %247, %246 : vector<2x128xf32>
    %249 = math.tanh %248 : vector<2x128xf32>
    %cst_85 = arith.constant 1.000000e+00 : f32
    %250 = vector.broadcast %cst_85 : f32 to vector<2x128xf32>
    %251 = arith.addf %250, %249 : vector<2x128xf32>
    %252 = arith.mulf %241, %251 : vector<2x128xf32>
    %c6 = arith.constant 6 : index
    %c0_86 = arith.constant 0 : index
    %253 = vector.load %arg4[%c6, %c0_86] : memref<40x128xf32, #tpu.memory_space<vmem>>, vector<1x128xf32>
    %c7 = arith.constant 7 : index
    %c0_87 = arith.constant 0 : index
    %254 = vector.load %arg4[%c7, %c0_87] : memref<40x128xf32, #tpu.memory_space<vmem>>, vector<1x128xf32>
    %cst_88 = arith.constant dense<0.000000e+00> : vector<2xf32>
    %255 = vector.multi_reduction <add>, %252, %cst_88 [1] : vector<2x128xf32> to vector<2xf32>
    %256 = vector.shape_cast %255 : vector<2xf32> to vector<2x1xf32>
    %cst_89 = arith.constant 1.280000e+02 : f32
    %257 = vector.broadcast %cst_89 : f32 to vector<2x1xf32>
    %258 = arith.divf %256, %257 : vector<2x1xf32>
    %259 = vector.broadcast %258 : vector<2x1xf32> to vector<2x128xf32>
    %260 = arith.subf %252, %259 : vector<2x128xf32>
    %261 = arith.mulf %260, %260 : vector<2x128xf32>
    %cst_90 = arith.constant dense<0.000000e+00> : vector<2xf32>
    %262 = vector.multi_reduction <add>, %261, %cst_90 [1] : vector<2x128xf32> to vector<2xf32>
    %263 = vector.shape_cast %262 : vector<2xf32> to vector<2x1xf32>
    %cst_91 = arith.constant 1.280000e+02 : f32
    %264 = vector.broadcast %cst_91 : f32 to vector<2x1xf32>
    %265 = arith.divf %263, %264 : vector<2x1xf32>
    %266 = vector.broadcast %258 : vector<2x1xf32> to vector<2x128xf32>
    %267 = arith.subf %252, %266 : vector<2x128xf32>
    %cst_92 = arith.constant 9.99999974E-6 : f32
    %268 = vector.broadcast %cst_92 : f32 to vector<2x1xf32>
    %269 = arith.addf %265, %268 : vector<2x1xf32>
    %270 = math.rsqrt %269 : vector<2x1xf32>
    %271 = vector.broadcast %270 : vector<2x1xf32> to vector<2x128xf32>
    %272 = arith.mulf %267, %271 : vector<2x128xf32>
    %273 = vector.broadcast %253 : vector<1x128xf32> to vector<2x128xf32>
    %274 = arith.mulf %272, %273 : vector<2x128xf32>
    %275 = vector.broadcast %254 : vector<1x128xf32> to vector<2x128xf32>
    %276 = arith.addf %274, %275 : vector<2x128xf32>
    %c0_93 = arith.constant 0 : index
    %c1152 = arith.constant 1152 : index
    %277 = vector.load %arg5[%c0_93, %c1152] : memref<128x1280xbf16, #tpu.memory_space<vmem>>, vector<128x128xbf16>
    %278 = arith.truncf %276 : vector<2x128xf32> to vector<2x128xbf16>
    %cst_94 = arith.constant dense<0.000000e+00> : vector<2x128xf32>
    %279 = tpu.matmul %278, %277, %cst_94 {dimension_numbers = #tpu.dot_dimension_numbers<[1], [0], [0], [1], [0, 0, 1, 1], [], []>} : vector<2x128xbf16>, vector<128x128xbf16>, vector<2x128xf32> -> vector<2x128xf32>
    %c25 = arith.constant 25 : index
    %c0_95 = arith.constant 0 : index
    %280 = vector.load %arg4[%c25, %c0_95] : memref<40x128xf32, #tpu.memory_space<vmem>>, vector<1x128xf32>
    %281 = vector.broadcast %280 : vector<1x128xf32> to vector<2x128xf32>
    %282 = arith.addf %279, %281 : vector<2x128xf32>
    %283 = arith.addf %209, %282 : vector<2x128xf32>
    %c0_96 = arith.constant 0 : index
    %c0_97 = arith.constant 0 : index
    %284 = vector.load %arg6[%c0_96, %c0_97] : memref<2x128xf32, #tpu.memory_space<vmem>>, vector<2x128xf32>
    tpu.vector_store %arg6[%c0_96, %c0_97], %283 {strides = array<i32>} : memref<2x128xf32, #tpu.memory_space<vmem>>, vector<2x128xf32>,
    return
  }
  func.func @transform_0(%arg0: i32) -> (i32, i32, i32) {
    %c0_i32 = arith.constant 0 : i32
    %c0_i32_0 = arith.constant 0 : i32
    %c0_i32_1 = arith.constant 0 : i32
    return %arg0, %c0_i32, %c0_i32_0 : i32, i32, i32
  }
  func.func @transform_1(%arg0: i32) -> (i32, i32, i32) {
    %c0_i32 = arith.constant 0 : i32
    %c0_i32_0 = arith.constant 0 : i32
    %c0_i32_1 = arith.constant 0 : i32
    return %arg0, %c0_i32, %c0_i32_0 : i32, i32, i32
  }
  func.func @transform_2(%arg0: i32) -> (i32, i32) {
    %c0_i32 = arith.constant 0 : i32
    %c0_i32_0 = arith.constant 0 : i32
    return %arg0, %c0_i32 : i32, i32
  }
  func.func @transform_3(%arg0: i32) -> (i32, i32) {
    %c0_i32 = arith.constant 0 : i32
    %c0_i32_0 = arith.constant 0 : i32
    %c0_i32_1 = arith.constant 0 : i32
    return %c0_i32, %c0_i32_0 : i32, i32
  }
  func.func @transform_4(%arg0: i32) -> (i32, i32) {
    %c0_i32 = arith.constant 0 : i32
    %c0_i32_0 = arith.constant 0 : i32
    %c0_i32_1 = arith.constant 0 : i32
    return %c0_i32, %c0_i32_0 : i32, i32
  }
  func.func @transform_5(%arg0: i32) -> (i32, i32) {
    %c0_i32 = arith.constant 0 : i32
    %c0_i32_0 = arith.constant 0 : i32
    return %arg0, %c0_i32 : i32, i32
  }
}

module attributes {stable_mosaic.version = 11 : i64} {
  func.func @exis_sent_kernel(%arg0: i32, %arg1: memref<2x8x128xf32, #tpu.memory_space<vmem>>, %arg2: memref<2x16x128xf32, #tpu.memory_space<vmem>>, %arg3: memref<2x8xf32, #tpu.memory_space<vmem>>, %arg4: memref<40x128xf32, #tpu.memory_space<vmem>>, %arg5: memref<128x1280xbf16, #tpu.memory_space<vmem>>, %arg6: memref<2x128xf32, #tpu.memory_space<vmem>>) attributes {dimension_semantics = [#tpu.dimension_semantics<arbitrary>], iteration_bounds = array<i64: 1>, scalar_prefetch = 0 : i64, scratch_operands = 0 : i64, tpu.core_type = #tpu.core_type<tc>, window_params = [{transform_indices = @transform_0, window_bounds = array<i64: 2, 8, 128>}, {transform_indices = @transform_1, window_bounds = array<i64: 2, 16, 128>}, {transform_indices = @transform_2, window_bounds = array<i64: 2, 8>}, {pipeline_mode = #tpu.pipeline_mode<synchronous>, transform_indices = @transform_3, window_bounds = array<i64: 40, 128>}, {pipeline_mode = #tpu.pipeline_mode<synchronous>, transform_indices = @transform_4, window_bounds = array<i64: 128, 1280>}, {transform_indices = @transform_5, window_bounds = array<i64: 2, 128>}]} {
    %c32 = arith.constant 32 : index
    %c0 = arith.constant 0 : index
    %0 = vector.load %arg4[%c32, %c0] : memref<40x128xf32, #tpu.memory_space<vmem>>, vector<8x128xf32>
    %c0_0 = arith.constant 0 : index
    %c0_1 = arith.constant 0 : index
    %1 = vector.load %arg3[%c0_0, %c0_1] : memref<2x8xf32, #tpu.memory_space<vmem>>, vector<2x8xf32>
    %cst = arith.constant 1.000000e+00 : f32
    %2 = vector.broadcast %cst : f32 to vector<2x8xf32>
    %3 = arith.subf %2, %1 : vector<2x8xf32>
    %cst_2 = arith.constant -1.000000e+30 : f32
    %4 = vector.broadcast %cst_2 : f32 to vector<2x8xf32>
    %5 = arith.mulf %1, %4 : vector<2x8xf32>
    %c0_3 = arith.constant 0 : index
    %c0_4 = arith.constant 0 : index
    %c0_5 = arith.constant 0 : index
    %6 = vector.load %arg1[%c0_3, %c0_4, %c0_5] : memref<2x8x128xf32, #tpu.memory_space<vmem>>, vector<2x8x128xf32>
    %c8 = arith.constant 8 : index
    %c0_6 = arith.constant 0 : index
    %7 = vector.load %arg4[%c8, %c0_6] : memref<40x128xf32, #tpu.memory_space<vmem>>, vector<1x128xf32>
    %c0_7 = arith.constant 0 : index
    %c0_8 = arith.constant 0 : index
    %8 = vector.load %arg4[%c0_7, %c0_8] : memref<40x128xf32, #tpu.memory_space<vmem>>, vector<1x128xf32>
    %c1 = arith.constant 1 : index
    %c0_9 = arith.constant 0 : index
    %9 = vector.load %arg4[%c1, %c0_9] : memref<40x128xf32, #tpu.memory_space<vmem>>, vector<1x128xf32>
    %cst_10 = arith.constant dense<0.000000e+00> : vector<2x8xf32>
    %10 = vector.multi_reduction <add>, %6, %cst_10 [2] : vector<2x8x128xf32> to vector<2x8xf32>
    %11 = vector.shape_cast %10 : vector<2x8xf32> to vector<2x8x1xf32>
    %cst_11 = arith.constant 1.280000e+02 : f32
    %12 = vector.broadcast %cst_11 : f32 to vector<2x8x1xf32>
    %13 = arith.divf %11, %12 : vector<2x8x1xf32>
    %14 = vector.broadcast %13 : vector<2x8x1xf32> to vector<2x8x128xf32>
    %15 = arith.subf %6, %14 : vector<2x8x128xf32>
    %16 = arith.mulf %15, %15 : vector<2x8x128xf32>
    %cst_12 = arith.constant dense<0.000000e+00> : vector<2x8xf32>
    %17 = vector.multi_reduction <add>, %16, %cst_12 [2] : vector<2x8x128xf32> to vector<2x8xf32>
    %18 = vector.shape_cast %17 : vector<2x8xf32> to vector<2x8x1xf32>
    %cst_13 = arith.constant 1.280000e+02 : f32
    %19 = vector.broadcast %cst_13 : f32 to vector<2x8x1xf32>
    %20 = arith.divf %18, %19 : vector<2x8x1xf32>
    %21 = vector.broadcast %13 : vector<2x8x1xf32> to vector<2x8x128xf32>
    %22 = arith.subf %6, %21 : vector<2x8x128xf32>
    %cst_14 = arith.constant 9.99999974E-6 : f32
    %23 = vector.broadcast %cst_14 : f32 to vector<2x8x1xf32>
    %24 = arith.addf %20, %23 : vector<2x8x1xf32>
    %25 = math.rsqrt %24 : vector<2x8x1xf32>
    %26 = vector.broadcast %25 : vector<2x8x1xf32> to vector<2x8x128xf32>
    %27 = arith.mulf %22, %26 : vector<2x8x128xf32>
    %28 = vector.shape_cast %8 : vector<1x128xf32> to vector<1x1x128xf32>
    %29 = vector.broadcast %28 : vector<1x1x128xf32> to vector<2x8x128xf32>
    %30 = arith.mulf %27, %29 : vector<2x8x128xf32>
    %31 = vector.shape_cast %9 : vector<1x128xf32> to vector<1x1x128xf32>
    %32 = vector.broadcast %31 : vector<1x1x128xf32> to vector<2x8x128xf32>
    %33 = arith.addf %30, %32 : vector<2x8x128xf32>
    %34 = vector.shape_cast %3 : vector<2x8xf32> to vector<2x8x1xf32>
    %35 = vector.broadcast %34 : vector<2x8x1xf32> to vector<2x8x128xf32>
    %36 = arith.mulf %33, %35 : vector<2x8x128xf32>
    %37 = vector.shape_cast %36 : vector<2x8x128xf32> to vector<16x128xf32>
    %c0_15 = arith.constant 0 : index
    %c128 = arith.constant 128 : index
    %38 = vector.load %arg5[%c0_15, %c128] : memref<128x1280xbf16, #tpu.memory_space<vmem>>, vector<128x256xbf16>
    %39 = arith.truncf %37 : vector<16x128xf32> to vector<16x128xbf16>
    %cst_16 = arith.constant dense<0.000000e+00> : vector<16x256xf32>
    %40 = tpu.matmul %39, %38, %cst_16 {dimension_numbers = #tpu.dot_dimension_numbers<[1], [0], [0], [1], [0, 0, 1, 1], [], []>} : vector<16x128xbf16>, vector<128x256xbf16>, vector<16x256xf32> -> vector<16x256xf32>
    %41 = vector.shape_cast %40 : vector<16x256xf32> to vector<2x8x256xf32>
    %42 = vector.extract_strided_slice %41 {offsets = [0, 0, 0], sizes = [2, 8, 128], strides = [1, 1, 1]} : vector<2x8x256xf32> to vector<2x8x128xf32>
    %c17 = arith.constant 17 : index
    %c0_17 = arith.constant 0 : index
    %43 = vector.load %arg4[%c17, %c0_17] : memref<40x128xf32, #tpu.memory_space<vmem>>, vector<1x128xf32>
    %44 = vector.shape_cast %43 : vector<1x128xf32> to vector<1x1x128xf32>
    %45 = vector.broadcast %44 : vector<1x1x128xf32> to vector<2x8x128xf32>
    %46 = arith.addf %42, %45 : vector<2x8x128xf32>
    %47 = vector.extract_strided_slice %41 {offsets = [0, 0, 128], sizes = [2, 8, 128], strides = [1, 1, 1]} : vector<2x8x256xf32> to vector<2x8x128xf32>
    %c18 = arith.constant 18 : index
    %c0_18 = arith.constant 0 : index
    %48 = vector.load %arg4[%c18, %c0_18] : memref<40x128xf32, #tpu.memory_space<vmem>>, vector<1x128xf32>
    %49 = vector.shape_cast %48 : vector<1x128xf32> to vector<1x1x128xf32>
    %50 = vector.broadcast %49 : vector<1x1x128xf32> to vector<2x8x128xf32>
    %51 = arith.addf %47, %50 : vector<2x8x128xf32>
    %c0_19 = arith.constant 0 : index
    %c0_20 = arith.constant 0 : index
    %52 = vector.load %arg4[%c0_19, %c0_20] : memref<40x128xf32, #tpu.memory_space<vmem>>, vector<1x128xf32>
    %c1_21 = arith.constant 1 : index
    %c0_22 = arith.constant 0 : index
    %53 = vector.load %arg4[%c1_21, %c0_22] : memref<40x128xf32, #tpu.memory_space<vmem>>, vector<1x128xf32>
    %cst_23 = arith.constant dense<0.000000e+00> : vector<1xf32>
    %54 = vector.multi_reduction <add>, %7, %cst_23 [1] : vector<1x128xf32> to vector<1xf32>
    %55 = vector.shape_cast %54 : vector<1xf32> to vector<1x1xf32>
    %cst_24 = arith.constant 1.280000e+02 : f32
    %56 = vector.broadcast %cst_24 : f32 to vector<1x1xf32>
    %57 = arith.divf %55, %56 : vector<1x1xf32>
    %58 = vector.broadcast %57 : vector<1x1xf32> to vector<1x128xf32>
    %59 = arith.subf %7, %58 : vector<1x128xf32>
    %60 = arith.mulf %59, %59 : vector<1x128xf32>
    %cst_25 = arith.constant dense<0.000000e+00> : vector<1xf32>
    %61 = vector.multi_reduction <add>, %60, %cst_25 [1] : vector<1x128xf32> to vector<1xf32>
    %62 = vector.shape_cast %61 : vector<1xf32> to vector<1x1xf32>
    %cst_26 = arith.constant 1.280000e+02 : f32
    %63 = vector.broadcast %cst_26 : f32 to vector<1x1xf32>
    %64 = arith.divf %62, %63 : vector<1x1xf32>
    %65 = vector.broadcast %57 : vector<1x1xf32> to vector<1x128xf32>
    %66 = arith.subf %7, %65 : vector<1x128xf32>
    %cst_27 = arith.constant 9.99999974E-6 : f32
    %67 = vector.broadcast %cst_27 : f32 to vector<1x1xf32>
    %68 = arith.addf %64, %67 : vector<1x1xf32>
    %69 = math.rsqrt %68 : vector<1x1xf32>
    %70 = vector.broadcast %69 : vector<1x1xf32> to vector<1x128xf32>
    %71 = arith.mulf %66, %70 : vector<1x128xf32>
    %72 = arith.mulf %71, %52 : vector<1x128xf32>
    %73 = arith.addf %72, %53 : vector<1x128xf32>
    %c0_28 = arith.constant 0 : index
    %c0_29 = arith.constant 0 : index
    %74 = vector.load %arg5[%c0_28, %c0_29] : memref<128x1280xbf16, #tpu.memory_space<vmem>>, vector<128x384xbf16>
    %75 = arith.truncf %73 : vector<1x128xf32> to vector<1x128xbf16>
    %cst_30 = arith.constant dense<0.000000e+00> : vector<1x384xf32>
    %76 = tpu.matmul %75, %74, %cst_30 {dimension_numbers = #tpu.dot_dimension_numbers<[1], [0], [0], [1], [0, 0, 1, 1], [], []>} : vector<1x128xbf16>, vector<128x384xbf16>, vector<1x384xf32> -> vector<1x384xf32>
    %77 = vector.extract_strided_slice %76 {offsets = [0, 0], sizes = [1, 128], strides = [1, 1]} : vector<1x384xf32> to vector<1x128xf32>
    %c16 = arith.constant 16 : index
    %c0_31 = arith.constant 0 : index
    %78 = vector.load %arg4[%c16, %c0_31] : memref<40x128xf32, #tpu.memory_space<vmem>>, vector<1x128xf32>
    %79 = arith.addf %77, %78 : vector<1x128xf32>
    %cst_32 = arith.constant 2.500000e-01 : f32
    %80 = vector.broadcast %cst_32 : f32 to vector<1x128xf32>
    %81 = arith.mulf %79, %80 : vector<1x128xf32>
    %82 = vector.extract_strided_slice %76 {offsets = [0, 128], sizes = [1, 128], strides = [1, 1]} : vector<1x384xf32> to vector<1x128xf32>
    %c17_33 = arith.constant 17 : index
    %c0_34 = arith.constant 0 : index
    %83 = vector.load %arg4[%c17_33, %c0_34] : memref<40x128xf32, #tpu.memory_space<vmem>>, vector<1x128xf32>
    %84 = arith.addf %82, %83 : vector<1x128xf32>
    %85 = vector.extract_strided_slice %76 {offsets = [0, 256], sizes = [1, 128], strides = [1, 1]} : vector<1x384xf32> to vector<1x128xf32>
    %c18_35 = arith.constant 18 : index
    %c0_36 = arith.constant 0 : index
    %86 = vector.load %arg4[%c18_35, %c0_36] : memref<40x128xf32, #tpu.memory_space<vmem>>, vector<1x128xf32>
    %87 = arith.addf %85, %86 : vector<1x128xf32>
    %88 = vector.shape_cast %81 : vector<1x128xf32> to vector<1x1x128xf32>
    %89 = vector.broadcast %88 : vector<1x1x128xf32> to vector<2x8x128xf32>
    %90 = arith.mulf %46, %89 : vector<2x8x128xf32>
    %91 = vector.shape_cast %90 : vector<2x8x128xf32> to vector<16x128xf32>
    %cst_37 = arith.constant dense<0.000000e+00> : vector<16x8xf32>
    %92 = tpu.matmul %91, %0, %cst_37 {dimension_numbers = #tpu.dot_dimension_numbers<[1], [1], [0], [0], [0, 0, 1, 0], [], []>} : vector<16x128xf32>, vector<8x128xf32>, vector<16x8xf32> -> vector<16x8xf32>
    %93 = vector.shape_cast %92 : vector<16x8xf32> to vector<2x8x8xf32>
    %94 = vector.shape_cast %5 : vector<2x8xf32> to vector<2x8x1xf32>
    %95 = vector.broadcast %94 : vector<2x8x1xf32> to vector<2x8x8xf32>
    %96 = arith.addf %93, %95 : vector<2x8x8xf32>
    %97 = arith.mulf %84, %81 : vector<1x128xf32>
    %cst_38 = arith.constant dense<0.000000e+00> : vector<1x8xf32>
    %98 = tpu.matmul %97, %0, %cst_38 {dimension_numbers = #tpu.dot_dimension_numbers<[1], [1], [0], [0], [0, 0, 1, 0], [], []>} : vector<1x128xf32>, vector<8x128xf32>, vector<1x8xf32> -> vector<1x8xf32>
    %cst_39 = arith.constant dense<0xFF800000> : vector<2x8xf32>
    %99 = vector.multi_reduction <maximumf>, %96, %cst_39 [1] : vector<2x8x8xf32> to vector<2x8xf32>
    %100 = vector.broadcast %98 : vector<1x8xf32> to vector<2x8xf32>
    %101 = arith.maximumf %99, %100 : vector<2x8xf32>
    %102 = vector.shape_cast %101 : vector<2x8xf32> to vector<2x1x8xf32>
    %103 = vector.broadcast %102 : vector<2x1x8xf32> to vector<2x8x8xf32>
    %104 = arith.subf %96, %103 : vector<2x8x8xf32>
    %105 = math.exp %104 : vector<2x8x8xf32>
    %106 = vector.broadcast %98 : vector<1x8xf32> to vector<2x8xf32>
    %107 = arith.subf %106, %101 : vector<2x8xf32>
    %108 = math.exp %107 : vector<2x8xf32>
    %cst_40 = arith.constant dense<0.000000e+00> : vector<2x8xf32>
    %109 = vector.multi_reduction <add>, %105, %cst_40 [1] : vector<2x8x8xf32> to vector<2x8xf32>
    %110 = arith.addf %109, %108 : vector<2x8xf32>
    %111 = tpu.reciprocal %110 {approx = true} : vector<2x8xf32> -> vector<2x8xf32>
    "tpu.trace_start"() <{level = 10 : i32, message = "bth,bte->bhe"}> : () -> ()
    %cst_41 = arith.constant dense<0.000000e+00> : vector<2x8x128xf32>
    %112 = tpu.matmul %105, %51, %cst_41 {dimension_numbers = #tpu.dot_dimension_numbers<[1], [1], [2], [2], [0, 0, 0, 2, 1, 2], [0], [0]>} : vector<2x8x8xf32>, vector<2x8x128xf32>, vector<2x8x128xf32> -> vector<2x8x128xf32>
    "tpu.trace_stop"() : () -> ()
    %113 = vector.shape_cast %108 : vector<2x8xf32> to vector<2x8x1xf32>
    %114 = vector.shape_cast %87 : vector<1x128xf32> to vector<1x1x128xf32>
    %115 = vector.broadcast %113 : vector<2x8x1xf32> to vector<2x8x128xf32>
    %116 = vector.broadcast %114 : vector<1x1x128xf32> to vector<2x8x128xf32>
    %117 = arith.mulf %115, %116 : vector<2x8x128xf32>
    %118 = arith.addf %112, %117 : vector<2x8x128xf32>
    %119 = vector.shape_cast %111 : vector<2x8xf32> to vector<2x8x1xf32>
    %120 = vector.broadcast %119 : vector<2x8x1xf32> to vector<2x8x128xf32>
    %121 = arith.mulf %118, %120 : vector<2x8x128xf32>
    %122 = vector.shape_cast %0 : vector<8x128xf32> to vector<1x8x128xf32>
    %123 = vector.broadcast %122 : vector<1x8x128xf32> to vector<2x8x128xf32>
    %124 = arith.mulf %121, %123 : vector<2x8x128xf32>
    %cst_42 = arith.constant dense<0.000000e+00> : vector<2x128xf32>
    %125 = vector.multi_reduction <add>, %124, %cst_42 [1] : vector<2x8x128xf32> to vector<2x128xf32>
    %c0_43 = arith.constant 0 : index
    %c384 = arith.constant 384 : index
    %126 = vector.load %arg5[%c0_43, %c384] : memref<128x1280xbf16, #tpu.memory_space<vmem>>, vector<128x128xbf16>
    %127 = arith.truncf %125 : vector<2x128xf32> to vector<2x128xbf16>
    %cst_44 = arith.constant dense<0.000000e+00> : vector<2x128xf32>
    %128 = tpu.matmul %127, %126, %cst_44 {dimension_numbers = #tpu.dot_dimension_numbers<[1], [0], [0], [1], [0, 0, 1, 1], [], []>} : vector<2x128xbf16>, vector<128x128xbf16>, vector<2x128xf32> -> vector<2x128xf32>
    %129 = vector.broadcast %7 : vector<1x128xf32> to vector<2x128xf32>
    %130 = arith.addf %129, %128 : vector<2x128xf32>
    %c19 = arith.constant 19 : index
    %c0_45 = arith.constant 0 : index
    %131 = vector.load %arg4[%c19, %c0_45] : memref<40x128xf32, #tpu.memory_space<vmem>>, vector<1x128xf32>
    %132 = vector.broadcast %131 : vector<1x128xf32> to vector<2x128xf32>
    %133 = arith.addf %130, %132 : vector<2x128xf32>
    %c2 = arith.constant 2 : index
    %c0_46 = arith.constant 0 : index
    %134 = vector.load %arg4[%c2, %c0_46] : memref<40x128xf32, #tpu.memory_space<vmem>>, vector<1x128xf32>
    %c3 = arith.constant 3 : index
    %c0_47 = arith.constant 0 : index
    %135 = vector.load %arg4[%c3, %c0_47] : memref<40x128xf32, #tpu.memory_space<vmem>>, vector<1x128xf32>
    %cst_48 = arith.constant dense<0.000000e+00> : vector<2xf32>
    %136 = vector.multi_reduction <add>, %133, %cst_48 [1] : vector<2x128xf32> to vector<2xf32>
    %137 = vector.shape_cast %136 : vector<2xf32> to vector<2x1xf32>
    %cst_49 = arith.constant 1.280000e+02 : f32
    %138 = vector.broadcast %cst_49 : f32 to vector<2x1xf32>
    %139 = arith.divf %137, %138 : vector<2x1xf32>
    %140 = vector.broadcast %139 : vector<2x1xf32> to vector<2x128xf32>
    %141 = arith.subf %133, %140 : vector<2x128xf32>
    %142 = arith.mulf %141, %141 : vector<2x128xf32>
    %cst_50 = arith.constant dense<0.000000e+00> : vector<2xf32>
    %143 = vector.multi_reduction <add>, %142, %cst_50 [1] : vector<2x128xf32> to vector<2xf32>
    %144 = vector.shape_cast %143 : vector<2xf32> to vector<2x1xf32>
    %cst_51 = arith.constant 1.280000e+02 : f32
    %145 = vector.broadcast %cst_51 : f32 to vector<2x1xf32>
    %146 = arith.divf %144, %145 : vector<2x1xf32>
    %147 = vector.broadcast %139 : vector<2x1xf32> to vector<2x128xf32>
    %148 = arith.subf %133, %147 : vector<2x128xf32>
    %cst_52 = arith.constant 9.99999974E-6 : f32
    %149 = vector.broadcast %cst_52 : f32 to vector<2x1xf32>
    %150 = arith.addf %146, %149 : vector<2x1xf32>
    %151 = math.rsqrt %150 : vector<2x1xf32>
    %152 = vector.broadcast %151 : vector<2x1xf32> to vector<2x128xf32>
    %153 = arith.mulf %148, %152 : vector<2x128xf32>
    %154 = vector.broadcast %134 : vector<1x128xf32> to vector<2x128xf32>
    %155 = arith.mulf %153, %154 : vector<2x128xf32>
    %156 = vector.broadcast %135 : vector<1x128xf32> to vector<2x128xf32>
    %157 = arith.addf %155, %156 : vector<2x128xf32>
    %c0_53 = arith.constant 0 : index
    %c512 = arith.constant 512 : index
    %158 = vector.load %arg5[%c0_53, %c512] : memref<128x1280xbf16, #tpu.memory_space<vmem>>, vector<128x128xbf16>
    %159 = arith.truncf %157 : vector<2x128xf32> to vector<2x128xbf16>
    %cst_54 = arith.constant dense<0.000000e+00> : vector<2x128xf32>
    %160 = tpu.matmul %159, %158, %cst_54 {dimension_numbers = #tpu.dot_dimension_numbers<[1], [0], [0], [1], [0, 0, 1, 1], [], []>} : vector<2x128xbf16>, vector<128x128xbf16>, vector<2x128xf32> -> vector<2x128xf32>
    %c20 = arith.constant 20 : index
    %c0_55 = arith.constant 0 : index
    %161 = vector.load %arg4[%c20, %c0_55] : memref<40x128xf32, #tpu.memory_space<vmem>>, vector<1x128xf32>
    %162 = vector.broadcast %161 : vector<1x128xf32> to vector<2x128xf32>
    %163 = arith.addf %160, %162 : vector<2x128xf32>
    %cst_56 = arith.constant 2.500000e-01 : f32
    %164 = vector.broadcast %cst_56 : f32 to vector<2x128xf32>
    %165 = arith.mulf %163, %164 : vector<2x128xf32>
    %c0_57 = arith.constant 0 : index
    %c0_58 = arith.constant 0 : index
    %c0_59 = arith.constant 0 : index
    %166 = vector.load %arg2[%c0_57, %c0_58, %c0_59] : memref<2x16x128xf32, #tpu.memory_space<vmem>>, vector<2x16x128xf32>
    %167 = vector.shape_cast %166 : vector<2x16x128xf32> to vector<32x128xf32>
    %c0_60 = arith.constant 0 : index
    %c640 = arith.constant 640 : index
    %168 = vector.load %arg5[%c0_60, %c640] : memref<128x1280xbf16, #tpu.memory_space<vmem>>, vector<128x256xbf16>
    %169 = arith.truncf %167 : vector<32x128xf32> to vector<32x128xbf16>
    %cst_61 = arith.constant dense<0.000000e+00> : vector<32x256xf32>
    %170 = tpu.matmul %169, %168, %cst_61 {dimension_numbers = #tpu.dot_dimension_numbers<[1], [0], [0], [1], [0, 0, 1, 1], [], []>} : vector<32x128xbf16>, vector<128x256xbf16>, vector<32x256xf32> -> vector<32x256xf32>
    %171 = vector.shape_cast %170 : vector<32x256xf32> to vector<2x16x256xf32>
    %172 = vector.extract_strided_slice %171 {offsets = [0, 0, 0], sizes = [2, 16, 128], strides = [1, 1, 1]} : vector<2x16x256xf32> to vector<2x16x128xf32>
    %c21 = arith.constant 21 : index
    %c0_62 = arith.constant 0 : index
    %173 = vector.load %arg4[%c21, %c0_62] : memref<40x128xf32, #tpu.memory_space<vmem>>, vector<1x128xf32>
    %174 = vector.shape_cast %173 : vector<1x128xf32> to vector<1x1x128xf32>
    %175 = vector.broadcast %174 : vector<1x1x128xf32> to vector<2x16x128xf32>
    %176 = arith.addf %172, %175 : vector<2x16x128xf32>
    %177 = vector.extract_strided_slice %171 {offsets = [0, 0, 128], sizes = [2, 16, 128], strides = [1, 1, 1]} : vector<2x16x256xf32> to vector<2x16x128xf32>
    %c22 = arith.constant 22 : index
    %c0_63 = arith.constant 0 : index
    %178 = vector.load %arg4[%c22, %c0_63] : memref<40x128xf32, #tpu.memory_space<vmem>>, vector<1x128xf32>
    %179 = vector.shape_cast %178 : vector<1x128xf32> to vector<1x1x128xf32>
    %180 = vector.broadcast %179 : vector<1x1x128xf32> to vector<2x16x128xf32>
    %181 = arith.addf %177, %180 : vector<2x16x128xf32>
    %182 = vector.shape_cast %165 : vector<2x128xf32> to vector<2x1x128xf32>
    %183 = vector.broadcast %182 : vector<2x1x128xf32> to vector<2x16x128xf32>
    %184 = arith.mulf %176, %183 : vector<2x16x128xf32>
    %185 = vector.shape_cast %184 : vector<2x16x128xf32> to vector<32x128xf32>
    %cst_64 = arith.constant dense<0.000000e+00> : vector<32x8xf32>
    %186 = tpu.matmul %185, %0, %cst_64 {dimension_numbers = #tpu.dot_dimension_numbers<[1], [1], [0], [0], [0, 0, 1, 0], [], []>} : vector<32x128xf32>, vector<8x128xf32>, vector<32x8xf32> -> vector<32x8xf32>
    %187 = vector.shape_cast %186 : vector<32x8xf32> to vector<2x16x8xf32>
    %cst_65 = arith.constant dense<0xFF800000> : vector<2x8xf32>
    %188 = vector.multi_reduction <maximumf>, %187, %cst_65 [1] : vector<2x16x8xf32> to vector<2x8xf32>
    %189 = vector.shape_cast %188 : vector<2x8xf32> to vector<2x1x8xf32>
    %190 = vector.broadcast %189 : vector<2x1x8xf32> to vector<2x16x8xf32>
    %191 = arith.subf %187, %190 : vector<2x16x8xf32>
    %192 = math.exp %191 : vector<2x16x8xf32>
    %cst_66 = arith.constant dense<0.000000e+00> : vector<2x8xf32>
    %193 = vector.multi_reduction <add>, %192, %cst_66 [1] : vector<2x16x8xf32> to vector<2x8xf32>
    %194 = tpu.reciprocal %193 {approx = true} : vector<2x8xf32> -> vector<2x8xf32>
    "tpu.trace_start"() <{level = 10 : i32, message = "bsh,bse->bhe"}> : () -> ()
    %cst_67 = arith.constant dense<0.000000e+00> : vector<2x8x128xf32>
    %195 = tpu.matmul %192, %181, %cst_67 {dimension_numbers = #tpu.dot_dimension_numbers<[1], [1], [2], [2], [0, 0, 0, 2, 1, 2], [0], [0]>} : vector<2x16x8xf32>, vector<2x16x128xf32>, vector<2x8x128xf32> -> vector<2x8x128xf32>
    "tpu.trace_stop"() : () -> ()
    %196 = vector.shape_cast %194 : vector<2x8xf32> to vector<2x8x1xf32>
    %197 = vector.broadcast %196 : vector<2x8x1xf32> to vector<2x8x128xf32>
    %198 = arith.mulf %195, %197 : vector<2x8x128xf32>
    %199 = vector.shape_cast %0 : vector<8x128xf32> to vector<1x8x128xf32>
    %200 = vector.broadcast %199 : vector<1x8x128xf32> to vector<2x8x128xf32>
    %201 = arith.mulf %198, %200 : vector<2x8x128xf32>
    %cst_68 = arith.constant dense<0.000000e+00> : vector<2x128xf32>
    %202 = vector.multi_reduction <add>, %201, %cst_68 [1] : vector<2x8x128xf32> to vector<2x128xf32>
    %c0_69 = arith.constant 0 : index
    %c896 = arith.constant 896 : index
    %203 = vector.load %arg5[%c0_69, %c896] : memref<128x1280xbf16, #tpu.memory_space<vmem>>, vector<128x128xbf16>
    %204 = arith.truncf %202 : vector<2x128xf32> to vector<2x128xbf16>
    %cst_70 = arith.constant dense<0.000000e+00> : vector<2x128xf32>
    %205 = tpu.matmul %204, %203, %cst_70 {dimension_numbers = #tpu.dot_dimension_numbers<[1], [0], [0], [1], [0, 0, 1, 1], [], []>} : vector<2x128xbf16>, vector<128x128xbf16>, vector<2x128xf32> -> vector<2x128xf32>
    %206 = arith.addf %133, %205 : vector<2x128xf32>
    %c23 = arith.constant 23 : index
    %c0_71 = arith.constant 0 : index
    %207 = vector.load %arg4[%c23, %c0_71] : memref<40x128xf32, #tpu.memory_space<vmem>>, vector<1x128xf32>
    %208 = vector.broadcast %207 : vector<1x128xf32> to vector<2x128xf32>
    %209 = arith.addf %206, %208 : vector<2x128xf32>
    %c4 = arith.constant 4 : index
    %c0_72 = arith.constant 0 : index
    %210 = vector.load %arg4[%c4, %c0_72] : memref<40x128xf32, #tpu.memory_space<vmem>>, vector<1x128xf32>
    %c5 = arith.constant 5 : index
    %c0_73 = arith.constant 0 : index
    %211 = vector.load %arg4[%c5, %c0_73] : memref<40x128xf32, #tpu.memory_space<vmem>>, vector<1x128xf32>
    %cst_74 = arith.constant dense<0.000000e+00> : vector<2xf32>
    %212 = vector.multi_reduction <add>, %209, %cst_74 [1] : vector<2x128xf32> to vector<2xf32>
    %213 = vector.shape_cast %212 : vector<2xf32> to vector<2x1xf32>
    %cst_75 = arith.constant 1.280000e+02 : f32
    %214 = vector.broadcast %cst_75 : f32 to vector<2x1xf32>
    %215 = arith.divf %213, %214 : vector<2x1xf32>
    %216 = vector.broadcast %215 : vector<2x1xf32> to vector<2x128xf32>
    %217 = arith.subf %209, %216 : vector<2x128xf32>
    %218 = arith.mulf %217, %217 : vector<2x128xf32>
    %cst_76 = arith.constant dense<0.000000e+00> : vector<2xf32>
    %219 = vector.multi_reduction <add>, %218, %cst_76 [1] : vector<2x128xf32> to vector<2xf32>
    %220 = vector.shape_cast %219 : vector<2xf32> to vector<2x1xf32>
    %cst_77 = arith.constant 1.280000e+02 : f32
    %221 = vector.broadcast %cst_77 : f32 to vector<2x1xf32>
    %222 = arith.divf %220, %221 : vector<2x1xf32>
    %223 = vector.broadcast %215 : vector<2x1xf32> to vector<2x128xf32>
    %224 = arith.subf %209, %223 : vector<2x128xf32>
    %cst_78 = arith.constant 9.99999974E-6 : f32
    %225 = vector.broadcast %cst_78 : f32 to vector<2x1xf32>
    %226 = arith.addf %222, %225 : vector<2x1xf32>
    %227 = math.rsqrt %226 : vector<2x1xf32>
    %228 = vector.broadcast %227 : vector<2x1xf32> to vector<2x128xf32>
    %229 = arith.mulf %224, %228 : vector<2x128xf32>
    %230 = vector.broadcast %210 : vector<1x128xf32> to vector<2x128xf32>
    %231 = arith.mulf %229, %230 : vector<2x128xf32>
    %232 = vector.broadcast %211 : vector<1x128xf32> to vector<2x128xf32>
    %233 = arith.addf %231, %232 : vector<2x128xf32>
    %c0_79 = arith.constant 0 : index
    %c1024 = arith.constant 1024 : index
    %234 = vector.load %arg5[%c0_79, %c1024] : memref<128x1280xbf16, #tpu.memory_space<vmem>>, vector<128x128xbf16>
    %235 = arith.truncf %233 : vector<2x128xf32> to vector<2x128xbf16>
    %cst_80 = arith.constant dense<0.000000e+00> : vector<2x128xf32>
    %236 = tpu.matmul %235, %234, %cst_80 {dimension_numbers = #tpu.dot_dimension_numbers<[1], [0], [0], [1], [0, 0, 1, 1], [], []>} : vector<2x128xbf16>, vector<128x128xbf16>, vector<2x128xf32> -> vector<2x128xf32>
    %c24 = arith.constant 24 : index
    %c0_81 = arith.constant 0 : index
    %237 = vector.load %arg4[%c24, %c0_81] : memref<40x128xf32, #tpu.memory_space<vmem>>, vector<1x128xf32>
    %238 = vector.broadcast %237 : vector<1x128xf32> to vector<2x128xf32>
    %239 = arith.addf %236, %238 : vector<2x128xf32>
    %cst_82 = arith.constant 5.000000e-01 : f32
    %240 = vector.broadcast %cst_82 : f32 to vector<2x128xf32>
    %241 = arith.mulf %240, %239 : vector<2x128xf32>
    %cst_83 = arith.constant 4.471500e-02 : f32
    %242 = vector.broadcast %cst_83 : f32 to vector<2x128xf32>
    %243 = arith.mulf %242, %239 : vector<2x128xf32>
    %244 = arith.mulf %243, %239 : vector<2x128xf32>
    %245 = arith.mulf %244, %239 : vector<2x128xf32>
    %246 = arith.addf %239, %245 : vector<2x128xf32>
    %cst_84 = arith.constant 0.797884583 : f32
    %247 = vector.broadcast %cst_84 : f32 to vector<2x128xf32>
    %248 = arith.mulf %247, %246 : vector<2x128xf32>
    %249 = math.tanh %248 : vector<2x128xf32>
    %cst_85 = arith.constant 1.000000e+00 : f32
    %250 = vector.broadcast %cst_85 : f32 to vector<2x128xf32>
    %251 = arith.addf %250, %249 : vector<2x128xf32>
    %252 = arith.mulf %241, %251 : vector<2x128xf32>
    %c6 = arith.constant 6 : index
    %c0_86 = arith.constant 0 : index
    %253 = vector.load %arg4[%c6, %c0_86] : memref<40x128xf32, #tpu.memory_space<vmem>>, vector<1x128xf32>
    %c7 = arith.constant 7 : index
    %c0_87 = arith.constant 0 : index
    %254 = vector.load %arg4[%c7, %c0_87] : memref<40x128xf32, #tpu.memory_space<vmem>>, vector<1x128xf32>
    %cst_88 = arith.constant dense<0.000000e+00> : vector<2xf32>
    %255 = vector.multi_reduction <add>, %252, %cst_88 [1] : vector<2x128xf32> to vector<2xf32>
    %256 = vector.shape_cast %255 : vector<2xf32> to vector<2x1xf32>
    %cst_89 = arith.constant 1.280000e+02 : f32
    %257 = vector.broadcast %cst_89 : f32 to vector<2x1xf32>
    %258 = arith.divf %256, %257 : vector<2x1xf32>
    %259 = vector.broadcast %258 : vector<2x1xf32> to vector<2x128xf32>
    %260 = arith.subf %252, %259 : vector<2x128xf32>
    %261 = arith.mulf %260, %260 : vector<2x128xf32>
    %cst_90 = arith.constant dense<0.000000e+00> : vector<2xf32>
    %262 = vector.multi_reduction <add>, %261, %cst_90 [1] : vector<2x128xf32> to vector<2xf32>
    %263 = vector.shape_cast %262 : vector<2xf32> to vector<2x1xf32>
    %cst_91 = arith.constant 1.280000e+02 : f32
    %264 = vector.broadcast %cst_91 : f32 to vector<2x1xf32>
    %265 = arith.divf %263, %264 : vector<2x1xf32>
    %266 = vector.broadcast %258 : vector<2x1xf32> to vector<2x128xf32>
    %267 = arith.subf %252, %266 : vector<2x128xf32>
    %cst_92 = arith.constant 9.99999974E-6 : f32
    %268 = vector.broadcast %cst_92 : f32 to vector<2x1xf32>
    %269 = arith.addf %265, %268 : vector<2x1xf32>
    %270 = math.rsqrt %269 : vector<2x1xf32>
    %271 = vector.broadcast %270 : vector<2x1xf32> to vector<2x128xf32>
    %272 = arith.mulf %267, %271 : vector<2x128xf32>
    %273 = vector.broadcast %253 : vector<1x128xf32> to vector<2x128xf32>
    %274 = arith.mulf %272, %273 : vector<2x128xf32>
    %275 = vector.broadcast %254 : vector<1x128xf32> to vector<2x128xf32>
    %276 = arith.addf %274, %275 : vector<2x128xf32>
    %c0_93 = arith.constant 0 : index
    %c1152 = arith.constant 1152 : index
    %277 = vector.load %arg5[%c0_93, %c1152] : memref<128x1280xbf16, #tpu.memory_space<vmem>>, vector<128x128xbf16>
    %278 = arith.truncf %276 : vector<2x128xf32> to vector<2x128xbf16>
    %cst_94 = arith.constant dense<0.000000e+00> : vector<2x128xf32>
    %279 = tpu.matmul %278, %277, %cst_94 {dimension_numbers = #tpu.dot_dimension_numbers<[1], [0], [0], [1], [0, 0, 1, 1], [], []>} : vector<2x128xbf16>, vector<128x128xbf16>, vector<2x128xf32> -> vector<2x128xf32>
    %c25 = arith.constant 25 : index
    %c0_95 = arith.constant 0 : index
    %280 = vector.load %arg4[%c25, %c0_95] : memref<40x128xf32, #tpu.memory_space<vmem>>, vector<1x128xf32>
    %281 = vector.broadcast %280 : vector<1x128xf32> to vector<2x128xf32>
    %282 = arith.addf %279, %281 : vector<2x128xf32>
    %283 = arith.addf %209, %282 : vector<2x128xf32>
    %c0_96 = arith.constant 0 : index
    %c0_97 = arith.constant 0 : index
    %284 = vector.load %arg6[%c0_96, %c0_97] : memref<2x128xf32, #tpu.memory_space<vmem>>, vector<2x128xf32>
    tpu.vector_store %arg6[%c0_96, %c0_97], %283 {strides = array<i32>} : memref<2x128xf32, #tpu.memory_space<vmem>>, vector<2x128xf32>,
    return
  }
  func.func @transform_0(%arg0: i32) -> (i32, i32, i32) {
    %c0_i32 = arith.constant 0 : i32
    %c0_i32_0 = arith.constant 0 : i32
    %c0_i32_1 = arith.constant 0 : i32
    return %arg0, %c0_i32, %c0_i32_0 : i32, i32, i32
  }
  func.func @transform_1(%arg0: i32) -> (i32, i32, i32) {
    %c0_i32 = arith.constant 0 : i32
    %c0_i32_0 = arith.constant 0 : i32
    %c0_i32_1 = arith.constant 0 : i32
    return %arg0, %c0_i32, %c0_i32_0 : i32, i32, i32
  }
  func.func @transform_2(%arg0: i32) -> (i32, i32) {
    %c0_i32 = arith.constant 0 : i32
    %c0_i32_0 = arith.constant 0 : i32
    return %arg0, %c0_i32 : i32, i32
  }
  func.func @transform_3(%arg0: i32) -> (i32, i32) {
    %c0_i32 = arith.constant 0 : i32
    %c0_i32_0 = arith.constant 0 : i32
    %c0_i32_1 = arith.constant 0 : i32
    return %c0_i32, %c0_i32_0 : i32, i32
  }
  func.func @transform_4(%arg0: i32) -> (i32, i32) {
    %c0_i32 = arith.constant 0 : i32
    %c0_i32_0 = arith.constant 0 : i32
    %c0_i32_1 = arith.constant 0 : i32
    return %c0_i32, %c0_i32_0 : i32, i32
  }
  func.func @transform_5(%arg0: i32) -> (i32, i32) {
    %c0_i32 = arith.constant 0 : i32
    %c0_i32_0 = arith.constant 0 : i32
    return %arg0, %c0_i32 : i32, i32
  }
}

</mosaic_0001>

<llo_original>
// kernel: tpu_custom_call.1
$region0: #{tpu_custom_call.1}
  #allocation0 [shape = 'u32[]', space=smem, size = 0x4, offset = 0x4, fixed_abs, tag = 'smem constant byte address 0x4 - core index']
  #allocation1 [shape = 'u32[72,128]{1,0:T(1,128)}', space=vmem, size = 0x9000, scoped, tag = 'internal scratch']
  %s0 = inlined_call_operand.hbm [shape: f32[2,8,128], index: 0, kind: input, shape index: {}]
  %s1 = inlined_call_operand.hbm [shape: f32[2,16,128], index: 1, kind: input, shape index: {}]
  %s2 = inlined_call_operand.hbm [shape: f32[2,8], index: 2, kind: input, shape index: {}]
  %s3 = inlined_call_operand.hbm [shape: f32[40,128], index: 3, kind: input, shape index: {}]
  %s4 = inlined_call_operand.hbm [shape: bf16[128,1280], index: 4, kind: input, shape index: {}]
  %s5 = inlined_call_operand.hbm [shape: f32[2,128], index: 5, kind: output, shape index: {}]
  %s6 = sld [smem:[#allocation0]]
  $region50: #{tpu_custom_call.1} parent=0
    _
  %s8 = ssub.s32 1, %s6
  %s9 = scalar_select 0, %s8, %s6
  $region1: #{tpu_custom_call.1} parent=0
    #allocation2 [shape = 'u8[8192]{0}', space=vmem, size = 0x2000, scoped, tag = 'input window, operand 0, single buffered']
    #allocation3 [shape = 's32[1]{0}', space=sflag, size = 0x4, scoped, tag = 'scoped memory for tpu_custom_call.1']
    #allocation4 [shape = 's32[1]{0}', space=sflag, size = 0x4, scoped, tag = 'scoped memory for tpu_custom_call.1']
    #allocation5 [shape = 'u8[16384]{0}', space=vmem, size = 0x4000, scoped, tag = 'input window, operand 1, single buffered']
    #allocation6 [shape = 's32[1]{0}', space=sflag, size = 0x4, scoped, tag = 'scoped memory for tpu_custom_call.1']
    #allocation7 [shape = 'u8[1024]{0}', space=vmem, size = 0x400, scoped, tag = 'input window, operand 2, single buffered']
    #allocation8 [shape = 'u8[20480]{0}', space=vmem, size = 0x5000, scoped, tag = 'input window, operand 3, single buffered']
    #allocation9 [shape = 's32[1]{0}', space=sflag, size = 0x4, scoped, tag = 'scoped memory for tpu_custom_call.1']
    #allocation10 [shape = 'u8[327680]{0}', space=vmem, size = 0x50000, scoped, tag = 'input window, operand 4, single buffered']
    #allocation11 [shape = 'u8[1024]{0}', space=vmem, size = 0x400, scoped, tag = 'output window, operand 0, single buffered']
    %10 = vsyncpa [#allocation3], 0
    %11 = vsyncpa [#allocation6], 0
    %12 = vsyncpa [#allocation9], 0
    %13 = vsyncpa [#allocation4], 0
    // Predicated region
    $region2: #{tpu_custom_call.1} parent=1 // pred_check
      _
    $region3: #{tpu_custom_call.1} parent=1 // pred_check_branch
      %15 = sbr.rel (0) target = $region5
    $region4: #{tpu_custom_call.1} parent=1 // pred_region
      %17 = vsyncadd [#allocation3], 0
      %s18 = sshll.u32 %s0, 4
      %s19 = int_to_ptr.hbm [resolvable:$true] %s18
      %s20 = sshll.u32 [#allocation2], 4
      %s21 = int_to_ptr.vmem [resolvable:$true] %s20
      %26 = dma.hbm_to_vmem [thread:$0]  %s19, 256, %s21, [#allocation3], 128, 128, 8
    $region5: #{tpu_custom_call.1} parent=1 // pred_fallthru
      _
    // Predicated region
    $region6: #{tpu_custom_call.1} parent=1 // pred_check
      _
    $region7: #{tpu_custom_call.1} parent=1 // pred_check_branch
      %28 = sbr.rel (0) target = $region9
    $region8: #{tpu_custom_call.1} parent=1 // pred_region
      %30 = vsyncadd [#allocation6], 0
      %s31 = sshll.u32 %s1, 4
      %s32 = int_to_ptr.hbm [resolvable:$true] %s31
      %s33 = sshll.u32 [#allocation5], 4
      %s34 = int_to_ptr.vmem [resolvable:$true] %s33
      %39 = dma.hbm_to_vmem [thread:$0]  %s32, 512, %s34, [#allocation6], 128, 128, 8
    $region9: #{tpu_custom_call.1} parent=1 // pred_fallthru
      _
    // Predicated region
    $region10: #{tpu_custom_call.1} parent=1 // pred_check
      _
    $region11: #{tpu_custom_call.1} parent=1 // pred_check_branch
      %41 = sbr.rel (0) target = $region13
    $region12: #{tpu_custom_call.1} parent=1 // pred_region
      %43 = vsyncadd [#allocation6], 0
      %s45 = sshll.u32 %s2, 4
      %s46 = int_to_ptr.hbm [resolvable:$true] %s45
      %s47 = sshll.u32 [#allocation7], 4
      %s48 = int_to_ptr.vmem [resolvable:$true] %s47
      %50 = dma.hbm_to_vmem [thread:$0]  %s46, 32, %s48, [#allocation6]
    $region13: #{tpu_custom_call.1} parent=1 // pred_fallthru
      _
    // Predicated region
    $region14: #{tpu_custom_call.1} parent=1 // pred_check
      _
    $region15: #{tpu_custom_call.1} parent=1 // pred_check_branch
      %52 = sbr.rel (0) target = $region17
    $region16: #{tpu_custom_call.1} parent=1 // pred_region
      %54 = vsyncadd [#allocation9], 0
      %s55 = sshll.u32 %s3, 4
      %s56 = int_to_ptr.hbm [resolvable:$true] %s55
      %s57 = sshll.u32 [#allocation8], 4
      %s58 = int_to_ptr.vmem [resolvable:$true] %s57
      %63 = dma.hbm_to_vmem [thread:$0]  %s56, 640, %s58, [#allocation9], 128, 128, 8
    $region17: #{tpu_custom_call.1} parent=1 // pred_fallthru
      _
    // Predicated region
    $region18: #{tpu_custom_call.1} parent=1 // pred_check
      _
    $region19: #{tpu_custom_call.1} parent=1 // pred_check_branch
      %65 = sbr.rel (0) target = $region21
    $region20: #{tpu_custom_call.1} parent=1 // pred_region
      %67 = vsyncadd [#allocation9], 0
      %s68 = sshll.u32 %s4, 4
      %s69 = int_to_ptr.hbm [resolvable:$true] %s68
      %s70 = sshll.u32 [#allocation10], 4
      %s71 = int_to_ptr.vmem [resolvable:$true] %s70
      %76 = dma.hbm_to_vmem [thread:$0]  %s69, 10240, %s71, [#allocation9], 640, 640, 40
    $region21: #{tpu_custom_call.1} parent=1 // pred_fallthru
      _
    // Predicated region
    $region22: #{tpu_custom_call.1} parent=1 // pred_check
      _
    $region23: #{tpu_custom_call.1} parent=1 // pred_check_branch
      %78 = sbr.rel (0) target = $region25
    $region24: #{tpu_custom_call.1} parent=1 // pred_region
      %80 = dma.done [#allocation3], 256
    $region25: #{tpu_custom_call.1} parent=1 // pred_fallthru
      _
    // Predicated region
    $region26: #{tpu_custom_call.1} parent=1 // pred_check
      _
    $region27: #{tpu_custom_call.1} parent=1 // pred_check_branch
      %82 = sbr.rel (0) target = $region29
    $region28: #{tpu_custom_call.1} parent=1 // pred_region
      %84 = dma.done [#allocation6], 512
    $region29: #{tpu_custom_call.1} parent=1 // pred_fallthru
      _
    // Predicated region
    $region30: #{tpu_custom_call.1} parent=1 // pred_check
      _
    $region31: #{tpu_custom_call.1} parent=1 // pred_check_branch
      %86 = sbr.rel (0) target = $region33
    $region32: #{tpu_custom_call.1} parent=1 // pred_region
      %88 = dma.done [#allocation6], 32
    $region33: #{tpu_custom_call.1} parent=1 // pred_fallthru
      _
    // Predicated region
    $region34: #{tpu_custom_call.1} parent=1 // pred_check
      _
    $region35: #{tpu_custom_call.1} parent=1 // pred_check_branch
      %90 = sbr.rel (0) target = $region37
    $region36: #{tpu_custom_call.1} parent=1 // pred_region
      %92 = dma.done [#allocation9], 640
    $region37: #{tpu_custom_call.1} parent=1 // pred_fallthru
      _
    // Predicated region
    $region38: #{tpu_custom_call.1} parent=1 // pred_check
      _
    $region39: #{tpu_custom_call.1} parent=1 // pred_check_branch
      %94 = sbr.rel (0) target = $region41
    $region40: #{tpu_custom_call.1} parent=1 // pred_region
      %96 = dma.done [#allocation9], 10240
    $region41: #{tpu_custom_call.1} parent=1 // pred_fallthru
      _
    %v97 = vld [vmem:[#allocation8 + $0x20] sm:$0xff]
    %v98 = vld [vmem:[#allocation7] sm:$0x3]
    %v99 = vsub.f32 1.0, %v98
    %v100 = vmul.f32 %v98, -1e+30
    %v101 = vld [vmem:[#allocation2] sm:$0xff]
    %v102 = vld [vmem:[#allocation2 + $0x8] sm:$0xff]
    %v103 = vld [vmem:[#allocation8 + $0x8] sm:$0x1]
    %v104 = vld [vmem:[#allocation8] sm:$0x1]
    %v105 = vld [vmem:[#allocation8 + $0x1] sm:$0x1]
    %106 = vadd.xlane.f32.xlu0 %v101
    %v107 = vpop.xlane.xlu0 %106
    %108 = vadd.xlane.f32.xlu0 %v102
    %v109 = vpop.xlane.xlu0 %108
    %v110 = vrcp.pop 128.0
    %v111 = vmul.f32 128.0, %v110
    %v112 = vsub.f32 1.0, %v111
    %v113 = vmul.f32 %v110, %v112
    %v114 = vadd.f32 %v110, %v113
    %vm115 = vweird.f32 %v110
    %v116 = vsel %vm115, %v110, %v114
    %v117 = vmul.f32 %v107, %v116
    %v118 = vmul.f32 %v109, %v116
    %v119 = vsub.f32 %v101, %v117
    %v120 = vsub.f32 %v102, %v118
    %v121 = vmul.f32 %v119, %v119
    %v122 = vmul.f32 %v120, %v120
    %123 = vadd.xlane.f32.xlu0 %v121
    %v124 = vpop.xlane.xlu0 %123
    %125 = vadd.xlane.f32.xlu0 %v122
    %v126 = vpop.xlane.xlu0 %125
    %v127 = vmul.f32 %v124, %v116
    %v128 = vmul.f32 %v126, %v116
    %v129 = vadd.f32 %v127, 1e-05
    %v130 = vadd.f32 %v128, 1e-05
    %v131 = vrsqrt.pop %v129
    %v132 = vmul.f32 %v131, %v129
    %v133 = vmul.f32 %v132, %v131
    %v134 = vmul.f32 0.5, %v133
    %v135 = vsub.f32 1.5, %v134
    %v136 = vmul.f32 %v131, %v135
    %vm137 = vweird.f32 %v129
    %vm138 = vweird.f32 %v131
    %vm139 = vmor %vm137, %vm138
    %v140 = vsel %vm139, %v131, %v136
    %v141 = vrsqrt.pop %v130
    %v142 = vmul.f32 %v141, %v130
    %v143 = vmul.f32 %v142, %v141
    %v144 = vmul.f32 0.5, %v143
    %v145 = vsub.f32 1.5, %v144
    %v146 = vmul.f32 %v141, %v145
    %vm147 = vweird.f32 %v130
    %vm148 = vweird.f32 %v141
    %vm149 = vmor %vm147, %vm148
    %v150 = vsel %vm149, %v141, %v146
    %v151 = vmul.f32 %v119, %v140
    %v152 = vmul.f32 %v120, %v150
    %v153 = vperm.slane %v104, 0
    %v154 = vmul.f32 %v151, %v153
    %v155 = vmul.f32 %v152, %v153
    %v156 = vperm.slane %v105, 0
    %v157 = vadd.f32 %v154, %v156
    %v158 = vadd.f32 %v155, %v156
    %v159 = vperm.slane %v99, 0
    %v160 = vlaneseq
    %v161 = vshrl.u32 %v160, 7
    %163 = vset.pattern.permute.xlu0 %v161
    %164 = vperm.xlu0 %163, %v159
    %v165 = vpop.permute.xlu0 %164
    %v166 = vperm.slane %v99, 1
    %v167 = vlaneseq
    %v168 = vshrl.u32 %v167, 7
    %170 = vset.pattern.permute.xlu0 %v168
    %171 = vperm.xlu0 %170, %v166
    %v172 = vpop.permute.xlu0 %171
    %v173 = vmul.f32 %v157, %v165
    %v174 = vmul.f32 %v158, %v172
    %v175 = vld [vmem:[#allocation10 + $0x4] sm:$0xff]
    %v176 = vld [vmem:[#allocation10 + $0x2c] sm:$0xff]
    %v177 = vld [vmem:[#allocation10 + $0x54] sm:$0xff]
    %v178 = vld [vmem:[#allocation10 + $0x7c] sm:$0xff]
    %v179 = vld [vmem:[#allocation10 + $0xa4] sm:$0xff]
    %v180 = vld [vmem:[#allocation10 + $0xcc] sm:$0xff]
    %v181 = vld [vmem:[#allocation10 + $0xf4] sm:$0xff]
    %v182 = vld [vmem:[#allocation10 + $0x11c] sm:$0xff]
    %v183 = vld [vmem:[#allocation10 + $0x144] sm:$0xff]
    %v184 = vld [vmem:[#allocation10 + $0x16c] sm:$0xff]
    %v185 = vld [vmem:[#allocation10 + $0x194] sm:$0xff]
    %v186 = vld [vmem:[#allocation10 + $0x1bc] sm:$0xff]
    %v187 = vld [vmem:[#allocation10 + $0x1e4] sm:$0xff]
    %v188 = vld [vmem:[#allocation10 + $0x20c] sm:$0xff]
    %v189 = vld [vmem:[#allocation10 + $0x234] sm:$0xff]
    %v190 = vld [vmem:[#allocation10 + $0x25c] sm:$0xff]
    %v191 = vpack.c.bf16 %v174, %v173
    %v208 = vunpack.c.l.b16 %v175
    %v209 = vunpack.c.h.b16 %v175
    %v210 = vunpack.c.l.b16 %v176
    %v211 = vunpack.c.h.b16 %v176
    %v212 = vunpack.c.l.b16 %v177
    %v213 = vunpack.c.h.b16 %v177
    %v214 = vunpack.c.l.b16 %v178
    %v215 = vunpack.c.h.b16 %v178
    %v216 = vunpack.c.l.b16 %v179
    %v217 = vunpack.c.h.b16 %v179
    %v218 = vunpack.c.l.b16 %v180
    %v219 = vunpack.c.h.b16 %v180
    %v220 = vunpack.c.l.b16 %v181
    %v221 = vunpack.c.h.b16 %v181
    %v222 = vunpack.c.l.b16 %v182
    %v223 = vunpack.c.h.b16 %v182
    %v224 = vunpack.c.l.b16 %v183
    %v225 = vunpack.c.h.b16 %v183
    %v226 = vunpack.c.l.b16 %v184
    %v227 = vunpack.c.h.b16 %v184
    %v228 = vunpack.c.l.b16 %v185
    %v229 = vunpack.c.h.b16 %v185
    %v230 = vunpack.c.l.b16 %v186
    %v231 = vunpack.c.h.b16 %v186
    %v232 = vunpack.c.l.b16 %v187
    %v233 = vunpack.c.h.b16 %v187
    %v234 = vunpack.c.l.b16 %v188
    %v235 = vunpack.c.h.b16 %v188
    %v236 = vunpack.c.l.b16 %v189
    %v237 = vunpack.c.h.b16 %v189
    %v238 = vunpack.c.l.b16 %v190
    %v239 = vunpack.c.h.b16 %v190
    %v240 = vpack.c.b16 %v210, %v208
    %v241 = vpack.c.b16 %v211, %v209
    %v242 = vpack.c.b16 %v214, %v212
    %v243 = vpack.c.b16 %v215, %v213
    %v244 = vpack.c.b16 %v218, %v216
    %v245 = vpack.c.b16 %v219, %v217
    %v246 = vpack.c.b16 %v222, %v220
    %v247 = vpack.c.b16 %v223, %v221
    %v248 = vpack.c.b16 %v226, %v224
    %v249 = vpack.c.b16 %v227, %v225
    %v250 = vpack.c.b16 %v230, %v228
    %v251 = vpack.c.b16 %v231, %v229
    %v252 = vpack.c.b16 %v234, %v232
    %v253 = vpack.c.b16 %v235, %v233
    %v254 = vpack.c.b16 %v238, %v236
    %v255 = vpack.c.b16 %v239, %v237
    %272 = vmatpush.bf16.msra.mxu0 %v254
    %273 = vmatpush.bf16.msra.mxu0 %v252
    %274 = vmatpush.bf16.msra.mxu0 %v250
    %275 = vmatpush.bf16.msra.mxu0 %v248
    %276 = vmatpush.bf16.msra.mxu0 %v246
    %277 = vmatpush.bf16.msra.mxu0 %v244
    %278 = vmatpush.bf16.msra.mxu0 %v242
    %279 = vmatpush.bf16.msra.mxu0 %v240
    %280 = vmatmul.bf16.gmra.mxu0 %v191
    %v281 = vpop.f32.mrf.mxu0
    %v282 = vadd.f32 0.0, %v281
    %v283 = vpop.f32.mrf.mxu0
    %v284 = vadd.f32 0.0, %v283
    %285 = vdwg.mxu0
    %286 = vmatpush.bf16.msra.mxu0 %v255
    %287 = vmatpush.bf16.msra.mxu0 %v253
    %288 = vmatpush.bf16.msra.mxu0 %v251
    %289 = vmatpush.bf16.msra.mxu0 %v249
    %290 = vmatpush.bf16.msra.mxu0 %v247
    %291 = vmatpush.bf16.msra.mxu0 %v245
    %292 = vmatpush.bf16.msra.mxu0 %v243
    %293 = vmatpush.bf16.msra.mxu0 %v241
    %294 = vmatmul.bf16.gmra.mxu0 %v191
    %v295 = vpop.f32.mrf.mxu0
    %v296 = vadd.f32 0.0, %v295
    %v297 = vpop.f32.mrf.mxu0
    %v298 = vadd.f32 0.0, %v297
    %299 = vdwg.mxu0
    %v300 = vld [vmem:[#allocation8 + $0x11] sm:$0x1]
    %v301 = vperm.slane %v300, 0
    %v302 = vadd.f32 %v282, %v301
    %v303 = vadd.f32 %v284, %v301
    %v304 = vld [vmem:[#allocation8 + $0x12] sm:$0x1]
    %v305 = vperm.slane %v304, 0
    %v306 = vadd.f32 %v296, %v305
    %v307 = vadd.f32 %v298, %v305
    %vm308 = vcmask 1040384
    %v309 = vsel %vm308, %v103, 0.0
    %310 = vadd.xlane.f32.xlu0 %v309
    %v311 = vpop.xlane.xlu0 %310
    %v312 = vmul.f32 %v311, %v116
    %v313 = vsub.f32 %v103, %v312
    %v314 = vmul.f32 %v313, %v313
    %v315 = vsel %vm308, %v314, 0.0
    %316 = vadd.xlane.f32.xlu0 %v315
    %v317 = vpop.xlane.xlu0 %316
    %v318 = vmul.f32 %v317, %v116
    %v319 = vadd.f32 %v318, 1e-05
    %v320 = vrsqrt.pop %v319
    %v321 = vmul.f32 %v320, %v319
    %v322 = vmul.f32 %v321, %v320
    %v323 = vmul.f32 0.5, %v322
    %v324 = vsub.f32 1.5, %v323
    %v325 = vmul.f32 %v320, %v324
    %vm326 = vweird.f32 %v319
    %vm327 = vweird.f32 %v320
    %vm328 = vmor %vm326, %vm327
    %v329 = vsel %vm328, %v320, %v325
    %v330 = vmul.f32 %v313, %v329
    %v331 = vmul.f32 %v330, %v104
    %v332 = vadd.f32 %v331, %v105
    %v333 = vld [vmem:[#allocation10] sm:$0xff]
    %v334 = vld [vmem:[#allocation10 + $0x8] sm:$0xf]
    %v335 = vld [vmem:[#allocation10 + $0x28] sm:$0xff]
    %v336 = vld [vmem:[#allocation10 + $0x30] sm:$0xf]
    %v337 = vld [vmem:[#allocation10 + $0x50] sm:$0xff]
    %v338 = vld [vmem:[#allocation10 + $0x58] sm:$0xf]
    %v339 = vld [vmem:[#allocation10 + $0x78] sm:$0xff]
    %v340 = vld [vmem:[#allocation10 + $0x80] sm:$0xf]
    %v341 = vld [vmem:[#allocation10 + $0xa0] sm:$0xff]
    %v342 = vld [vmem:[#allocation10 + $0xa8] sm:$0xf]
    %v343 = vld [vmem:[#allocation10 + $0xc8] sm:$0xff]
    %v344 = vld [vmem:[#allocation10 + $0xd0] sm:$0xf]
    %v345 = vld [vmem:[#allocation10 + $0xf0] sm:$0xff]
    %v346 = vld [vmem:[#allocation10 + $0xf8] sm:$0xf]
    %v347 = vld [vmem:[#allocation10 + $0x118] sm:$0xff]
    %v348 = vld [vmem:[#allocation10 + $0x120] sm:$0xf]
    %v349 = vld [vmem:[#allocation10 + $0x140] sm:$0xff]
    %v350 = vld [vmem:[#allocation10 + $0x148] sm:$0xf]
    %v351 = vld [vmem:[#allocation10 + $0x168] sm:$0xff]
    %v352 = vld [vmem:[#allocation10 + $0x170] sm:$0xf]
    %v353 = vld [vmem:[#allocation10 + $0x190] sm:$0xff]
    %v354 = vld [vmem:[#allocation10 + $0x198] sm:$0xf]
    %v355 = vld [vmem:[#allocation10 + $0x1b8] sm:$0xff]
    %v356 = vld [vmem:[#allocation10 + $0x1c0] sm:$0xf]
    %v357 = vld [vmem:[#allocation10 + $0x1e0] sm:$0xff]
    %v358 = vld [vmem:[#allocation10 + $0x1e8] sm:$0xf]
    %v359 = vld [vmem:[#allocation10 + $0x208] sm:$0xff]
    %v360 = vld [vmem:[#allocation10 + $0x210] sm:$0xf]
    %v361 = vld [vmem:[#allocation10 + $0x230] sm:$0xff]
    %v362 = vld [vmem:[#allocation10 + $0x238] sm:$0xf]
    %v363 = vld [vmem:[#allocation10 + $0x258] sm:$0xff]
    %v364 = vld [vmem:[#allocation10 + $0x260] sm:$0xf]
    %v365 = vpack.c.bf16 %v332, %v332
    %v398 = vunpack.c.l.b16 %v333
    %v399 = vunpack.c.h.b16 %v333
    %v400 = vunpack.c.l.b16 %v334
    %v401 = vunpack.c.l.b16 %v335
    %v402 = vunpack.c.h.b16 %v335
    %v403 = vunpack.c.l.b16 %v336
    %v404 = vunpack.c.l.b16 %v337
    %v405 = vunpack.c.h.b16 %v337
    %v406 = vunpack.c.l.b16 %v338
    %v407 = vunpack.c.l.b16 %v339
    %v408 = vunpack.c.h.b16 %v339
    %v409 = vunpack.c.l.b16 %v340
    %v410 = vunpack.c.l.b16 %v341
    %v411 = vunpack.c.h.b16 %v341
    %v412 = vunpack.c.l.b16 %v342
    %v413 = vunpack.c.l.b16 %v343
    %v414 = vunpack.c.h.b16 %v343
    %v415 = vunpack.c.l.b16 %v344
    %v416 = vunpack.c.l.b16 %v345
    %v417 = vunpack.c.h.b16 %v345
    %v418 = vunpack.c.l.b16 %v346
    %v419 = vunpack.c.l.b16 %v347
    %v420 = vunpack.c.h.b16 %v347
    %v421 = vunpack.c.l.b16 %v348
    %v422 = vunpack.c.l.b16 %v349
    %v423 = vunpack.c.h.b16 %v349
    %v424 = vunpack.c.l.b16 %v350
    %v425 = vunpack.c.l.b16 %v351
    %v426 = vunpack.c.h.b16 %v351
    %v427 = vunpack.c.l.b16 %v352
    %v428 = vunpack.c.l.b16 %v353
    %v429 = vunpack.c.h.b16 %v353
    %v430 = vunpack.c.l.b16 %v354
    %v431 = vunpack.c.l.b16 %v355
    %v432 = vunpack.c.h.b16 %v355
    %v433 = vunpack.c.l.b16 %v356
    %v434 = vunpack.c.l.b16 %v357
    %v435 = vunpack.c.h.b16 %v357
    %v436 = vunpack.c.l.b16 %v358
    %v437 = vunpack.c.l.b16 %v359
    %v438 = vunpack.c.h.b16 %v359
    %v439 = vunpack.c.l.b16 %v360
    %v440 = vunpack.c.l.b16 %v361
    %v441 = vunpack.c.h.b16 %v361
    %v442 = vunpack.c.l.b16 %v362
    %v443 = vunpack.c.l.b16 %v363
    %v444 = vunpack.c.h.b16 %v363
    %v445 = vunpack.c.l.b16 %v364
    %v446 = vpack.c.b16 %v401, %v398
    %v447 = vpack.c.b16 %v402, %v399
    %v448 = vpack.c.b16 %v403, %v400
    %v449 = vpack.c.b16 %v407, %v404
    %v450 = vpack.c.b16 %v408, %v405
    %v451 = vpack.c.b16 %v409, %v406
    %v452 = vpack.c.b16 %v413, %v410
    %v453 = vpack.c.b16 %v414, %v411
    %v454 = vpack.c.b16 %v415, %v412
    %v455 = vpack.c.b16 %v419, %v416
    %v456 = vpack.c.b16 %v420, %v417
    %v457 = vpack.c.b16 %v421, %v418
    %v458 = vpack.c.b16 %v425, %v422
    %v459 = vpack.c.b16 %v426, %v423
    %v460 = vpack.c.b16 %v427, %v424
    %v461 = vpack.c.b16 %v431, %v428
    %v462 = vpack.c.b16 %v432, %v429
    %v463 = vpack.c.b16 %v433, %v430
    %v464 = vpack.c.b16 %v437, %v434
    %v465 = vpack.c.b16 %v438, %v435
    %v466 = vpack.c.b16 %v439, %v436
    %v467 = vpack.c.b16 %v443, %v440
    %v468 = vpack.c.b16 %v444, %v441
    %v469 = vpack.c.b16 %v445, %v442
    %494 = vmatpush.bf16.msra.mxu0 %v467
    %495 = vmatpush.bf16.msra.mxu0 %v464
    %496 = vmatpush.bf16.msra.mxu0 %v461
    %497 = vmatpush.bf16.msra.mxu0 %v458
    %498 = vmatpush.bf16.msra.mxu0 %v455
    %499 = vmatpush.bf16.msra.mxu0 %v452
    %500 = vmatpush.bf16.msra.mxu0 %v449
    %501 = vmatpush.bf16.msra.mxu0 %v446
    %502 = vmatmul.bf16.gmra.mxu0 %v365
    %v503 = vpop.f32.mrf.mxu0
    %v504 = vadd.f32 0.0, %v503
    %v505 = vpop.f32.mrf.mxu0
    %506 = vdwg.mxu0
    %507 = vmatpush.bf16.msra.mxu0 %v468
    %508 = vmatpush.bf16.msra.mxu0 %v465
    %509 = vmatpush.bf16.msra.mxu0 %v462
    %510 = vmatpush.bf16.msra.mxu0 %v459
    %511 = vmatpush.bf16.msra.mxu0 %v456
    %512 = vmatpush.bf16.msra.mxu0 %v453
    %513 = vmatpush.bf16.msra.mxu0 %v450
    %514 = vmatpush.bf16.msra.mxu0 %v447
    %515 = vmatmul.bf16.gmra.mxu0 %v365
    %v516 = vpop.f32.mrf.mxu0
    %v517 = vadd.f32 0.0, %v516
    %v518 = vpop.f32.mrf.mxu0
    %519 = vdwg.mxu0
    %520 = vmatpush.bf16.msra.mxu0 %v469
    %521 = vmatpush.bf16.msra.mxu0 %v466
    %522 = vmatpush.bf16.msra.mxu0 %v463
    %523 = vmatpush.bf16.msra.mxu0 %v460
    %524 = vmatpush.bf16.msra.mxu0 %v457
    %525 = vmatpush.bf16.msra.mxu0 %v454
    %526 = vmatpush.bf16.msra.mxu0 %v451
    %527 = vmatpush.bf16.msra.mxu0 %v448
    %528 = vmatmul.bf16.gmra.mxu0 %v365
    %v529 = vpop.f32.mrf.mxu0
    %v530 = vadd.f32 0.0, %v529
    %v531 = vpop.f32.mrf.mxu0
    %532 = vdwg.mxu0
    %v533 = vld [vmem:[#allocation8 + $0x10] sm:$0x1]
    %v534 = vadd.f32 %v504, %v533
    %v535 = vmul.f32 %v534, 0.25
    %v536 = vadd.f32 %v517, %v300
    %v537 = vadd.f32 %v530, %v304
    %v538 = vperm.slane %v535, 0
    %v539 = vmul.f32 %v302, %v538
    %v540 = vmul.f32 %v303, %v538
    %541 = vmatpush.xpose.msra.mxu0 0.0
    %542 = vmatpush.xpose.msra.mxu0 0.0
    %543 = vmatpush.xpose.msra.mxu0 0.0
    %544 = vmatpush.xpose.msra.mxu0 0.0
    %545 = vmatpush.xpose.msra.mxu0 0.0
    %546 = vmatpush.xpose.msra.mxu0 0.0
    %547 = vmatpush.xpose.msra.mxu0 0.0
    %548 = vmatpush.xpose.msra.mxu0 0.0
    %549 = vmatpush.xpose.msra.mxu0 0.0
    %550 = vmatpush.xpose.msra.mxu0 0.0
    %551 = vmatpush.xpose.msra.mxu0 0.0
    %552 = vmatpush.xpose.msra.mxu0 0.0
    %553 = vmatpush.xpose.msra.mxu0 0.0
    %554 = vmatpush.xpose.msra.mxu0 0.0
    %555 = vmatpush.xpose.msra.mxu0 0.0
    %556 = vmatpush.xpose.msra.mxu0 %v97
    %557 = vmatmul.f32.gmra.mxu0 %v539
    %v558 = vpop.f32.mrf.mxu0
    %v559 = vadd.f32 0.0, %v558
    %560 = vmatmul.f32.gmra.mxu0 %v540
    %v561 = vpop.f32.mrf.mxu0
    %v562 = vadd.f32 0.0, %v561
    %563 = vdwg.mxu0
    %v564 = vperm.slane %v100, 0
    %v565 = vlaneseq
    %v566 = vshrl.u32 %v565, 7
    %568 = vset.pattern.permute.xlu0 %v566
    %569 = vperm.xlu0 %568, %v564
    %v570 = vpop.permute.xlu0 %569
    %v571 = vperm.slane %v100, 1
    %v572 = vlaneseq
    %v573 = vshrl.u32 %v572, 7
    %575 = vset.pattern.permute.xlu0 %v573
    %576 = vperm.xlu0 %575, %v571
    %v577 = vpop.permute.xlu0 %576
    %v578 = vadd.f32 %v559, %v570
    %v579 = vadd.f32 %v562, %v577
    %v580 = vmul.f32 %v536, %v535
    %581 = vmatpush.xpose.msra.mxu0 0.0
    %582 = vmatpush.xpose.msra.mxu0 0.0
    %583 = vmatpush.xpose.msra.mxu0 0.0
    %584 = vmatpush.xpose.msra.mxu0 0.0
    %585 = vmatpush.xpose.msra.mxu0 0.0
    %586 = vmatpush.xpose.msra.mxu0 0.0
    %587 = vmatpush.xpose.msra.mxu0 0.0
    %588 = vmatpush.xpose.msra.mxu0 0.0
    %589 = vmatpush.xpose.msra.mxu0 0.0
    %590 = vmatpush.xpose.msra.mxu0 0.0
    %591 = vmatpush.xpose.msra.mxu0 0.0
    %592 = vmatpush.xpose.msra.mxu0 0.0
    %593 = vmatpush.xpose.msra.mxu0 0.0
    %594 = vmatpush.xpose.msra.mxu0 0.0
    %595 = vmatpush.xpose.msra.mxu0 0.0
    %596 = vmatpush.xpose.msra.mxu0 %v97
    %597 = vmatmul.f32.gmra.mxu0 %v580
    %v598 = vpop.f32.mrf.mxu0
    %v599 = vadd.f32 0.0, %v598
    %600 = vdwg.mxu0
    %vm601 = vcmask 64512
    %v602 = vsel %vm601, %v578, -inf
    %v603 = vrot.slane %v602, 4
    %v604 = vmax.f32 %v602, %v603
    %v605 = vrot.slane %v604, 2
    %v606 = vmax.f32 %v604, %v605
    %v607 = vrot.slane %v606, 1
    %v608 = vmax.f32 %v606, %v607
    %v609 = vsel %vm601, %v579, -inf
    %v610 = vrot.slane %v609, 4
    %v611 = vmax.f32 %v609, %v610
    %v612 = vrot.slane %v611, 2
    %v613 = vmax.f32 %v611, %v612
    %v614 = vrot.slane %v613, 1
    %v615 = vmax.f32 %v613, %v614
    %v616 = vperm.slane %v599, 0
    %v617 = vmax.f32 %v608, %v616
    %v618 = vmax.f32 %v615, %v616
    %v619 = vperm.slane %v617, 0
    %v620 = vperm.slane %v618, 0
    %v621 = vsub.f32 %v578, %v619
    %v622 = vsub.f32 %v579, %v620
    %v623 = vmul.f32 %v621, 1.442695
    %v624 = vpow.pop %v623
    %v625 = vmul.f32 %v622, 1.442695
    %v626 = vpow.pop %v625
    %v629 = vrot.slane %v618, 7
    %vm630 = vcmask 1041409
    %v631 = vsel %vm630, %v629, %v617
    %v633 = vsub.f32 %v616, %v631
    %v634 = vmul.f32 %v633, 1.442695
    %v635 = vpow.pop %v634
    %v636 = vsel %vm601, %v624, 0.0
    %v637 = vrot.slane %v636, 4
    %v638 = vadd.f32 %v636, %v637
    %v639 = vrot.slane %v638, 2
    %v640 = vadd.f32 %v638, %v639
    %v641 = vrot.slane %v640, 1
    %v642 = vadd.f32 %v640, %v641
    %v643 = vsel %vm601, %v626, 0.0
    %v644 = vrot.slane %v643, 4
    %v645 = vadd.f32 %v643, %v644
    %v646 = vrot.slane %v645, 2
    %v647 = vadd.f32 %v645, %v646
    %v648 = vrot.slane %v647, 1
    %v649 = vadd.f32 %v647, %v648
    %v651 = vrot.slane %v635, 1
    %v654 = vadd.f32 %v642, %v635
    %v655 = vadd.f32 %v649, %v651
    %v656 = vrcp.pop %v654
    %v657 = vrcp.pop %v655
    %v658 = vperm.slane %v635, 0
    %v659 = vlaneseq
    %v660 = vshrl.u32 %v659, 7
    %662 = vset.pattern.permute.xlu0 %v660
    %663 = vperm.xlu0 %662, %v658
    %v664 = vpop.permute.xlu0 %663
    %v665 = vperm.slane %v635, 1
    %v666 = vlaneseq
    %v667 = vshrl.u32 %v666, 7
    %669 = vset.pattern.permute.xlu0 %v667
    %670 = vperm.xlu0 %669, %v665
    %v671 = vpop.permute.xlu0 %670
    %v672 = vperm.slane %v537, 0
    %v673 = vmul.f32 %v664, %v672
    %v674 = vmul.f32 %v671, %v672
    %675 = vxpose.xlu0.b32.start [1/16] %v624, 128
    %676 = vxpose.xlu0.b32.cont [2/16] 0.0, 128
    %677 = vxpose.xlu0.b32.cont [3/16] 0.0, 128
    %678 = vxpose.xlu0.b32.cont [4/16] 0.0, 128
    %679 = vxpose.xlu0.b32.cont [5/16] 0.0, 128
    %680 = vxpose.xlu0.b32.cont [6/16] 0.0, 128
    %681 = vxpose.xlu0.b32.cont [7/16] 0.0, 128
    %682 = vxpose.xlu0.b32.cont [8/16] 0.0, 128
    %683 = vxpose.xlu0.b32.cont [9/16] 0.0, 128
    %684 = vxpose.xlu0.b32.cont [10/16] 0.0, 128
    %685 = vxpose.xlu0.b32.cont [11/16] 0.0, 128
    %686 = vxpose.xlu0.b32.cont [12/16] 0.0, 128
    %687 = vxpose.xlu0.b32.cont [13/16] 0.0, 128
    %688 = vxpose.xlu0.b32.cont [14/16] 0.0, 128
    %689 = vxpose.xlu0.b32.cont [15/16] 0.0, 128
    %690 = vxpose.xlu0.b32.end [16/16] 0.0, 128
    %v691 = vpop.trf.xlu0
    %v692 = vpop.trf.xlu0
    %v693 = vpop.trf.xlu0
    %v694 = vpop.trf.xlu0
    %v695 = vpop.trf.xlu0
    %v696 = vpop.trf.xlu0
    %v697 = vpop.trf.xlu0
    %v698 = vpop.trf.xlu0
    %v699 = vpop.trf.xlu0
    %v700 = vpop.trf.xlu0
    %v701 = vpop.trf.xlu0
    %v702 = vpop.trf.xlu0
    %v703 = vpop.trf.xlu0
    %v704 = vpop.trf.xlu0
    %v705 = vpop.trf.xlu0
    %v706 = vpop.trf.xlu0
    %v708 = vsel %vm601, %v691, 0
    %710 = vmatpush.msra.mxu0 0.0
    %711 = vmatpush.msra.mxu0 0.0
    %712 = vmatpush.msra.mxu0 0.0
    %713 = vmatpush.msra.mxu0 0.0
    %714 = vmatpush.msra.mxu0 0.0
    %715 = vmatpush.msra.mxu0 0.0
    %716 = vmatpush.msra.mxu0 0.0
    %717 = vmatpush.msra.mxu0 0.0
    %718 = vmatpush.msra.mxu0 0.0
    %719 = vmatpush.msra.mxu0 0.0
    %720 = vmatpush.msra.mxu0 0.0
    %721 = vmatpush.msra.mxu0 0.0
    %722 = vmatpush.msra.mxu0 0.0
    %723 = vmatpush.msra.mxu0 0.0
    %724 = vmatpush.msra.mxu0 0.0
    %725 = vmatpush.msra.mxu0 %v306
    %726 = vmatmul.f32.gmra.mxu0 %v708
    %v727 = vpop.f32.mrf.mxu0
    %v728 = vadd.f32 %v673, %v727
    %729 = vdwg.mxu0
    %730 = vxpose.xlu0.b32.start [1/16] %v626, 128
    %731 = vxpose.xlu0.b32.cont [2/16] 0.0, 128
    %732 = vxpose.xlu0.b32.cont [3/16] 0.0, 128
    %733 = vxpose.xlu0.b32.cont [4/16] 0.0, 128
    %734 = vxpose.xlu0.b32.cont [5/16] 0.0, 128
    %735 = vxpose.xlu0.b32.cont [6/16] 0.0, 128
    %736 = vxpose.xlu0.b32.cont [7/16] 0.0, 128
    %737 = vxpose.xlu0.b32.cont [8/16] 0.0, 128
    %738 = vxpose.xlu0.b32.cont [9/16] 0.0, 128
    %739 = vxpose.xlu0.b32.cont [10/16] 0.0, 128
    %740 = vxpose.xlu0.b32.cont [11/16] 0.0, 128
    %741 = vxpose.xlu0.b32.cont [12/16] 0.0, 128
    %742 = vxpose.xlu0.b32.cont [13/16] 0.0, 128
    %743 = vxpose.xlu0.b32.cont [14/16] 0.0, 128
    %744 = vxpose.xlu0.b32.cont [15/16] 0.0, 128
    %745 = vxpose.xlu0.b32.end [16/16] 0.0, 128
    %v746 = vpop.trf.xlu0
    %v747 = vpop.trf.xlu0
    %v748 = vpop.trf.xlu0
    %v749 = vpop.trf.xlu0
    %v750 = vpop.trf.xlu0
    %v751 = vpop.trf.xlu0
    %v752 = vpop.trf.xlu0
    %v753 = vpop.trf.xlu0
    %v754 = vpop.trf.xlu0
    %v755 = vpop.trf.xlu0
    %v756 = vpop.trf.xlu0
    %v757 = vpop.trf.xlu0
    %v758 = vpop.trf.xlu0
    %v759 = vpop.trf.xlu0
    %v760 = vpop.trf.xlu0
    %v761 = vpop.trf.xlu0
    %v763 = vsel %vm601, %v746, 0
    %765 = vmatpush.msra.mxu0 0.0
    %766 = vmatpush.msra.mxu0 0.0
    %767 = vmatpush.msra.mxu0 0.0
    %768 = vmatpush.msra.mxu0 0.0
    %769 = vmatpush.msra.mxu0 0.0
    %770 = vmatpush.msra.mxu0 0.0
    %771 = vmatpush.msra.mxu0 0.0
    %772 = vmatpush.msra.mxu0 0.0
    %773 = vmatpush.msra.mxu0 0.0
    %774 = vmatpush.msra.mxu0 0.0
    %775 = vmatpush.msra.mxu0 0.0
    %776 = vmatpush.msra.mxu0 0.0
    %777 = vmatpush.msra.mxu0 0.0
    %778 = vmatpush.msra.mxu0 0.0
    %779 = vmatpush.msra.mxu0 0.0
    %780 = vmatpush.msra.mxu0 %v307
    %781 = vmatmul.f32.gmra.mxu0 %v763
    %v782 = vpop.f32.mrf.mxu0
    %v783 = vadd.f32 %v674, %v782
    %784 = vdwg.mxu0
    %v785 = vperm.slane %v656, 0
    %v786 = vlaneseq
    %v787 = vshrl.u32 %v786, 7
    %789 = vset.pattern.permute.xlu0 %v787
    %790 = vperm.xlu0 %789, %v785
    %v791 = vpop.permute.xlu0 %790
    %v792 = vperm.slane %v657, 0
    %v793 = vlaneseq
    %v794 = vshrl.u32 %v793, 7
    %796 = vset.pattern.permute.xlu0 %v794
    %797 = vperm.xlu0 %796, %v792
    %v798 = vpop.permute.xlu0 %797
    %v799 = vmul.f32 %v728, %v791
    %v800 = vmul.f32 %v783, %v798
    %v801 = vmul.f32 %v799, %v97
    %v802 = vmul.f32 %v800, %v97
    %v803 = vrot.slane %v801, 4
    %v804 = vadd.f32 %v801, %v803
    %v805 = vrot.slane %v804, 2
    %v806 = vadd.f32 %v804, %v805
    %v807 = vrot.slane %v806, 1
    %v808 = vadd.f32 %v806, %v807
    %v809 = vrot.slane %v802, 4
    %v810 = vadd.f32 %v802, %v809
    %v811 = vrot.slane %v810, 2
    %v812 = vadd.f32 %v810, %v811
    %v813 = vrot.slane %v812, 1
    %v814 = vadd.f32 %v812, %v813
    %v815 = vld [vmem:[#allocation10 + $0xc] sm:$0xf]
    %v816 = vld [vmem:[#allocation10 + $0x34] sm:$0xf]
    %v817 = vld [vmem:[#allocation10 + $0x5c] sm:$0xf]
    %v818 = vld [vmem:[#allocation10 + $0x84] sm:$0xf]
    %v819 = vld [vmem:[#allocation10 + $0xac] sm:$0xf]
    %v820 = vld [vmem:[#allocation10 + $0xd4] sm:$0xf]
    %v821 = vld [vmem:[#allocation10 + $0xfc] sm:$0xf]
    %v822 = vld [vmem:[#allocation10 + $0x124] sm:$0xf]
    %v823 = vld [vmem:[#allocation10 + $0x14c] sm:$0xf]
    %v824 = vld [vmem:[#allocation10 + $0x174] sm:$0xf]
    %v825 = vld [vmem:[#allocation10 + $0x19c] sm:$0xf]
    %v826 = vld [vmem:[#allocation10 + $0x1c4] sm:$0xf]
    %v827 = vld [vmem:[#allocation10 + $0x1ec] sm:$0xf]
    %v828 = vld [vmem:[#allocation10 + $0x214] sm:$0xf]
    %v829 = vld [vmem:[#allocation10 + $0x23c] sm:$0xf]
    %v830 = vld [vmem:[#allocation10 + $0x264] sm:$0xf]
    %v831 = vpack.c.bf16 %v808, %v808
    %v832 = vpack.c.bf16 %v814, %v814
    %v835 = vunpack.c.l.b16 %v831
    %v836 = vunpack.c.l.b16 %v832
    %v837 = vsel %vm630, %v836, %v835
    %v838 = vpack.c.b16 %v837, %v837
    %v856 = vunpack.c.l.b16 %v815
    %v857 = vunpack.c.l.b16 %v816
    %v858 = vunpack.c.l.b16 %v817
    %v859 = vunpack.c.l.b16 %v818
    %v860 = vunpack.c.l.b16 %v819
    %v861 = vunpack.c.l.b16 %v820
    %v862 = vunpack.c.l.b16 %v821
    %v863 = vunpack.c.l.b16 %v822
    %v864 = vunpack.c.l.b16 %v823
    %v865 = vunpack.c.l.b16 %v824
    %v866 = vunpack.c.l.b16 %v825
    %v867 = vunpack.c.l.b16 %v826
    %v868 = vunpack.c.l.b16 %v827
    %v869 = vunpack.c.l.b16 %v828
    %v870 = vunpack.c.l.b16 %v829
    %v871 = vunpack.c.l.b16 %v830
    %v872 = vpack.c.b16 %v857, %v856
    %v873 = vpack.c.b16 %v859, %v858
    %v874 = vpack.c.b16 %v861, %v860
    %v875 = vpack.c.b16 %v863, %v862
    %v876 = vpack.c.b16 %v865, %v864
    %v877 = vpack.c.b16 %v867, %v866
    %v878 = vpack.c.b16 %v869, %v868
    %v879 = vpack.c.b16 %v871, %v870
    %888 = vmatpush.bf16.msra.mxu0 %v879
    %889 = vmatpush.bf16.msra.mxu0 %v878
    %890 = vmatpush.bf16.msra.mxu0 %v877
    %891 = vmatpush.bf16.msra.mxu0 %v876
    %892 = vmatpush.bf16.msra.mxu0 %v875
    %893 = vmatpush.bf16.msra.mxu0 %v874
    %894 = vmatpush.bf16.msra.mxu0 %v873
    %895 = vmatpush.bf16.msra.mxu0 %v872
    %896 = vmatmul.bf16.gmra.mxu0 %v838
    %v897 = vpop.f32.mrf.mxu0
    %v898 = vadd.f32 0.0, %v897
    %v899 = vpop.f32.mrf.mxu0
    %900 = vdwg.mxu0
    %v901 = vperm.slane %v103, 0
    %v902 = vadd.f32 %v901, %v898
    %v903 = vld [vmem:[#allocation8 + $0x13] sm:$0x1]
    %v904 = vperm.slane %v903, 0
    %v905 = vadd.f32 %v902, %v904
    %v906 = vld [vmem:[#allocation8 + $0x2] sm:$0x1]
    %v907 = vld [vmem:[#allocation8 + $0x3] sm:$0x1]
    %vm908 = vcmask 1041408
    %v909 = vsel %vm908, %v905, 0.0
    %910 = vadd.xlane.f32.xlu0 %v909
    %v911 = vpop.xlane.xlu0 %910
    %v912 = vmul.f32 %v911, %v116
    %v913 = vsub.f32 %v905, %v912
    %v914 = vmul.f32 %v913, %v913
    %v915 = vsel %vm908, %v914, 0.0
    %916 = vadd.xlane.f32.xlu0 %v915
    %v917 = vpop.xlane.xlu0 %916
    %v918 = vmul.f32 %v917, %v116
    %v919 = vadd.f32 %v918, 1e-05
    %v920 = vrsqrt.pop %v919
    %v921 = vmul.f32 %v920, %v919
    %v922 = vmul.f32 %v921, %v920
    %v923 = vmul.f32 0.5, %v922
    %v924 = vsub.f32 1.5, %v923
    %v925 = vmul.f32 %v920, %v924
    %vm926 = vweird.f32 %v919
    %vm927 = vweird.f32 %v920
    %vm928 = vmor %vm926, %vm927
    %v929 = vsel %vm928, %v920, %v925
    %v930 = vmul.f32 %v913, %v929
    %v931 = vperm.slane %v906, 0
    %v932 = vmul.f32 %v930, %v931
    %v933 = vperm.slane %v907, 0
    %v934 = vadd.f32 %v932, %v933
    %v935 = vld [vmem:[#allocation10 + $0x10] sm:$0xf]
    %v936 = vld [vmem:[#allocation10 + $0x38] sm:$0xf]
    %v937 = vld [vmem:[#allocation10 + $0x60] sm:$0xf]
    %v938 = vld [vmem:[#allocation10 + $0x88] sm:$0xf]
    %v939 = vld [vmem:[#allocation10 + $0xb0] sm:$0xf]
    %v940 = vld [vmem:[#allocation10 + $0xd8] sm:$0xf]
    %v941 = vld [vmem:[#allocation10 + $0x100] sm:$0xf]
    %v942 = vld [vmem:[#allocation10 + $0x128] sm:$0xf]
    %v943 = vld [vmem:[#allocation10 + $0x150] sm:$0xf]
    %v944 = vld [vmem:[#allocation10 + $0x178] sm:$0xf]
    %v945 = vld [vmem:[#allocation10 + $0x1a0] sm:$0xf]
    %v946 = vld [vmem:[#allocation10 + $0x1c8] sm:$0xf]
    %v947 = vld [vmem:[#allocation10 + $0x1f0] sm:$0xf]
    %v948 = vld [vmem:[#allocation10 + $0x218] sm:$0xf]
    %v949 = vld [vmem:[#allocation10 + $0x240] sm:$0xf]
    %v950 = vld [vmem:[#allocation10 + $0x268] sm:$0xf]
    %v951 = vpack.c.bf16 %v934, %v934
    %v952 = vld [vmem:[#allocation8 + $0x14] sm:$0x1]
    %v953 = vperm.slane %v952, 0
    %v970 = vunpack.c.l.b16 %v935
    %v971 = vunpack.c.l.b16 %v936
    %v972 = vunpack.c.l.b16 %v937
    %v973 = vunpack.c.l.b16 %v938
    %v974 = vunpack.c.l.b16 %v939
    %v975 = vunpack.c.l.b16 %v940
    %v976 = vunpack.c.l.b16 %v941
    %v977 = vunpack.c.l.b16 %v942
    %v978 = vunpack.c.l.b16 %v943
    %v979 = vunpack.c.l.b16 %v944
    %v980 = vunpack.c.l.b16 %v945
    %v981 = vunpack.c.l.b16 %v946
    %v982 = vunpack.c.l.b16 %v947
    %v983 = vunpack.c.l.b16 %v948
    %v984 = vunpack.c.l.b16 %v949
    %v985 = vunpack.c.l.b16 %v950
    %v986 = vpack.c.b16 %v971, %v970
    %v987 = vpack.c.b16 %v973, %v972
    %v988 = vpack.c.b16 %v975, %v974
    %v989 = vpack.c.b16 %v977, %v976
    %v990 = vpack.c.b16 %v979, %v978
    %v991 = vpack.c.b16 %v981, %v980
    %v992 = vpack.c.b16 %v983, %v982
    %v993 = vpack.c.b16 %v985, %v984
    %1002 = vmatpush.bf16.msra.mxu0 %v993
    %1003 = vmatpush.bf16.msra.mxu0 %v992
    %1004 = vmatpush.bf16.msra.mxu0 %v991
    %1005 = vmatpush.bf16.msra.mxu0 %v990
    %1006 = vmatpush.bf16.msra.mxu0 %v989
    %1007 = vmatpush.bf16.msra.mxu0 %v988
    %1008 = vmatpush.bf16.msra.mxu0 %v987
    %1009 = vmatpush.bf16.msra.mxu0 %v986
    %1010 = vmatmul.bf16.gmra.mxu0 %v951
    %v1011 = vpop.f32.mrf.mxu0
    %v1012 = vadd.f32 %v953, %v1011
    %v1013 = vpop.f32.mrf.mxu0
    %1014 = vdwg.mxu0
    %v1015 = vmul.f32 %v1012, 0.25
    %v1016 = vld [vmem:[#allocation5] sm:$0xff]
    %v1017 = vld [vmem:[#allocation5 + $0x8] sm:$0xff]
    %v1018 = vld [vmem:[#allocation5 + $0x10] sm:$0xff]
    %v1019 = vld [vmem:[#allocation5 + $0x18] sm:$0xff]
    %v1020 = vld [vmem:[#allocation10 + $0x14] sm:$0xff]
    %v1021 = vld [vmem:[#allocation10 + $0x3c] sm:$0xff]
    %v1022 = vld [vmem:[#allocation10 + $0x64] sm:$0xff]
    %v1023 = vld [vmem:[#allocation10 + $0x8c] sm:$0xff]
    %v1024 = vld [vmem:[#allocation10 + $0xb4] sm:$0xff]
    %v1025 = vld [vmem:[#allocation10 + $0xdc] sm:$0xff]
    %v1026 = vld [vmem:[#allocation10 + $0x104] sm:$0xff]
    %v1027 = vld [vmem:[#allocation10 + $0x12c] sm:$0xff]
    %v1028 = vld [vmem:[#allocation10 + $0x154] sm:$0xff]
    %v1029 = vld [vmem:[#allocation10 + $0x17c] sm:$0xff]
    %v1030 = vld [vmem:[#allocation10 + $0x1a4] sm:$0xff]
    %v1031 = vld [vmem:[#allocation10 + $0x1cc] sm:$0xff]
    %v1032 = vld [vmem:[#allocation10 + $0x1f4] sm:$0xff]
    %v1033 = vld [vmem:[#allocation10 + $0x21c] sm:$0xff]
    %v1034 = vld [vmem:[#allocation10 + $0x244] sm:$0xff]
    %v1035 = vld [vmem:[#allocation10 + $0x26c] sm:$0xff]
    %v1036 = vpack.c.bf16 %v1017, %v1016
    %v1037 = vpack.c.bf16 %v1019, %v1018
    %v1054 = vunpack.c.l.b16 %v1020
    %v1055 = vunpack.c.h.b16 %v1020
    %v1056 = vunpack.c.l.b16 %v1021
    %v1057 = vunpack.c.h.b16 %v1021
    %v1058 = vunpack.c.l.b16 %v1022
    %v1059 = vunpack.c.h.b16 %v1022
    %v1060 = vunpack.c.l.b16 %v1023
    %v1061 = vunpack.c.h.b16 %v1023
    %v1062 = vunpack.c.l.b16 %v1024
    %v1063 = vunpack.c.h.b16 %v1024
    %v1064 = vunpack.c.l.b16 %v1025
    %v1065 = vunpack.c.h.b16 %v1025
    %v1066 = vunpack.c.l.b16 %v1026
    %v1067 = vunpack.c.h.b16 %v1026
    %v1068 = vunpack.c.l.b16 %v1027
    %v1069 = vunpack.c.h.b16 %v1027
    %v1070 = vunpack.c.l.b16 %v1028
    %v1071 = vunpack.c.h.b16 %v1028
    %v1072 = vunpack.c.l.b16 %v1029
    %v1073 = vunpack.c.h.b16 %v1029
    %v1074 = vunpack.c.l.b16 %v1030
    %v1075 = vunpack.c.h.b16 %v1030
    %v1076 = vunpack.c.l.b16 %v1031
    %v1077 = vunpack.c.h.b16 %v1031
    %v1078 = vunpack.c.l.b16 %v1032
    %v1079 = vunpack.c.h.b16 %v1032
    %v1080 = vunpack.c.l.b16 %v1033
    %v1081 = vunpack.c.h.b16 %v1033
    %v1082 = vunpack.c.l.b16 %v1034
    %v1083 = vunpack.c.h.b16 %v1034
    %v1084 = vunpack.c.l.b16 %v1035
    %v1085 = vunpack.c.h.b16 %v1035
    %v1086 = vpack.c.b16 %v1056, %v1054
    %v1087 = vpack.c.b16 %v1057, %v1055
    %v1088 = vpack.c.b16 %v1060, %v1058
    %v1089 = vpack.c.b16 %v1061, %v1059
    %v1090 = vpack.c.b16 %v1064, %v1062
    %v1091 = vpack.c.b16 %v1065, %v1063
    %v1092 = vpack.c.b16 %v1068, %v1066
    %v1093 = vpack.c.b16 %v1069, %v1067
    %v1094 = vpack.c.b16 %v1072, %v1070
    %v1095 = vpack.c.b16 %v1073, %v1071
    %v1096 = vpack.c.b16 %v1076, %v1074
    %v1097 = vpack.c.b16 %v1077, %v1075
    %v1098 = vpack.c.b16 %v1080, %v1078
    %v1099 = vpack.c.b16 %v1081, %v1079
    %v1100 = vpack.c.b16 %v1084, %v1082
    %v1101 = vpack.c.b16 %v1085, %v1083
    %1118 = vmatpush.bf16.msra.mxu0 %v1100
    %1119 = vmatpush.bf16.msra.mxu0 %v1098
    %1120 = vmatpush.bf16.msra.mxu0 %v1096
    %1121 = vmatpush.bf16.msra.mxu0 %v1094
    %1122 = vmatpush.bf16.msra.mxu0 %v1092
    %1123 = vmatpush.bf16.msra.mxu0 %v1090
    %1124 = vmatpush.bf16.msra.mxu0 %v1088
    %1125 = vmatpush.bf16.msra.mxu0 %v1086
    %1126 = vmatmul.bf16.gmra.mxu0 %v1036
    %v1127 = vpop.f32.mrf.mxu0
    %v1128 = vadd.f32 0.0, %v1127
    %v1129 = vpop.f32.mrf.mxu0
    %v1130 = vadd.f32 0.0, %v1129
    %1131 = vmatmul.bf16.gmra.mxu0 %v1037
    %v1132 = vpop.f32.mrf.mxu0
    %v1133 = vadd.f32 0.0, %v1132
    %v1134 = vpop.f32.mrf.mxu0
    %v1135 = vadd.f32 0.0, %v1134
    %1136 = vdwg.mxu0
    %1137 = vmatpush.bf16.msra.mxu0 %v1101
    %1138 = vmatpush.bf16.msra.mxu0 %v1099
    %1139 = vmatpush.bf16.msra.mxu0 %v1097
    %1140 = vmatpush.bf16.msra.mxu0 %v1095
    %1141 = vmatpush.bf16.msra.mxu0 %v1093
    %1142 = vmatpush.bf16.msra.mxu0 %v1091
    %1143 = vmatpush.bf16.msra.mxu0 %v1089
    %1144 = vmatpush.bf16.msra.mxu0 %v1087
    %1145 = vmatmul.bf16.gmra.mxu0 %v1036
    %v1146 = vpop.f32.mrf.mxu0
    %v1147 = vadd.f32 0.0, %v1146
    %v1148 = vpop.f32.mrf.mxu0
    %v1149 = vadd.f32 0.0, %v1148
    %1150 = vmatmul.bf16.gmra.mxu0 %v1037
    %v1151 = vpop.f32.mrf.mxu0
    %v1152 = vadd.f32 0.0, %v1151
    %v1153 = vpop.f32.mrf.mxu0
    %v1154 = vadd.f32 0.0, %v1153
    %1155 = vdwg.mxu0
    %v1156 = vld [vmem:[#allocation8 + $0x15] sm:$0x1]
    %v1157 = vperm.slane %v1156, 0
    %v1158 = vadd.f32 %v1128, %v1157
    %v1159 = vadd.f32 %v1130, %v1157
    %v1160 = vadd.f32 %v1133, %v1157
    %v1161 = vadd.f32 %v1135, %v1157
    %v1162 = vld [vmem:[#allocation8 + $0x16] sm:$0x1]
    %v1163 = vperm.slane %v1162, 0
    %v1164 = vadd.f32 %v1147, %v1163
    %v1165 = vadd.f32 %v1149, %v1163
    %v1166 = vadd.f32 %v1152, %v1163
    %v1167 = vadd.f32 %v1154, %v1163
    %v1169 = vrot.slane %v1015, 1
    %v1170 = vperm.slane %v1015, 0
    %v1171 = vperm.slane %v1169, 0
    %v1174 = vmul.f32 %v1158, %v1170
    %v1175 = vmul.f32 %v1159, %v1170
    %v1176 = vmul.f32 %v1160, %v1171
    %v1177 = vmul.f32 %v1161, %v1171
    %1178 = vmatpush.xpose.msra.mxu0 0.0
    %1179 = vmatpush.xpose.msra.mxu0 0.0
    %1180 = vmatpush.xpose.msra.mxu0 0.0
    %1181 = vmatpush.xpose.msra.mxu0 0.0
    %1182 = vmatpush.xpose.msra.mxu0 0.0
    %1183 = vmatpush.xpose.msra.mxu0 0.0
    %1184 = vmatpush.xpose.msra.mxu0 0.0
    %1185 = vmatpush.xpose.msra.mxu0 0.0
    %1186 = vmatpush.xpose.msra.mxu0 0.0
    %1187 = vmatpush.xpose.msra.mxu0 0.0
    %1188 = vmatpush.xpose.msra.mxu0 0.0
    %1189 = vmatpush.xpose.msra.mxu0 0.0
    %1190 = vmatpush.xpose.msra.mxu0 0.0
    %1191 = vmatpush.xpose.msra.mxu0 0.0
    %1192 = vmatpush.xpose.msra.mxu0 0.0
    %1193 = vmatpush.xpose.msra.mxu0 %v97
    %1194 = vmatmul.f32.gmra.mxu0 %v1174
    %v1195 = vpop.f32.mrf.mxu0
    %v1196 = vadd.f32 0.0, %v1195
    %1197 = vmatmul.f32.gmra.mxu0 %v1175
    %v1198 = vpop.f32.mrf.mxu0
    %v1199 = vadd.f32 0.0, %v1198
    %1200 = vmatmul.f32.gmra.mxu0 %v1176
    %v1201 = vpop.f32.mrf.mxu0
    %v1202 = vadd.f32 0.0, %v1201
    %1203 = vmatmul.f32.gmra.mxu0 %v1177
    %v1204 = vpop.f32.mrf.mxu0
    %v1205 = vadd.f32 0.0, %v1204
    %1206 = vdwg.mxu0
    %v1207 = vsel %vm601, %v1196, -inf
    %v1208 = vsel %vm601, %v1199, -inf
    %v1209 = vmax.f32 %v1207, %v1208
    %v1210 = vrot.slane %v1209, 4
    %v1211 = vmax.f32 %v1209, %v1210
    %v1212 = vrot.slane %v1211, 2
    %v1213 = vmax.f32 %v1211, %v1212
    %v1214 = vrot.slane %v1213, 1
    %v1215 = vmax.f32 %v1213, %v1214
    %v1216 = vsel %vm601, %v1202, -inf
    %v1217 = vsel %vm601, %v1205, -inf
    %v1218 = vmax.f32 %v1216, %v1217
    %v1219 = vrot.slane %v1218, 4
    %v1220 = vmax.f32 %v1218, %v1219
    %v1221 = vrot.slane %v1220, 2
    %v1222 = vmax.f32 %v1220, %v1221
    %v1223 = vrot.slane %v1222, 1
    %v1224 = vmax.f32 %v1222, %v1223
    %v1225 = vsub.f32 %v1196, %v1215
    %v1226 = vsub.f32 %v1199, %v1215
    %v1227 = vsub.f32 %v1202, %v1224
    %v1228 = vsub.f32 %v1205, %v1224
    %v1229 = vmul.f32 %v1225, 1.442695
    %v1230 = vpow.pop %v1229
    %v1231 = vmul.f32 %v1226, 1.442695
    %v1232 = vpow.pop %v1231
    %v1233 = vmul.f32 %v1227, 1.442695
    %v1234 = vpow.pop %v1233
    %v1235 = vmul.f32 %v1228, 1.442695
    %v1236 = vpow.pop %v1235
    %v1237 = vsel %vm601, %v1230, 0.0
    %v1238 = vsel %vm601, %v1232, 0.0
    %v1239 = vadd.f32 %v1237, %v1238
    %v1240 = vrot.slane %v1239, 4
    %v1241 = vadd.f32 %v1239, %v1240
    %v1242 = vrot.slane %v1241, 2
    %v1243 = vadd.f32 %v1241, %v1242
    %v1244 = vrot.slane %v1243, 1
    %v1245 = vadd.f32 %v1243, %v1244
    %v1246 = vsel %vm601, %v1234, 0.0
    %v1247 = vsel %vm601, %v1236, 0.0
    %v1248 = vadd.f32 %v1246, %v1247
    %v1249 = vrot.slane %v1248, 4
    %v1250 = vadd.f32 %v1248, %v1249
    %v1251 = vrot.slane %v1250, 2
    %v1252 = vadd.f32 %v1250, %v1251
    %v1253 = vrot.slane %v1252, 1
    %v1254 = vadd.f32 %v1252, %v1253
    %v1255 = vrcp.pop %v1245
    %v1256 = vrcp.pop %v1254
    %1257 = vxpose.xlu0.b32.start [1/16] %v1230, 128
    %1258 = vxpose.xlu0.b32.cont [2/16] %v1232, 128
    %1259 = vxpose.xlu0.b32.cont [3/16] 0.0, 128
    %1260 = vxpose.xlu0.b32.cont [4/16] 0.0, 128
    %1261 = vxpose.xlu0.b32.cont [5/16] 0.0, 128
    %1262 = vxpose.xlu0.b32.cont [6/16] 0.0, 128
    %1263 = vxpose.xlu0.b32.cont [7/16] 0.0, 128
    %1264 = vxpose.xlu0.b32.cont [8/16] 0.0, 128
    %1265 = vxpose.xlu0.b32.cont [9/16] 0.0, 128
    %1266 = vxpose.xlu0.b32.cont [10/16] 0.0, 128
    %1267 = vxpose.xlu0.b32.cont [11/16] 0.0, 128
    %1268 = vxpose.xlu0.b32.cont [12/16] 0.0, 128
    %1269 = vxpose.xlu0.b32.cont [13/16] 0.0, 128
    %1270 = vxpose.xlu0.b32.cont [14/16] 0.0, 128
    %1271 = vxpose.xlu0.b32.cont [15/16] 0.0, 128
    %1272 = vxpose.xlu0.b32.end [16/16] 0.0, 128
    %v1273 = vpop.trf.xlu0
    %v1274 = vpop.trf.xlu0
    %v1275 = vpop.trf.xlu0
    %v1276 = vpop.trf.xlu0
    %v1277 = vpop.trf.xlu0
    %v1278 = vpop.trf.xlu0
    %v1279 = vpop.trf.xlu0
    %v1280 = vpop.trf.xlu0
    %v1281 = vpop.trf.xlu0
    %v1282 = vpop.trf.xlu0
    %v1283 = vpop.trf.xlu0
    %v1284 = vpop.trf.xlu0
    %v1285 = vpop.trf.xlu0
    %v1286 = vpop.trf.xlu0
    %v1287 = vpop.trf.xlu0
    %v1288 = vpop.trf.xlu0
    %vm1289 = vcmask 130048
    %v1291 = vsel %vm1289, %v1273, 0
    %1293 = vmatpush.msra.mxu0 0.0
    %1294 = vmatpush.msra.mxu0 0.0
    %1295 = vmatpush.msra.mxu0 0.0
    %1296 = vmatpush.msra.mxu0 0.0
    %1297 = vmatpush.msra.mxu0 0.0
    %1298 = vmatpush.msra.mxu0 0.0
    %1299 = vmatpush.msra.mxu0 0.0
    %1300 = vmatpush.msra.mxu0 0.0
    %1301 = vmatpush.msra.mxu0 0.0
    %1302 = vmatpush.msra.mxu0 0.0
    %1303 = vmatpush.msra.mxu0 0.0
    %1304 = vmatpush.msra.mxu0 0.0
    %1305 = vmatpush.msra.mxu0 0.0
    %1306 = vmatpush.msra.mxu0 0.0
    %1307 = vmatpush.msra.mxu0 %v1165
    %1308 = vmatpush.msra.mxu0 %v1164
    %1309 = vmatmul.f32.gmra.mxu0 %v1291
    %v1310 = vpop.f32.mrf.mxu0
    %v1311 = vadd.f32 0.0, %v1310
    %1312 = vdwg.mxu0
    %1313 = vxpose.xlu0.b32.start [1/16] %v1234, 128
    %1314 = vxpose.xlu0.b32.cont [2/16] %v1236, 128
    %1315 = vxpose.xlu0.b32.cont [3/16] 0.0, 128
    %1316 = vxpose.xlu0.b32.cont [4/16] 0.0, 128
    %1317 = vxpose.xlu0.b32.cont [5/16] 0.0, 128
    %1318 = vxpose.xlu0.b32.cont [6/16] 0.0, 128
    %1319 = vxpose.xlu0.b32.cont [7/16] 0.0, 128
    %1320 = vxpose.xlu0.b32.cont [8/16] 0.0, 128
    %1321 = vxpose.xlu0.b32.cont [9/16] 0.0, 128
    %1322 = vxpose.xlu0.b32.cont [10/16] 0.0, 128
    %1323 = vxpose.xlu0.b32.cont [11/16] 0.0, 128
    %1324 = vxpose.xlu0.b32.cont [12/16] 0.0, 128
    %1325 = vxpose.xlu0.b32.cont [13/16] 0.0, 128
    %1326 = vxpose.xlu0.b32.cont [14/16] 0.0, 128
    %1327 = vxpose.xlu0.b32.cont [15/16] 0.0, 128
    %1328 = vxpose.xlu0.b32.end [16/16] 0.0, 128
    %v1329 = vpop.trf.xlu0
    %v1330 = vpop.trf.xlu0
    %v1331 = vpop.trf.xlu0
    %v1332 = vpop.trf.xlu0
    %v1333 = vpop.trf.xlu0
    %v1334 = vpop.trf.xlu0
    %v1335 = vpop.trf.xlu0
    %v1336 = vpop.trf.xlu0
    %v1337 = vpop.trf.xlu0
    %v1338 = vpop.trf.xlu0
    %v1339 = vpop.trf.xlu0
    %v1340 = vpop.trf.xlu0
    %v1341 = vpop.trf.xlu0
    %v1342 = vpop.trf.xlu0
    %v1343 = vpop.trf.xlu0
    %v1344 = vpop.trf.xlu0
    %v1346 = vsel %vm1289, %v1329, 0
    %1348 = vmatpush.msra.mxu0 0.0
    %1349 = vmatpush.msra.mxu0 0.0
    %1350 = vmatpush.msra.mxu0 0.0
    %1351 = vmatpush.msra.mxu0 0.0
    %1352 = vmatpush.msra.mxu0 0.0
    %1353 = vmatpush.msra.mxu0 0.0
    %1354 = vmatpush.msra.mxu0 0.0
    %1355 = vmatpush.msra.mxu0 0.0
    %1356 = vmatpush.msra.mxu0 0.0
    %1357 = vmatpush.msra.mxu0 0.0
    %1358 = vmatpush.msra.mxu0 0.0
    %1359 = vmatpush.msra.mxu0 0.0
    %1360 = vmatpush.msra.mxu0 0.0
    %1361 = vmatpush.msra.mxu0 0.0
    %1362 = vmatpush.msra.mxu0 %v1167
    %1363 = vmatpush.msra.mxu0 %v1166
    %1364 = vmatmul.f32.gmra.mxu0 %v1346
    %v1365 = vpop.f32.mrf.mxu0
    %v1366 = vadd.f32 0.0, %v1365
    %1367 = vdwg.mxu0
    %v1368 = vlaneseq
    %v1369 = vshrl.u32 %v1368, 7
    %1371 = vset.pattern.permute.xlu0 %v1369
    %1372 = vperm.xlu0 %1371, %v1255
    %v1373 = vpop.permute.xlu0 %1372
    %v1374 = vlaneseq
    %v1375 = vshrl.u32 %v1374, 7
    %1377 = vset.pattern.permute.xlu0 %v1375
    %1378 = vperm.xlu0 %1377, %v1256
    %v1379 = vpop.permute.xlu0 %1378
    %v1380 = vmul.f32 %v1311, %v1373
    %v1381 = vmul.f32 %v1366, %v1379
    %v1382 = vmul.f32 %v1380, %v97
    %v1383 = vmul.f32 %v1381, %v97
    %v1384 = vrot.slane %v1382, 4
    %v1385 = vadd.f32 %v1382, %v1384
    %v1386 = vrot.slane %v1385, 2
    %v1387 = vadd.f32 %v1385, %v1386
    %v1388 = vrot.slane %v1387, 1
    %v1389 = vadd.f32 %v1387, %v1388
    %v1390 = vrot.slane %v1383, 4
    %v1391 = vadd.f32 %v1383, %v1390
    %v1392 = vrot.slane %v1391, 2
    %v1393 = vadd.f32 %v1391, %v1392
    %v1394 = vrot.slane %v1393, 1
    %v1395 = vadd.f32 %v1393, %v1394
    %v1396 = vld [vmem:[#allocation10 + $0x1c] sm:$0xf]
    %v1397 = vld [vmem:[#allocation10 + $0x44] sm:$0xf]
    %v1398 = vld [vmem:[#allocation10 + $0x6c] sm:$0xf]
    %v1399 = vld [vmem:[#allocation10 + $0x94] sm:$0xf]
    %v1400 = vld [vmem:[#allocation10 + $0xbc] sm:$0xf]
    %v1401 = vld [vmem:[#allocation10 + $0xe4] sm:$0xf]
    %v1402 = vld [vmem:[#allocation10 + $0x10c] sm:$0xf]
    %v1403 = vld [vmem:[#allocation10 + $0x134] sm:$0xf]
    %v1404 = vld [vmem:[#allocation10 + $0x15c] sm:$0xf]
    %v1405 = vld [vmem:[#allocation10 + $0x184] sm:$0xf]
    %v1406 = vld [vmem:[#allocation10 + $0x1ac] sm:$0xf]
    %v1407 = vld [vmem:[#allocation10 + $0x1d4] sm:$0xf]
    %v1408 = vld [vmem:[#allocation10 + $0x1fc] sm:$0xf]
    %v1409 = vld [vmem:[#allocation10 + $0x224] sm:$0xf]
    %v1410 = vld [vmem:[#allocation10 + $0x24c] sm:$0xf]
    %v1411 = vld [vmem:[#allocation10 + $0x274] sm:$0xf]
    %v1412 = vpack.c.bf16 %v1389, %v1389
    %v1413 = vpack.c.bf16 %v1395, %v1395
    %v1416 = vunpack.c.l.b16 %v1412
    %v1417 = vunpack.c.l.b16 %v1413
    %v1418 = vsel %vm630, %v1417, %v1416
    %v1419 = vpack.c.b16 %v1418, %v1418
    %v1437 = vunpack.c.l.b16 %v1396
    %v1438 = vunpack.c.l.b16 %v1397
    %v1439 = vunpack.c.l.b16 %v1398
    %v1440 = vunpack.c.l.b16 %v1399
    %v1441 = vunpack.c.l.b16 %v1400
    %v1442 = vunpack.c.l.b16 %v1401
    %v1443 = vunpack.c.l.b16 %v1402
    %v1444 = vunpack.c.l.b16 %v1403
    %v1445 = vunpack.c.l.b16 %v1404
    %v1446 = vunpack.c.l.b16 %v1405
    %v1447 = vunpack.c.l.b16 %v1406
    %v1448 = vunpack.c.l.b16 %v1407
    %v1449 = vunpack.c.l.b16 %v1408
    %v1450 = vunpack.c.l.b16 %v1409
    %v1451 = vunpack.c.l.b16 %v1410
    %v1452 = vunpack.c.l.b16 %v1411
    %v1453 = vpack.c.b16 %v1438, %v1437
    %v1454 = vpack.c.b16 %v1440, %v1439
    %v1455 = vpack.c.b16 %v1442, %v1441
    %v1456 = vpack.c.b16 %v1444, %v1443
    %v1457 = vpack.c.b16 %v1446, %v1445
    %v1458 = vpack.c.b16 %v1448, %v1447
    %v1459 = vpack.c.b16 %v1450, %v1449
    %v1460 = vpack.c.b16 %v1452, %v1451
    %1469 = vmatpush.bf16.msra.mxu0 %v1460
    %1470 = vmatpush.bf16.msra.mxu0 %v1459
    %1471 = vmatpush.bf16.msra.mxu0 %v1458
    %1472 = vmatpush.bf16.msra.mxu0 %v1457
    %1473 = vmatpush.bf16.msra.mxu0 %v1456
    %1474 = vmatpush.bf16.msra.mxu0 %v1455
    %1475 = vmatpush.bf16.msra.mxu0 %v1454
    %1476 = vmatpush.bf16.msra.mxu0 %v1453
    %1477 = vmatmul.bf16.gmra.mxu0 %v1419
    %v1478 = vpop.f32.mrf.mxu0
    %v1479 = vadd.f32 0.0, %v1478
    %v1480 = vpop.f32.mrf.mxu0
    %1481 = vdwg.mxu0
    %v1482 = vadd.f32 %v905, %v1479
    %v1483 = vld [vmem:[#allocation8 + $0x17] sm:$0x1]
    %v1484 = vperm.slane %v1483, 0
    %v1485 = vadd.f32 %v1482, %v1484
    %v1486 = vld [vmem:[#allocation8 + $0x4] sm:$0x1]
    %v1487 = vld [vmem:[#allocation8 + $0x5] sm:$0x1]
    %v1488 = vsel %vm908, %v1485, 0.0
    %1489 = vadd.xlane.f32.xlu0 %v1488
    %v1490 = vpop.xlane.xlu0 %1489
    %v1491 = vmul.f32 %v1490, %v116
    %v1492 = vsub.f32 %v1485, %v1491
    %v1493 = vmul.f32 %v1492, %v1492
    %v1494 = vsel %vm908, %v1493, 0.0
    %1495 = vadd.xlane.f32.xlu0 %v1494
    %v1496 = vpop.xlane.xlu0 %1495
    %v1497 = vmul.f32 %v1496, %v116
    %v1498 = vadd.f32 %v1497, 1e-05
    %v1499 = vrsqrt.pop %v1498
    %v1500 = vmul.f32 %v1499, %v1498
    %v1501 = vmul.f32 %v1500, %v1499
    %v1502 = vmul.f32 0.5, %v1501
    %v1503 = vsub.f32 1.5, %v1502
    %v1504 = vmul.f32 %v1499, %v1503
    %vm1505 = vweird.f32 %v1498
    %vm1506 = vweird.f32 %v1499
    %vm1507 = vmor %vm1505, %vm1506
    %v1508 = vsel %vm1507, %v1499, %v1504
    %v1509 = vmul.f32 %v1492, %v1508
    %v1510 = vperm.slane %v1486, 0
    %v1511 = vmul.f32 %v1509, %v1510
    %v1512 = vperm.slane %v1487, 0
    %v1513 = vadd.f32 %v1511, %v1512
    %v1514 = vld [vmem:[#allocation10 + $0x20] sm:$0xf]
    %v1515 = vld [vmem:[#allocation10 + $0x48] sm:$0xf]
    %v1516 = vld [vmem:[#allocation10 + $0x70] sm:$0xf]
    %v1517 = vld [vmem:[#allocation10 + $0x98] sm:$0xf]
    %v1518 = vld [vmem:[#allocation10 + $0xc0] sm:$0xf]
    %v1519 = vld [vmem:[#allocation10 + $0xe8] sm:$0xf]
    %v1520 = vld [vmem:[#allocation10 + $0x110] sm:$0xf]
    %v1521 = vld [vmem:[#allocation10 + $0x138] sm:$0xf]
    %v1522 = vld [vmem:[#allocation10 + $0x160] sm:$0xf]
    %v1523 = vld [vmem:[#allocation10 + $0x188] sm:$0xf]
    %v1524 = vld [vmem:[#allocation10 + $0x1b0] sm:$0xf]
    %v1525 = vld [vmem:[#allocation10 + $0x1d8] sm:$0xf]
    %v1526 = vld [vmem:[#allocation10 + $0x200] sm:$0xf]
    %v1527 = vld [vmem:[#allocation10 + $0x228] sm:$0xf]
    %v1528 = vld [vmem:[#allocation10 + $0x250] sm:$0xf]
    %v1529 = vld [vmem:[#allocation10 + $0x278] sm:$0xf]
    %v1530 = vpack.c.bf16 %v1513, %v1513
    %v1531 = vld [vmem:[#allocation8 + $0x18] sm:$0x1]
    %v1532 = vperm.slane %v1531, 0
    %v1549 = vunpack.c.l.b16 %v1514
    %v1550 = vunpack.c.l.b16 %v1515
    %v1551 = vunpack.c.l.b16 %v1516
    %v1552 = vunpack.c.l.b16 %v1517
    %v1553 = vunpack.c.l.b16 %v1518
    %v1554 = vunpack.c.l.b16 %v1519
    %v1555 = vunpack.c.l.b16 %v1520
    %v1556 = vunpack.c.l.b16 %v1521
    %v1557 = vunpack.c.l.b16 %v1522
    %v1558 = vunpack.c.l.b16 %v1523
    %v1559 = vunpack.c.l.b16 %v1524
    %v1560 = vunpack.c.l.b16 %v1525
    %v1561 = vunpack.c.l.b16 %v1526
    %v1562 = vunpack.c.l.b16 %v1527
    %v1563 = vunpack.c.l.b16 %v1528
    %v1564 = vunpack.c.l.b16 %v1529
    %v1565 = vpack.c.b16 %v1550, %v1549
    %v1566 = vpack.c.b16 %v1552, %v1551
    %v1567 = vpack.c.b16 %v1554, %v1553
    %v1568 = vpack.c.b16 %v1556, %v1555
    %v1569 = vpack.c.b16 %v1558, %v1557
    %v1570 = vpack.c.b16 %v1560, %v1559
    %v1571 = vpack.c.b16 %v1562, %v1561
    %v1572 = vpack.c.b16 %v1564, %v1563
    %1581 = vmatpush.bf16.msra.mxu0 %v1572
    %1582 = vmatpush.bf16.msra.mxu0 %v1571
    %1583 = vmatpush.bf16.msra.mxu0 %v1570
    %1584 = vmatpush.bf16.msra.mxu0 %v1569
    %1585 = vmatpush.bf16.msra.mxu0 %v1568
    %1586 = vmatpush.bf16.msra.mxu0 %v1567
    %1587 = vmatpush.bf16.msra.mxu0 %v1566
    %1588 = vmatpush.bf16.msra.mxu0 %v1565
    %1589 = vmatmul.bf16.gmra.mxu0 %v1530
    %v1590 = vpop.f32.mrf.mxu0
    %v1591 = vadd.f32 %v1532, %v1590
    %v1592 = vpop.f32.mrf.mxu0
    %1593 = vdwg.mxu0
    %v1594 = vmul.f32 %v1591, 0.5
    %v1595 = vmul.f32 %v1591, 0.044715
    %v1596 = vmul.f32 %v1595, %v1591
    %v1597 = vmul.f32 %v1596, %v1591
    %v1598 = vadd.f32 %v1591, %v1597
    %v1599 = vmul.f32 %v1598, 0.7978846
    %v1600 = vtanh.pop %v1599
    %v1601 = vadd.f32 %v1600, 1.0
    %v1602 = vmul.f32 %v1594, %v1601
    %v1603 = vld [vmem:[#allocation8 + $0x6] sm:$0x1]
    %v1604 = vld [vmem:[#allocation8 + $0x7] sm:$0x1]
    %v1605 = vsel %vm908, %v1602, 0.0
    %1606 = vadd.xlane.f32.xlu0 %v1605
    %v1607 = vpop.xlane.xlu0 %1606
    %v1608 = vmul.f32 %v1607, %v116
    %v1609 = vsub.f32 %v1602, %v1608
    %v1610 = vmul.f32 %v1609, %v1609
    %v1611 = vsel %vm908, %v1610, 0.0
    %1612 = vadd.xlane.f32.xlu0 %v1611
    %v1613 = vpop.xlane.xlu0 %1612
    %v1614 = vmul.f32 %v1613, %v116
    %v1615 = vadd.f32 %v1614, 1e-05
    %v1616 = vrsqrt.pop %v1615
    %v1617 = vmul.f32 %v1616, %v1615
    %v1618 = vmul.f32 %v1617, %v1616
    %v1619 = vmul.f32 0.5, %v1618
    %v1620 = vsub.f32 1.5, %v1619
    %v1621 = vmul.f32 %v1616, %v1620
    %vm1622 = vweird.f32 %v1615
    %vm1623 = vweird.f32 %v1616
    %vm1624 = vmor %vm1622, %vm1623
    %v1625 = vsel %vm1624, %v1616, %v1621
    %v1626 = vmul.f32 %v1609, %v1625
    %v1627 = vperm.slane %v1603, 0
    %v1628 = vmul.f32 %v1626, %v1627
    %v1629 = vperm.slane %v1604, 0
    %v1630 = vadd.f32 %v1628, %v1629
    %v1631 = vld [vmem:[#allocation10 + $0x24] sm:$0xf]
    %v1632 = vld [vmem:[#allocation10 + $0x4c] sm:$0xf]
    %v1633 = vld [vmem:[#allocation10 + $0x74] sm:$0xf]
    %v1634 = vld [vmem:[#allocation10 + $0x9c] sm:$0xf]
    %v1635 = vld [vmem:[#allocation10 + $0xc4] sm:$0xf]
    %v1636 = vld [vmem:[#allocation10 + $0xec] sm:$0xf]
    %v1637 = vld [vmem:[#allocation10 + $0x114] sm:$0xf]
    %v1638 = vld [vmem:[#allocation10 + $0x13c] sm:$0xf]
    %v1639 = vld [vmem:[#allocation10 + $0x164] sm:$0xf]
    %v1640 = vld [vmem:[#allocation10 + $0x18c] sm:$0xf]
    %v1641 = vld [vmem:[#allocation10 + $0x1b4] sm:$0xf]
    %v1642 = vld [vmem:[#allocation10 + $0x1dc] sm:$0xf]
    %v1643 = vld [vmem:[#allocation10 + $0x204] sm:$0xf]
    %v1644 = vld [vmem:[#allocation10 + $0x22c] sm:$0xf]
    %v1645 = vld [vmem:[#allocation10 + $0x254] sm:$0xf]
    %v1646 = vld [vmem:[#allocation10 + $0x27c] sm:$0xf]
    %v1647 = vpack.c.bf16 %v1630, %v1630
    %v1648 = vld [vmem:[#allocation8 + $0x19] sm:$0x1]
    %v1649 = vperm.slane %v1648, 0
    %v1666 = vunpack.c.l.b16 %v1631
    %v1667 = vunpack.c.l.b16 %v1632
    %v1668 = vunpack.c.l.b16 %v1633
    %v1669 = vunpack.c.l.b16 %v1634
    %v1670 = vunpack.c.l.b16 %v1635
    %v1671 = vunpack.c.l.b16 %v1636
    %v1672 = vunpack.c.l.b16 %v1637
    %v1673 = vunpack.c.l.b16 %v1638
    %v1674 = vunpack.c.l.b16 %v1639
    %v1675 = vunpack.c.l.b16 %v1640
    %v1676 = vunpack.c.l.b16 %v1641
    %v1677 = vunpack.c.l.b16 %v1642
    %v1678 = vunpack.c.l.b16 %v1643
    %v1679 = vunpack.c.l.b16 %v1644
    %v1680 = vunpack.c.l.b16 %v1645
    %v1681 = vunpack.c.l.b16 %v1646
    %v1682 = vpack.c.b16 %v1667, %v1666
    %v1683 = vpack.c.b16 %v1669, %v1668
    %v1684 = vpack.c.b16 %v1671, %v1670
    %v1685 = vpack.c.b16 %v1673, %v1672
    %v1686 = vpack.c.b16 %v1675, %v1674
    %v1687 = vpack.c.b16 %v1677, %v1676
    %v1688 = vpack.c.b16 %v1679, %v1678
    %v1689 = vpack.c.b16 %v1681, %v1680
    %1698 = vmatpush.bf16.msra.mxu0 %v1689
    %1699 = vmatpush.bf16.msra.mxu0 %v1688
    %1700 = vmatpush.bf16.msra.mxu0 %v1687
    %1701 = vmatpush.bf16.msra.mxu0 %v1686
    %1702 = vmatpush.bf16.msra.mxu0 %v1685
    %1703 = vmatpush.bf16.msra.mxu0 %v1684
    %1704 = vmatpush.bf16.msra.mxu0 %v1683
    %1705 = vmatpush.bf16.msra.mxu0 %v1682
    %1706 = vmatmul.bf16.gmra.mxu0 %v1647
    %v1707 = vpop.f32.mrf.mxu0
    %v1708 = vadd.f32 %v1649, %v1707
    %v1709 = vpop.f32.mrf.mxu0
    %1710 = vdwg.mxu0
    %v1711 = vadd.f32 %v1485, %v1708
    %1712 = vst [vmem:[#allocation11] sm:$0x3] %v1711
    // Predicated region
    $region42: #{tpu_custom_call.1} parent=1 // pred_check
      _
    $region43: #{tpu_custom_call.1} parent=1 // pred_check_branch
      %1714 = sbr.rel (0) target = $region45
    $region44: #{tpu_custom_call.1} parent=1 // pred_region
      %1716 = vsyncadd [#allocation4], 0
      %s1718 = sshll.u32 [#allocation11], 4
      %s1719 = int_to_ptr.vmem [resolvable:$true] %s1718
      %s1720 = sshll.u32 %s5, 4
      %s1721 = int_to_ptr.hbm [resolvable:$true] %s1720
      %1723 = dma.vmem_to_hbm [thread:$0]  %s1719, 32, %s1721, [#allocation4]
    $region45: #{tpu_custom_call.1} parent=1 // pred_fallthru
      _
    // Predicated region
    $region46: #{tpu_custom_call.1} parent=1 // pred_check
      _
    $region47: #{tpu_custom_call.1} parent=1 // pred_check_branch
      %1725 = sbr.rel (0) target = $region49
    $region48: #{tpu_custom_call.1} parent=1 // pred_region
      %1727 = dma.done [#allocation4], 32
    $region49: #{tpu_custom_call.1} parent=1 // pred_fallthru
      _
    %1728 = vsyncpa [#allocation3], 1
    %1729 = vsyncpa [#allocation6], 1
    %1730 = vsyncpa [#allocation9], 1
    %1731 = vsyncpa [#allocation4], 1

// kernel: tpu_custom_call.1
$region0: #{tpu_custom_call.1}
  #allocation0 [shape = 'u32[]', space=smem, size = 0x4, offset = 0x4, fixed_abs, tag = 'smem constant byte address 0x4 - core index']
  #allocation1 [shape = 'u32[72,128]{1,0:T(1,128)}', space=vmem, size = 0x9000, scoped, tag = 'internal scratch']
  %s0 = inlined_call_operand.hbm [shape: f32[2,8,128], index: 0, kind: input, shape index: {}]
  %s1 = inlined_call_operand.hbm [shape: f32[2,16,128], index: 1, kind: input, shape index: {}]
  %s2 = inlined_call_operand.hbm [shape: f32[2,8], index: 2, kind: input, shape index: {}]
  %s3 = inlined_call_operand.hbm [shape: f32[40,128], index: 3, kind: input, shape index: {}]
  %s4 = inlined_call_operand.hbm [shape: bf16[128,1280], index: 4, kind: input, shape index: {}]
  %s5 = inlined_call_operand.hbm [shape: f32[2,128], index: 5, kind: output, shape index: {}]
  %s6 = sld [smem:[#allocation0]]
  $region50: #{tpu_custom_call.1} parent=0
    _
  %s8 = ssub.s32 1, %s6
  %s9 = scalar_select 0, %s8, %s6
  $region1: #{tpu_custom_call.1} parent=0
    #allocation2 [shape = 'u8[8192]{0}', space=vmem, size = 0x2000, scoped, tag = 'input window, operand 0, single buffered']
    #allocation3 [shape = 's32[1]{0}', space=sflag, size = 0x4, scoped, tag = 'scoped memory for tpu_custom_call.1']
    #allocation4 [shape = 's32[1]{0}', space=sflag, size = 0x4, scoped, tag = 'scoped memory for tpu_custom_call.1']
    #allocation5 [shape = 'u8[16384]{0}', space=vmem, size = 0x4000, scoped, tag = 'input window, operand 1, single buffered']
    #allocation6 [shape = 's32[1]{0}', space=sflag, size = 0x4, scoped, tag = 'scoped memory for tpu_custom_call.1']
    #allocation7 [shape = 'u8[1024]{0}', space=vmem, size = 0x400, scoped, tag = 'input window, operand 2, single buffered']
    #allocation8 [shape = 'u8[20480]{0}', space=vmem, size = 0x5000, scoped, tag = 'input window, operand 3, single buffered']
    #allocation9 [shape = 's32[1]{0}', space=sflag, size = 0x4, scoped, tag = 'scoped memory for tpu_custom_call.1']
    #allocation10 [shape = 'u8[327680]{0}', space=vmem, size = 0x50000, scoped, tag = 'input window, operand 4, single buffered']
    #allocation11 [shape = 'u8[1024]{0}', space=vmem, size = 0x400, scoped, tag = 'output window, operand 0, single buffered']
    %10 = vsyncpa [#allocation3], 0
    %11 = vsyncpa [#allocation6], 0
    %12 = vsyncpa [#allocation9], 0
    %13 = vsyncpa [#allocation4], 0
    // Predicated region
    $region2: #{tpu_custom_call.1} parent=1 // pred_check
      _
    $region3: #{tpu_custom_call.1} parent=1 // pred_check_branch
      %15 = sbr.rel (0) target = $region5
    $region4: #{tpu_custom_call.1} parent=1 // pred_region
      %17 = vsyncadd [#allocation3], 0
      %s18 = sshll.u32 %s0, 4
      %s19 = int_to_ptr.hbm [resolvable:$true] %s18
      %s20 = sshll.u32 [#allocation2], 4
      %s21 = int_to_ptr.vmem [resolvable:$true] %s20
      %26 = dma.hbm_to_vmem [thread:$0]  %s19, 256, %s21, [#allocation3], 128, 128, 8
    $region5: #{tpu_custom_call.1} parent=1 // pred_fallthru
      _
    // Predicated region
    $region6: #{tpu_custom_call.1} parent=1 // pred_check
      _
    $region7: #{tpu_custom_call.1} parent=1 // pred_check_branch
      %28 = sbr.rel (0) target = $region9
    $region8: #{tpu_custom_call.1} parent=1 // pred_region
      %30 = vsyncadd [#allocation6], 0
      %s31 = sshll.u32 %s1, 4
      %s32 = int_to_ptr.hbm [resolvable:$true] %s31
      %s33 = sshll.u32 [#allocation5], 4
      %s34 = int_to_ptr.vmem [resolvable:$true] %s33
      %39 = dma.hbm_to_vmem [thread:$0]  %s32, 512, %s34, [#allocation6], 128, 128, 8
    $region9: #{tpu_custom_call.1} parent=1 // pred_fallthru
      _
    // Predicated region
    $region10: #{tpu_custom_call.1} parent=1 // pred_check
      _
    $region11: #{tpu_custom_call.1} parent=1 // pred_check_branch
      %41 = sbr.rel (0) target = $region13
    $region12: #{tpu_custom_call.1} parent=1 // pred_region
      %43 = vsyncadd [#allocation6], 0
      %s45 = sshll.u32 %s2, 4
      %s46 = int_to_ptr.hbm [resolvable:$true] %s45
      %s47 = sshll.u32 [#allocation7], 4
      %s48 = int_to_ptr.vmem [resolvable:$true] %s47
      %50 = dma.hbm_to_vmem [thread:$0]  %s46, 32, %s48, [#allocation6]
    $region13: #{tpu_custom_call.1} parent=1 // pred_fallthru
      _
    // Predicated region
    $region14: #{tpu_custom_call.1} parent=1 // pred_check
      _
    $region15: #{tpu_custom_call.1} parent=1 // pred_check_branch
      %52 = sbr.rel (0) target = $region17
    $region16: #{tpu_custom_call.1} parent=1 // pred_region
      %54 = vsyncadd [#allocation9], 0
      %s55 = sshll.u32 %s3, 4
      %s56 = int_to_ptr.hbm [resolvable:$true] %s55
      %s57 = sshll.u32 [#allocation8], 4
      %s58 = int_to_ptr.vmem [resolvable:$true] %s57
      %63 = dma.hbm_to_vmem [thread:$0]  %s56, 640, %s58, [#allocation9], 128, 128, 8
    $region17: #{tpu_custom_call.1} parent=1 // pred_fallthru
      _
    // Predicated region
    $region18: #{tpu_custom_call.1} parent=1 // pred_check
      _
    $region19: #{tpu_custom_call.1} parent=1 // pred_check_branch
      %65 = sbr.rel (0) target = $region21
    $region20: #{tpu_custom_call.1} parent=1 // pred_region
      %67 = vsyncadd [#allocation9], 0
      %s68 = sshll.u32 %s4, 4
      %s69 = int_to_ptr.hbm [resolvable:$true] %s68
      %s70 = sshll.u32 [#allocation10], 4
      %s71 = int_to_ptr.vmem [resolvable:$true] %s70
      %76 = dma.hbm_to_vmem [thread:$0]  %s69, 10240, %s71, [#allocation9], 640, 640, 40
    $region21: #{tpu_custom_call.1} parent=1 // pred_fallthru
      _
    // Predicated region
    $region22: #{tpu_custom_call.1} parent=1 // pred_check
      _
    $region23: #{tpu_custom_call.1} parent=1 // pred_check_branch
      %78 = sbr.rel (0) target = $region25
    $region24: #{tpu_custom_call.1} parent=1 // pred_region
      %80 = dma.done [#allocation3], 256
    $region25: #{tpu_custom_call.1} parent=1 // pred_fallthru
      _
    // Predicated region
    $region26: #{tpu_custom_call.1} parent=1 // pred_check
      _
    $region27: #{tpu_custom_call.1} parent=1 // pred_check_branch
      %82 = sbr.rel (0) target = $region29
    $region28: #{tpu_custom_call.1} parent=1 // pred_region
      %84 = dma.done [#allocation6], 512
    $region29: #{tpu_custom_call.1} parent=1 // pred_fallthru
      _
    // Predicated region
    $region30: #{tpu_custom_call.1} parent=1 // pred_check
      _
    $region31: #{tpu_custom_call.1} parent=1 // pred_check_branch
      %86 = sbr.rel (0) target = $region33
    $region32: #{tpu_custom_call.1} parent=1 // pred_region
      %88 = dma.done [#allocation6], 32
    $region33: #{tpu_custom_call.1} parent=1 // pred_fallthru
      _
    // Predicated region
    $region34: #{tpu_custom_call.1} parent=1 // pred_check
      _
    $region35: #{tpu_custom_call.1} parent=1 // pred_check_branch
      %90 = sbr.rel (0) target = $region37
    $region36: #{tpu_custom_call.1} parent=1 // pred_region
      %92 = dma.done [#allocation9], 640
    $region37: #{tpu_custom_call.1} parent=1 // pred_fallthru
      _
    // Predicated region
    $region38: #{tpu_custom_call.1} parent=1 // pred_check
      _
    $region39: #{tpu_custom_call.1} parent=1 // pred_check_branch
      %94 = sbr.rel (0) target = $region41
    $region40: #{tpu_custom_call.1} parent=1 // pred_region
      %96 = dma.done [#allocation9], 10240
    $region41: #{tpu_custom_call.1} parent=1 // pred_fallthru
      _
    %v97 = vld [vmem:[#allocation8 + $0x20] sm:$0xff]
    %v98 = vld [vmem:[#allocation7] sm:$0x3]
    %v99 = vsub.f32 1.0, %v98
    %v100 = vmul.f32 %v98, -1e+30
    %v101 = vld [vmem:[#allocation2] sm:$0xff]
    %v102 = vld [vmem:[#allocation2 + $0x8] sm:$0xff]
    %v103 = vld [vmem:[#allocation8 + $0x8] sm:$0x1]
    %v104 = vld [vmem:[#allocation8] sm:$0x1]
    %v105 = vld [vmem:[#allocation8 + $0x1] sm:$0x1]
    %106 = vadd.xlane.f32.xlu0 %v101
    %v107 = vpop.xlane.xlu0 %106
    %108 = vadd.xlane.f32.xlu0 %v102
    %v109 = vpop.xlane.xlu0 %108
    %v110 = vrcp.pop 128.0
    %v111 = vmul.f32 128.0, %v110
    %v112 = vsub.f32 1.0, %v111
    %v113 = vmul.f32 %v110, %v112
    %v114 = vadd.f32 %v110, %v113
    %vm115 = vweird.f32 %v110
    %v116 = vsel %vm115, %v110, %v114
    %v117 = vmul.f32 %v107, %v116
    %v118 = vmul.f32 %v109, %v116
    %v119 = vsub.f32 %v101, %v117
    %v120 = vsub.f32 %v102, %v118
    %v121 = vmul.f32 %v119, %v119
    %v122 = vmul.f32 %v120, %v120
    %123 = vadd.xlane.f32.xlu0 %v121
    %v124 = vpop.xlane.xlu0 %123
    %125 = vadd.xlane.f32.xlu0 %v122
    %v126 = vpop.xlane.xlu0 %125
    %v127 = vmul.f32 %v124, %v116
    %v128 = vmul.f32 %v126, %v116
    %v129 = vadd.f32 %v127, 1e-05
    %v130 = vadd.f32 %v128, 1e-05
    %v131 = vrsqrt.pop %v129
    %v132 = vmul.f32 %v131, %v129
    %v133 = vmul.f32 %v132, %v131
    %v134 = vmul.f32 0.5, %v133
    %v135 = vsub.f32 1.5, %v134
    %v136 = vmul.f32 %v131, %v135
    %vm137 = vweird.f32 %v129
    %vm138 = vweird.f32 %v131
    %vm139 = vmor %vm137, %vm138
    %v140 = vsel %vm139, %v131, %v136
    %v141 = vrsqrt.pop %v130
    %v142 = vmul.f32 %v141, %v130
    %v143 = vmul.f32 %v142, %v141
    %v144 = vmul.f32 0.5, %v143
    %v145 = vsub.f32 1.5, %v144
    %v146 = vmul.f32 %v141, %v145
    %vm147 = vweird.f32 %v130
    %vm148 = vweird.f32 %v141
    %vm149 = vmor %vm147, %vm148
    %v150 = vsel %vm149, %v141, %v146
    %v151 = vmul.f32 %v119, %v140
    %v152 = vmul.f32 %v120, %v150
    %v153 = vperm.slane %v104, 0
    %v154 = vmul.f32 %v151, %v153
    %v155 = vmul.f32 %v152, %v153
    %v156 = vperm.slane %v105, 0
    %v157 = vadd.f32 %v154, %v156
    %v158 = vadd.f32 %v155, %v156
    %v159 = vperm.slane %v99, 0
    %v160 = vlaneseq
    %v161 = vshrl.u32 %v160, 7
    %163 = vset.pattern.permute.xlu0 %v161
    %164 = vperm.xlu0 %163, %v159
    %v165 = vpop.permute.xlu0 %164
    %v166 = vperm.slane %v99, 1
    %v167 = vlaneseq
    %v168 = vshrl.u32 %v167, 7
    %170 = vset.pattern.permute.xlu0 %v168
    %171 = vperm.xlu0 %170, %v166
    %v172 = vpop.permute.xlu0 %171
    %v173 = vmul.f32 %v157, %v165
    %v174 = vmul.f32 %v158, %v172
    %v175 = vld [vmem:[#allocation10 + $0x4] sm:$0xff]
    %v176 = vld [vmem:[#allocation10 + $0x2c] sm:$0xff]
    %v177 = vld [vmem:[#allocation10 + $0x54] sm:$0xff]
    %v178 = vld [vmem:[#allocation10 + $0x7c] sm:$0xff]
    %v179 = vld [vmem:[#allocation10 + $0xa4] sm:$0xff]
    %v180 = vld [vmem:[#allocation10 + $0xcc] sm:$0xff]
    %v181 = vld [vmem:[#allocation10 + $0xf4] sm:$0xff]
    %v182 = vld [vmem:[#allocation10 + $0x11c] sm:$0xff]
    %v183 = vld [vmem:[#allocation10 + $0x144] sm:$0xff]
    %v184 = vld [vmem:[#allocation10 + $0x16c] sm:$0xff]
    %v185 = vld [vmem:[#allocation10 + $0x194] sm:$0xff]
    %v186 = vld [vmem:[#allocation10 + $0x1bc] sm:$0xff]
    %v187 = vld [vmem:[#allocation10 + $0x1e4] sm:$0xff]
    %v188 = vld [vmem:[#allocation10 + $0x20c] sm:$0xff]
    %v189 = vld [vmem:[#allocation10 + $0x234] sm:$0xff]
    %v190 = vld [vmem:[#allocation10 + $0x25c] sm:$0xff]
    %v191 = vpack.c.bf16 %v174, %v173
    %v208 = vunpack.c.l.b16 %v175
    %v209 = vunpack.c.h.b16 %v175
    %v210 = vunpack.c.l.b16 %v176
    %v211 = vunpack.c.h.b16 %v176
    %v212 = vunpack.c.l.b16 %v177
    %v213 = vunpack.c.h.b16 %v177
    %v214 = vunpack.c.l.b16 %v178
    %v215 = vunpack.c.h.b16 %v178
    %v216 = vunpack.c.l.b16 %v179
    %v217 = vunpack.c.h.b16 %v179
    %v218 = vunpack.c.l.b16 %v180
    %v219 = vunpack.c.h.b16 %v180
    %v220 = vunpack.c.l.b16 %v181
    %v221 = vunpack.c.h.b16 %v181
    %v222 = vunpack.c.l.b16 %v182
    %v223 = vunpack.c.h.b16 %v182
    %v224 = vunpack.c.l.b16 %v183
    %v225 = vunpack.c.h.b16 %v183
    %v226 = vunpack.c.l.b16 %v184
    %v227 = vunpack.c.h.b16 %v184
    %v228 = vunpack.c.l.b16 %v185
    %v229 = vunpack.c.h.b16 %v185
    %v230 = vunpack.c.l.b16 %v186
    %v231 = vunpack.c.h.b16 %v186
    %v232 = vunpack.c.l.b16 %v187
    %v233 = vunpack.c.h.b16 %v187
    %v234 = vunpack.c.l.b16 %v188
    %v235 = vunpack.c.h.b16 %v188
    %v236 = vunpack.c.l.b16 %v189
    %v237 = vunpack.c.h.b16 %v189
    %v238 = vunpack.c.l.b16 %v190
    %v239 = vunpack.c.h.b16 %v190
    %v240 = vpack.c.b16 %v210, %v208
    %v241 = vpack.c.b16 %v211, %v209
    %v242 = vpack.c.b16 %v214, %v212
    %v243 = vpack.c.b16 %v215, %v213
    %v244 = vpack.c.b16 %v218, %v216
    %v245 = vpack.c.b16 %v219, %v217
    %v246 = vpack.c.b16 %v222, %v220
    %v247 = vpack.c.b16 %v223, %v221
    %v248 = vpack.c.b16 %v226, %v224
    %v249 = vpack.c.b16 %v227, %v225
    %v250 = vpack.c.b16 %v230, %v228
    %v251 = vpack.c.b16 %v231, %v229
    %v252 = vpack.c.b16 %v234, %v232
    %v253 = vpack.c.b16 %v235, %v233
    %v254 = vpack.c.b16 %v238, %v236
    %v255 = vpack.c.b16 %v239, %v237
    %272 = vmatpush.bf16.msra.mxu0 %v254
    %273 = vmatpush.bf16.msra.mxu0 %v252
    %274 = vmatpush.bf16.msra.mxu0 %v250
    %275 = vmatpush.bf16.msra.mxu0 %v248
    %276 = vmatpush.bf16.msra.mxu0 %v246
    %277 = vmatpush.bf16.msra.mxu0 %v244
    %278 = vmatpush.bf16.msra.mxu0 %v242
    %279 = vmatpush.bf16.msra.mxu0 %v240
    %280 = vmatmul.bf16.gmra.mxu0 %v191
    %v281 = vpop.f32.mrf.mxu0
    %v282 = vadd.f32 0.0, %v281
    %v283 = vpop.f32.mrf.mxu0
    %v284 = vadd.f32 0.0, %v283
    %285 = vdwg.mxu0
    %286 = vmatpush.bf16.msra.mxu0 %v255
    %287 = vmatpush.bf16.msra.mxu0 %v253
    %288 = vmatpush.bf16.msra.mxu0 %v251
    %289 = vmatpush.bf16.msra.mxu0 %v249
    %290 = vmatpush.bf16.msra.mxu0 %v247
    %291 = vmatpush.bf16.msra.mxu0 %v245
    %292 = vmatpush.bf16.msra.mxu0 %v243
    %293 = vmatpush.bf16.msra.mxu0 %v241
    %294 = vmatmul.bf16.gmra.mxu0 %v191
    %v295 = vpop.f32.mrf.mxu0
    %v296 = vadd.f32 0.0, %v295
    %v297 = vpop.f32.mrf.mxu0
    %v298 = vadd.f32 0.0, %v297
    %299 = vdwg.mxu0
    %v300 = vld [vmem:[#allocation8 + $0x11] sm:$0x1]
    %v301 = vperm.slane %v300, 0
    %v302 = vadd.f32 %v282, %v301
    %v303 = vadd.f32 %v284, %v301
    %v304 = vld [vmem:[#allocation8 + $0x12] sm:$0x1]
    %v305 = vperm.slane %v304, 0
    %v306 = vadd.f32 %v296, %v305
    %v307 = vadd.f32 %v298, %v305
    %vm308 = vcmask 1040384
    %v309 = vsel %vm308, %v103, 0.0
    %310 = vadd.xlane.f32.xlu0 %v309
    %v311 = vpop.xlane.xlu0 %310
    %v312 = vmul.f32 %v311, %v116
    %v313 = vsub.f32 %v103, %v312
    %v314 = vmul.f32 %v313, %v313
    %v315 = vsel %vm308, %v314, 0.0
    %316 = vadd.xlane.f32.xlu0 %v315
    %v317 = vpop.xlane.xlu0 %316
    %v318 = vmul.f32 %v317, %v116
    %v319 = vadd.f32 %v318, 1e-05
    %v320 = vrsqrt.pop %v319
    %v321 = vmul.f32 %v320, %v319
    %v322 = vmul.f32 %v321, %v320
    %v323 = vmul.f32 0.5, %v322
    %v324 = vsub.f32 1.5, %v323
    %v325 = vmul.f32 %v320, %v324
    %vm326 = vweird.f32 %v319
    %vm327 = vweird.f32 %v320
    %vm328 = vmor %vm326, %vm327
    %v329 = vsel %vm328, %v320, %v325
    %v330 = vmul.f32 %v313, %v329
    %v331 = vmul.f32 %v330, %v104
    %v332 = vadd.f32 %v331, %v105
    %v333 = vld [vmem:[#allocation10] sm:$0xff]
    %v334 = vld [vmem:[#allocation10 + $0x8] sm:$0xf]
    %v335 = vld [vmem:[#allocation10 + $0x28] sm:$0xff]
    %v336 = vld [vmem:[#allocation10 + $0x30] sm:$0xf]
    %v337 = vld [vmem:[#allocation10 + $0x50] sm:$0xff]
    %v338 = vld [vmem:[#allocation10 + $0x58] sm:$0xf]
    %v339 = vld [vmem:[#allocation10 + $0x78] sm:$0xff]
    %v340 = vld [vmem:[#allocation10 + $0x80] sm:$0xf]
    %v341 = vld [vmem:[#allocation10 + $0xa0] sm:$0xff]
    %v342 = vld [vmem:[#allocation10 + $0xa8] sm:$0xf]
    %v343 = vld [vmem:[#allocation10 + $0xc8] sm:$0xff]
    %v344 = vld [vmem:[#allocation10 + $0xd0] sm:$0xf]
    %v345 = vld [vmem:[#allocation10 + $0xf0] sm:$0xff]
    %v346 = vld [vmem:[#allocation10 + $0xf8] sm:$0xf]
    %v347 = vld [vmem:[#allocation10 + $0x118] sm:$0xff]
    %v348 = vld [vmem:[#allocation10 + $0x120] sm:$0xf]
    %v349 = vld [vmem:[#allocation10 + $0x140] sm:$0xff]
    %v350 = vld [vmem:[#allocation10 + $0x148] sm:$0xf]
    %v351 = vld [vmem:[#allocation10 + $0x168] sm:$0xff]
    %v352 = vld [vmem:[#allocation10 + $0x170] sm:$0xf]
    %v353 = vld [vmem:[#allocation10 + $0x190] sm:$0xff]
    %v354 = vld [vmem:[#allocation10 + $0x198] sm:$0xf]
    %v355 = vld [vmem:[#allocation10 + $0x1b8] sm:$0xff]
    %v356 = vld [vmem:[#allocation10 + $0x1c0] sm:$0xf]
    %v357 = vld [vmem:[#allocation10 + $0x1e0] sm:$0xff]
    %v358 = vld [vmem:[#allocation10 + $0x1e8] sm:$0xf]
    %v359 = vld [vmem:[#allocation10 + $0x208] sm:$0xff]
    %v360 = vld [vmem:[#allocation10 + $0x210] sm:$0xf]
    %v361 = vld [vmem:[#allocation10 + $0x230] sm:$0xff]
    %v362 = vld [vmem:[#allocation10 + $0x238] sm:$0xf]
    %v363 = vld [vmem:[#allocation10 + $0x258] sm:$0xff]
    %v364 = vld [vmem:[#allocation10 + $0x260] sm:$0xf]
    %v365 = vpack.c.bf16 %v332, %v332
    %v398 = vunpack.c.l.b16 %v333
    %v399 = vunpack.c.h.b16 %v333
    %v400 = vunpack.c.l.b16 %v334
    %v401 = vunpack.c.l.b16 %v335
    %v402 = vunpack.c.h.b16 %v335
    %v403 = vunpack.c.l.b16 %v336
    %v404 = vunpack.c.l.b16 %v337
    %v405 = vunpack.c.h.b16 %v337
    %v406 = vunpack.c.l.b16 %v338
    %v407 = vunpack.c.l.b16 %v339
    %v408 = vunpack.c.h.b16 %v339
    %v409 = vunpack.c.l.b16 %v340
    %v410 = vunpack.c.l.b16 %v341
    %v411 = vunpack.c.h.b16 %v341
    %v412 = vunpack.c.l.b16 %v342
    %v413 = vunpack.c.l.b16 %v343
    %v414 = vunpack.c.h.b16 %v343
    %v415 = vunpack.c.l.b16 %v344
    %v416 = vunpack.c.l.b16 %v345
    %v417 = vunpack.c.h.b16 %v345
    %v418 = vunpack.c.l.b16 %v346
    %v419 = vunpack.c.l.b16 %v347
    %v420 = vunpack.c.h.b16 %v347
    %v421 = vunpack.c.l.b16 %v348
    %v422 = vunpack.c.l.b16 %v349
    %v423 = vunpack.c.h.b16 %v349
    %v424 = vunpack.c.l.b16 %v350
    %v425 = vunpack.c.l.b16 %v351
    %v426 = vunpack.c.h.b16 %v351
    %v427 = vunpack.c.l.b16 %v352
    %v428 = vunpack.c.l.b16 %v353
    %v429 = vunpack.c.h.b16 %v353
    %v430 = vunpack.c.l.b16 %v354
    %v431 = vunpack.c.l.b16 %v355
    %v432 = vunpack.c.h.b16 %v355
    %v433 = vunpack.c.l.b16 %v356
    %v434 = vunpack.c.l.b16 %v357
    %v435 = vunpack.c.h.b16 %v357
    %v436 = vunpack.c.l.b16 %v358
    %v437 = vunpack.c.l.b16 %v359
    %v438 = vunpack.c.h.b16 %v359
    %v439 = vunpack.c.l.b16 %v360
    %v440 = vunpack.c.l.b16 %v361
    %v441 = vunpack.c.h.b16 %v361
    %v442 = vunpack.c.l.b16 %v362
    %v443 = vunpack.c.l.b16 %v363
    %v444 = vunpack.c.h.b16 %v363
    %v445 = vunpack.c.l.b16 %v364
    %v446 = vpack.c.b16 %v401, %v398
    %v447 = vpack.c.b16 %v402, %v399
    %v448 = vpack.c.b16 %v403, %v400
    %v449 = vpack.c.b16 %v407, %v404
    %v450 = vpack.c.b16 %v408, %v405
    %v451 = vpack.c.b16 %v409, %v406
    %v452 = vpack.c.b16 %v413, %v410
    %v453 = vpack.c.b16 %v414, %v411
    %v454 = vpack.c.b16 %v415, %v412
    %v455 = vpack.c.b16 %v419, %v416
    %v456 = vpack.c.b16 %v420, %v417
    %v457 = vpack.c.b16 %v421, %v418
    %v458 = vpack.c.b16 %v425, %v422
    %v459 = vpack.c.b16 %v426, %v423
    %v460 = vpack.c.b16 %v427, %v424
    %v461 = vpack.c.b16 %v431, %v428
    %v462 = vpack.c.b16 %v432, %v429
    %v463 = vpack.c.b16 %v433, %v430
    %v464 = vpack.c.b16 %v437, %v434
    %v465 = vpack.c.b16 %v438, %v435
    %v466 = vpack.c.b16 %v439, %v436
    %v467 = vpack.c.b16 %v443, %v440
    %v468 = vpack.c.b16 %v444, %v441
    %v469 = vpack.c.b16 %v445, %v442
    %494 = vmatpush.bf16.msra.mxu0 %v467
    %495 = vmatpush.bf16.msra.mxu0 %v464
    %496 = vmatpush.bf16.msra.mxu0 %v461
    %497 = vmatpush.bf16.msra.mxu0 %v458
    %498 = vmatpush.bf16.msra.mxu0 %v455
    %499 = vmatpush.bf16.msra.mxu0 %v452
    %500 = vmatpush.bf16.msra.mxu0 %v449
    %501 = vmatpush.bf16.msra.mxu0 %v446
    %502 = vmatmul.bf16.gmra.mxu0 %v365
    %v503 = vpop.f32.mrf.mxu0
    %v504 = vadd.f32 0.0, %v503
    %v505 = vpop.f32.mrf.mxu0
    %506 = vdwg.mxu0
    %507 = vmatpush.bf16.msra.mxu0 %v468
    %508 = vmatpush.bf16.msra.mxu0 %v465
    %509 = vmatpush.bf16.msra.mxu0 %v462
    %510 = vmatpush.bf16.msra.mxu0 %v459
    %511 = vmatpush.bf16.msra.mxu0 %v456
    %512 = vmatpush.bf16.msra.mxu0 %v453
    %513 = vmatpush.bf16.msra.mxu0 %v450
    %514 = vmatpush.bf16.msra.mxu0 %v447
    %515 = vmatmul.bf16.gmra.mxu0 %v365
    %v516 = vpop.f32.mrf.mxu0
    %v517 = vadd.f32 0.0, %v516
    %v518 = vpop.f32.mrf.mxu0
    %519 = vdwg.mxu0
    %520 = vmatpush.bf16.msra.mxu0 %v469
    %521 = vmatpush.bf16.msra.mxu0 %v466
    %522 = vmatpush.bf16.msra.mxu0 %v463
    %523 = vmatpush.bf16.msra.mxu0 %v460
    %524 = vmatpush.bf16.msra.mxu0 %v457
    %525 = vmatpush.bf16.msra.mxu0 %v454
    %526 = vmatpush.bf16.msra.mxu0 %v451
    %527 = vmatpush.bf16.msra.mxu0 %v448
    %528 = vmatmul.bf16.gmra.mxu0 %v365
    %v529 = vpop.f32.mrf.mxu0
    %v530 = vadd.f32 0.0, %v529
    %v531 = vpop.f32.mrf.mxu0
    %532 = vdwg.mxu0
    %v533 = vld [vmem:[#allocation8 + $0x10] sm:$0x1]
    %v534 = vadd.f32 %v504, %v533
    %v535 = vmul.f32 %v534, 0.25
    %v536 = vadd.f32 %v517, %v300
    %v537 = vadd.f32 %v530, %v304
    %v538 = vperm.slane %v535, 0
    %v539 = vmul.f32 %v302, %v538
    %v540 = vmul.f32 %v303, %v538
    %541 = vmatpush.xpose.msra.mxu0 0.0
    %542 = vmatpush.xpose.msra.mxu0 0.0
    %543 = vmatpush.xpose.msra.mxu0 0.0
    %544 = vmatpush.xpose.msra.mxu0 0.0
    %545 = vmatpush.xpose.msra.mxu0 0.0
    %546 = vmatpush.xpose.msra.mxu0 0.0
    %547 = vmatpush.xpose.msra.mxu0 0.0
    %548 = vmatpush.xpose.msra.mxu0 0.0
    %549 = vmatpush.xpose.msra.mxu0 0.0
    %550 = vmatpush.xpose.msra.mxu0 0.0
    %551 = vmatpush.xpose.msra.mxu0 0.0
    %552 = vmatpush.xpose.msra.mxu0 0.0
    %553 = vmatpush.xpose.msra.mxu0 0.0
    %554 = vmatpush.xpose.msra.mxu0 0.0
    %555 = vmatpush.xpose.msra.mxu0 0.0
    %556 = vmatpush.xpose.msra.mxu0 %v97
    %557 = vmatmul.f32.gmra.mxu0 %v539
    %v558 = vpop.f32.mrf.mxu0
    %v559 = vadd.f32 0.0, %v558
    %560 = vmatmul.f32.gmra.mxu0 %v540
    %v561 = vpop.f32.mrf.mxu0
    %v562 = vadd.f32 0.0, %v561
    %563 = vdwg.mxu0
    %v564 = vperm.slane %v100, 0
    %v565 = vlaneseq
    %v566 = vshrl.u32 %v565, 7
    %568 = vset.pattern.permute.xlu0 %v566
    %569 = vperm.xlu0 %568, %v564
    %v570 = vpop.permute.xlu0 %569
    %v571 = vperm.slane %v100, 1
    %v572 = vlaneseq
    %v573 = vshrl.u32 %v572, 7
    %575 = vset.pattern.permute.xlu0 %v573
    %576 = vperm.xlu0 %575, %v571
    %v577 = vpop.permute.xlu0 %576
    %v578 = vadd.f32 %v559, %v570
    %v579 = vadd.f32 %v562, %v577
    %v580 = vmul.f32 %v536, %v535
    %581 = vmatpush.xpose.msra.mxu0 0.0
    %582 = vmatpush.xpose.msra.mxu0 0.0
    %583 = vmatpush.xpose.msra.mxu0 0.0
    %584 = vmatpush.xpose.msra.mxu0 0.0
    %585 = vmatpush.xpose.msra.mxu0 0.0
    %586 = vmatpush.xpose.msra.mxu0 0.0
    %587 = vmatpush.xpose.msra.mxu0 0.0
    %588 = vmatpush.xpose.msra.mxu0 0.0
    %589 = vmatpush.xpose.msra.mxu0 0.0
    %590 = vmatpush.xpose.msra.mxu0 0.0
    %591 = vmatpush.xpose.msra.mxu0 0.0
    %592 = vmatpush.xpose.msra.mxu0 0.0
    %593 = vmatpush.xpose.msra.mxu0 0.0
    %594 = vmatpush.xpose.msra.mxu0 0.0
    %595 = vmatpush.xpose.msra.mxu0 0.0
    %596 = vmatpush.xpose.msra.mxu0 %v97
    %597 = vmatmul.f32.gmra.mxu0 %v580
    %v598 = vpop.f32.mrf.mxu0
    %v599 = vadd.f32 0.0, %v598
    %600 = vdwg.mxu0
    %vm601 = vcmask 64512
    %v602 = vsel %vm601, %v578, -inf
    %v603 = vrot.slane %v602, 4
    %v604 = vmax.f32 %v602, %v603
    %v605 = vrot.slane %v604, 2
    %v606 = vmax.f32 %v604, %v605
    %v607 = vrot.slane %v606, 1
    %v608 = vmax.f32 %v606, %v607
    %v609 = vsel %vm601, %v579, -inf
    %v610 = vrot.slane %v609, 4
    %v611 = vmax.f32 %v609, %v610
    %v612 = vrot.slane %v611, 2
    %v613 = vmax.f32 %v611, %v612
    %v614 = vrot.slane %v613, 1
    %v615 = vmax.f32 %v613, %v614
    %v616 = vperm.slane %v599, 0
    %v617 = vmax.f32 %v608, %v616
    %v618 = vmax.f32 %v615, %v616
    %v619 = vperm.slane %v617, 0
    %v620 = vperm.slane %v618, 0
    %v621 = vsub.f32 %v578, %v619
    %v622 = vsub.f32 %v579, %v620
    %v623 = vmul.f32 %v621, 1.442695
    %v624 = vpow.pop %v623
    %v625 = vmul.f32 %v622, 1.442695
    %v626 = vpow.pop %v625
    %v629 = vrot.slane %v618, 7
    %vm630 = vcmask 1041409
    %v631 = vsel %vm630, %v629, %v617
    %v633 = vsub.f32 %v616, %v631
    %v634 = vmul.f32 %v633, 1.442695
    %v635 = vpow.pop %v634
    %v636 = vsel %vm601, %v624, 0.0
    %v637 = vrot.slane %v636, 4
    %v638 = vadd.f32 %v636, %v637
    %v639 = vrot.slane %v638, 2
    %v640 = vadd.f32 %v638, %v639
    %v641 = vrot.slane %v640, 1
    %v642 = vadd.f32 %v640, %v641
    %v643 = vsel %vm601, %v626, 0.0
    %v644 = vrot.slane %v643, 4
    %v645 = vadd.f32 %v643, %v644
    %v646 = vrot.slane %v645, 2
    %v647 = vadd.f32 %v645, %v646
    %v648 = vrot.slane %v647, 1
    %v649 = vadd.f32 %v647, %v648
    %v651 = vrot.slane %v635, 1
    %v654 = vadd.f32 %v642, %v635
    %v655 = vadd.f32 %v649, %v651
    %v656 = vrcp.pop %v654
    %v657 = vrcp.pop %v655
    %v658 = vperm.slane %v635, 0
    %v659 = vlaneseq
    %v660 = vshrl.u32 %v659, 7
    %662 = vset.pattern.permute.xlu0 %v660
    %663 = vperm.xlu0 %662, %v658
    %v664 = vpop.permute.xlu0 %663
    %v665 = vperm.slane %v635, 1
    %v666 = vlaneseq
    %v667 = vshrl.u32 %v666, 7
    %669 = vset.pattern.permute.xlu0 %v667
    %670 = vperm.xlu0 %669, %v665
    %v671 = vpop.permute.xlu0 %670
    %v672 = vperm.slane %v537, 0
    %v673 = vmul.f32 %v664, %v672
    %v674 = vmul.f32 %v671, %v672
    %675 = vxpose.xlu0.b32.start [1/16] %v624, 128
    %676 = vxpose.xlu0.b32.cont [2/16] 0.0, 128
    %677 = vxpose.xlu0.b32.cont [3/16] 0.0, 128
    %678 = vxpose.xlu0.b32.cont [4/16] 0.0, 128
    %679 = vxpose.xlu0.b32.cont [5/16] 0.0, 128
    %680 = vxpose.xlu0.b32.cont [6/16] 0.0, 128
    %681 = vxpose.xlu0.b32.cont [7/16] 0.0, 128
    %682 = vxpose.xlu0.b32.cont [8/16] 0.0, 128
    %683 = vxpose.xlu0.b32.cont [9/16] 0.0, 128
    %684 = vxpose.xlu0.b32.cont [10/16] 0.0, 128
    %685 = vxpose.xlu0.b32.cont [11/16] 0.0, 128
    %686 = vxpose.xlu0.b32.cont [12/16] 0.0, 128
    %687 = vxpose.xlu0.b32.cont [13/16] 0.0, 128
    %688 = vxpose.xlu0.b32.cont [14/16] 0.0, 128
    %689 = vxpose.xlu0.b32.cont [15/16] 0.0, 128
    %690 = vxpose.xlu0.b32.end [16/16] 0.0, 128
    %v691 = vpop.trf.xlu0
    %v692 = vpop.trf.xlu0
    %v693 = vpop.trf.xlu0
    %v694 = vpop.trf.xlu0
    %v695 = vpop.trf.xlu0
    %v696 = vpop.trf.xlu0
    %v697 = vpop.trf.xlu0
    %v698 = vpop.trf.xlu0
    %v699 = vpop.trf.xlu0
    %v700 = vpop.trf.xlu0
    %v701 = vpop.trf.xlu0
    %v702 = vpop.trf.xlu0
    %v703 = vpop.trf.xlu0
    %v704 = vpop.trf.xlu0
    %v705 = vpop.trf.xlu0
    %v706 = vpop.trf.xlu0
    %v708 = vsel %vm601, %v691, 0
    %710 = vmatpush.msra.mxu0 0.0
    %711 = vmatpush.msra.mxu0 0.0
    %712 = vmatpush.msra.mxu0 0.0
    %713 = vmatpush.msra.mxu0 0.0
    %714 = vmatpush.msra.mxu0 0.0
    %715 = vmatpush.msra.mxu0 0.0
    %716 = vmatpush.msra.mxu0 0.0
    %717 = vmatpush.msra.mxu0 0.0
    %718 = vmatpush.msra.mxu0 0.0
    %719 = vmatpush.msra.mxu0 0.0
    %720 = vmatpush.msra.mxu0 0.0
    %721 = vmatpush.msra.mxu0 0.0
    %722 = vmatpush.msra.mxu0 0.0
    %723 = vmatpush.msra.mxu0 0.0
    %724 = vmatpush.msra.mxu0 0.0
    %725 = vmatpush.msra.mxu0 %v306
    %726 = vmatmul.f32.gmra.mxu0 %v708
    %v727 = vpop.f32.mrf.mxu0
    %v728 = vadd.f32 %v673, %v727
    %729 = vdwg.mxu0
    %730 = vxpose.xlu0.b32.start [1/16] %v626, 128
    %731 = vxpose.xlu0.b32.cont [2/16] 0.0, 128
    %732 = vxpose.xlu0.b32.cont [3/16] 0.0, 128
    %733 = vxpose.xlu0.b32.cont [4/16] 0.0, 128
    %734 = vxpose.xlu0.b32.cont [5/16] 0.0, 128
    %735 = vxpose.xlu0.b32.cont [6/16] 0.0, 128
    %736 = vxpose.xlu0.b32.cont [7/16] 0.0, 128
    %737 = vxpose.xlu0.b32.cont [8/16] 0.0, 128
    %738 = vxpose.xlu0.b32.cont [9/16] 0.0, 128
    %739 = vxpose.xlu0.b32.cont [10/16] 0.0, 128
    %740 = vxpose.xlu0.b32.cont [11/16] 0.0, 128
    %741 = vxpose.xlu0.b32.cont [12/16] 0.0, 128
    %742 = vxpose.xlu0.b32.cont [13/16] 0.0, 128
    %743 = vxpose.xlu0.b32.cont [14/16] 0.0, 128
    %744 = vxpose.xlu0.b32.cont [15/16] 0.0, 128
    %745 = vxpose.xlu0.b32.end [16/16] 0.0, 128
    %v746 = vpop.trf.xlu0
    %v747 = vpop.trf.xlu0
    %v748 = vpop.trf.xlu0
    %v749 = vpop.trf.xlu0
    %v750 = vpop.trf.xlu0
    %v751 = vpop.trf.xlu0
    %v752 = vpop.trf.xlu0
    %v753 = vpop.trf.xlu0
    %v754 = vpop.trf.xlu0
    %v755 = vpop.trf.xlu0
    %v756 = vpop.trf.xlu0
    %v757 = vpop.trf.xlu0
    %v758 = vpop.trf.xlu0
    %v759 = vpop.trf.xlu0
    %v760 = vpop.trf.xlu0
    %v761 = vpop.trf.xlu0
    %v763 = vsel %vm601, %v746, 0
    %765 = vmatpush.msra.mxu0 0.0
    %766 = vmatpush.msra.mxu0 0.0
    %767 = vmatpush.msra.mxu0 0.0
    %768 = vmatpush.msra.mxu0 0.0
    %769 = vmatpush.msra.mxu0 0.0
    %770 = vmatpush.msra.mxu0 0.0
    %771 = vmatpush.msra.mxu0 0.0
    %772 = vmatpush.msra.mxu0 0.0
    %773 = vmatpush.msra.mxu0 0.0
    %774 = vmatpush.msra.mxu0 0.0
    %775 = vmatpush.msra.mxu0 0.0
    %776 = vmatpush.msra.mxu0 0.0
    %777 = vmatpush.msra.mxu0 0.0
    %778 = vmatpush.msra.mxu0 0.0
    %779 = vmatpush.msra.mxu0 0.0
    %780 = vmatpush.msra.mxu0 %v307
    %781 = vmatmul.f32.gmra.mxu0 %v763
    %v782 = vpop.f32.mrf.mxu0
    %v783 = vadd.f32 %v674, %v782
    %784 = vdwg.mxu0
    %v785 = vperm.slane %v656, 0
    %v786 = vlaneseq
    %v787 = vshrl.u32 %v786, 7
    %789 = vset.pattern.permute.xlu0 %v787
    %790 = vperm.xlu0 %789, %v785
    %v791 = vpop.permute.xlu0 %790
    %v792 = vperm.slane %v657, 0
    %v793 = vlaneseq
    %v794 = vshrl.u32 %v793, 7
    %796 = vset.pattern.permute.xlu0 %v794
    %797 = vperm.xlu0 %796, %v792
    %v798 = vpop.permute.xlu0 %797
    %v799 = vmul.f32 %v728, %v791
    %v800 = vmul.f32 %v783, %v798
    %v801 = vmul.f32 %v799, %v97
    %v802 = vmul.f32 %v800, %v97
    %v803 = vrot.slane %v801, 4
    %v804 = vadd.f32 %v801, %v803
    %v805 = vrot.slane %v804, 2
    %v806 = vadd.f32 %v804, %v805
    %v807 = vrot.slane %v806, 1
    %v808 = vadd.f32 %v806, %v807
    %v809 = vrot.slane %v802, 4
    %v810 = vadd.f32 %v802, %v809
    %v811 = vrot.slane %v810, 2
    %v812 = vadd.f32 %v810, %v811
    %v813 = vrot.slane %v812, 1
    %v814 = vadd.f32 %v812, %v813
    %v815 = vld [vmem:[#allocation10 + $0xc] sm:$0xf]
    %v816 = vld [vmem:[#allocation10 + $0x34] sm:$0xf]
    %v817 = vld [vmem:[#allocation10 + $0x5c] sm:$0xf]
    %v818 = vld [vmem:[#allocation10 + $0x84] sm:$0xf]
    %v819 = vld [vmem:[#allocation10 + $0xac] sm:$0xf]
    %v820 = vld [vmem:[#allocation10 + $0xd4] sm:$0xf]
    %v821 = vld [vmem:[#allocation10 + $0xfc] sm:$0xf]
    %v822 = vld [vmem:[#allocation10 + $0x124] sm:$0xf]
    %v823 = vld [vmem:[#allocation10 + $0x14c] sm:$0xf]
    %v824 = vld [vmem:[#allocation10 + $0x174] sm:$0xf]
    %v825 = vld [vmem:[#allocation10 + $0x19c] sm:$0xf]
    %v826 = vld [vmem:[#allocation10 + $0x1c4] sm:$0xf]
    %v827 = vld [vmem:[#allocation10 + $0x1ec] sm:$0xf]
    %v828 = vld [vmem:[#allocation10 + $0x214] sm:$0xf]
    %v829 = vld [vmem:[#allocation10 + $0x23c] sm:$0xf]
    %v830 = vld [vmem:[#allocation10 + $0x264] sm:$0xf]
    %v831 = vpack.c.bf16 %v808, %v808
    %v832 = vpack.c.bf16 %v814, %v814
    %v835 = vunpack.c.l.b16 %v831
    %v836 = vunpack.c.l.b16 %v832
    %v837 = vsel %vm630, %v836, %v835
    %v838 = vpack.c.b16 %v837, %v837
    %v856 = vunpack.c.l.b16 %v815
    %v857 = vunpack.c.l.b16 %v816
    %v858 = vunpack.c.l.b16 %v817
    %v859 = vunpack.c.l.b16 %v818
    %v860 = vunpack.c.l.b16 %v819
    %v861 = vunpack.c.l.b16 %v820
    %v862 = vunpack.c.l.b16 %v821
    %v863 = vunpack.c.l.b16 %v822
    %v864 = vunpack.c.l.b16 %v823
    %v865 = vunpack.c.l.b16 %v824
    %v866 = vunpack.c.l.b16 %v825
    %v867 = vunpack.c.l.b16 %v826
    %v868 = vunpack.c.l.b16 %v827
    %v869 = vunpack.c.l.b16 %v828
    %v870 = vunpack.c.l.b16 %v829
    %v871 = vunpack.c.l.b16 %v830
    %v872 = vpack.c.b16 %v857, %v856
    %v873 = vpack.c.b16 %v859, %v858
    %v874 = vpack.c.b16 %v861, %v860
    %v875 = vpack.c.b16 %v863, %v862
    %v876 = vpack.c.b16 %v865, %v864
    %v877 = vpack.c.b16 %v867, %v866
    %v878 = vpack.c.b16 %v869, %v868
    %v879 = vpack.c.b16 %v871, %v870
    %888 = vmatpush.bf16.msra.mxu0 %v879
    %889 = vmatpush.bf16.msra.mxu0 %v878
    %890 = vmatpush.bf16.msra.mxu0 %v877
    %891 = vmatpush.bf16.msra.mxu0 %v876
    %892 = vmatpush.bf16.msra.mxu0 %v875
    %893 = vmatpush.bf16.msra.mxu0 %v874
    %894 = vmatpush.bf16.msra.mxu0 %v873
    %895 = vmatpush.bf16.msra.mxu0 %v872
    %896 = vmatmul.bf16.gmra.mxu0 %v838
    %v897 = vpop.f32.mrf.mxu0
    %v898 = vadd.f32 0.0, %v897
    %v899 = vpop.f32.mrf.mxu0
    %900 = vdwg.mxu0
    %v901 = vperm.slane %v103, 0
    %v902 = vadd.f32 %v901, %v898
    %v903 = vld [vmem:[#allocation8 + $0x13] sm:$0x1]
    %v904 = vperm.slane %v903, 0
    %v905 = vadd.f32 %v902, %v904
    %v906 = vld [vmem:[#allocation8 + $0x2] sm:$0x1]
    %v907 = vld [vmem:[#allocation8 + $0x3] sm:$0x1]
    %vm908 = vcmask 1041408
    %v909 = vsel %vm908, %v905, 0.0
    %910 = vadd.xlane.f32.xlu0 %v909
    %v911 = vpop.xlane.xlu0 %910
    %v912 = vmul.f32 %v911, %v116
    %v913 = vsub.f32 %v905, %v912
    %v914 = vmul.f32 %v913, %v913
    %v915 = vsel %vm908, %v914, 0.0
    %916 = vadd.xlane.f32.xlu0 %v915
    %v917 = vpop.xlane.xlu0 %916
    %v918 = vmul.f32 %v917, %v116
    %v919 = vadd.f32 %v918, 1e-05
    %v920 = vrsqrt.pop %v919
    %v921 = vmul.f32 %v920, %v919
    %v922 = vmul.f32 %v921, %v920
    %v923 = vmul.f32 0.5, %v922
    %v924 = vsub.f32 1.5, %v923
    %v925 = vmul.f32 %v920, %v924
    %vm926 = vweird.f32 %v919
    %vm927 = vweird.f32 %v920
    %vm928 = vmor %vm926, %vm927
    %v929 = vsel %vm928, %v920, %v925
    %v930 = vmul.f32 %v913, %v929
    %v931 = vperm.slane %v906, 0
    %v932 = vmul.f32 %v930, %v931
    %v933 = vperm.slane %v907, 0
    %v934 = vadd.f32 %v932, %v933
    %v935 = vld [vmem:[#allocation10 + $0x10] sm:$0xf]
    %v936 = vld [vmem:[#allocation10 + $0x38] sm:$0xf]
    %v937 = vld [vmem:[#allocation10 + $0x60] sm:$0xf]
    %v938 = vld [vmem:[#allocation10 + $0x88] sm:$0xf]
    %v939 = vld [vmem:[#allocation10 + $0xb0] sm:$0xf]
    %v940 = vld [vmem:[#allocation10 + $0xd8] sm:$0xf]
    %v941 = vld [vmem:[#allocation10 + $0x100] sm:$0xf]
    %v942 = vld [vmem:[#allocation10 + $0x128] sm:$0xf]
    %v943 = vld [vmem:[#allocation10 + $0x150] sm:$0xf]
    %v944 = vld [vmem:[#allocation10 + $0x178] sm:$0xf]
    %v945 = vld [vmem:[#allocation10 + $0x1a0] sm:$0xf]
    %v946 = vld [vmem:[#allocation10 + $0x1c8] sm:$0xf]
    %v947 = vld [vmem:[#allocation10 + $0x1f0] sm:$0xf]
    %v948 = vld [vmem:[#allocation10 + $0x218] sm:$0xf]
    %v949 = vld [vmem:[#allocation10 + $0x240] sm:$0xf]
    %v950 = vld [vmem:[#allocation10 + $0x268] sm:$0xf]
    %v951 = vpack.c.bf16 %v934, %v934
    %v952 = vld [vmem:[#allocation8 + $0x14] sm:$0x1]
    %v953 = vperm.slane %v952, 0
    %v970 = vunpack.c.l.b16 %v935
    %v971 = vunpack.c.l.b16 %v936
    %v972 = vunpack.c.l.b16 %v937
    %v973 = vunpack.c.l.b16 %v938
    %v974 = vunpack.c.l.b16 %v939
    %v975 = vunpack.c.l.b16 %v940
    %v976 = vunpack.c.l.b16 %v941
    %v977 = vunpack.c.l.b16 %v942
    %v978 = vunpack.c.l.b16 %v943
    %v979 = vunpack.c.l.b16 %v944
    %v980 = vunpack.c.l.b16 %v945
    %v981 = vunpack.c.l.b16 %v946
    %v982 = vunpack.c.l.b16 %v947
    %v983 = vunpack.c.l.b16 %v948
    %v984 = vunpack.c.l.b16 %v949
    %v985 = vunpack.c.l.b16 %v950
    %v986 = vpack.c.b16 %v971, %v970
    %v987 = vpack.c.b16 %v973, %v972
    %v988 = vpack.c.b16 %v975, %v974
    %v989 = vpack.c.b16 %v977, %v976
    %v990 = vpack.c.b16 %v979, %v978
    %v991 = vpack.c.b16 %v981, %v980
    %v992 = vpack.c.b16 %v983, %v982
    %v993 = vpack.c.b16 %v985, %v984
    %1002 = vmatpush.bf16.msra.mxu0 %v993
    %1003 = vmatpush.bf16.msra.mxu0 %v992
    %1004 = vmatpush.bf16.msra.mxu0 %v991
    %1005 = vmatpush.bf16.msra.mxu0 %v990
    %1006 = vmatpush.bf16.msra.mxu0 %v989
    %1007 = vmatpush.bf16.msra.mxu0 %v988
    %1008 = vmatpush.bf16.msra.mxu0 %v987
    %1009 = vmatpush.bf16.msra.mxu0 %v986
    %1010 = vmatmul.bf16.gmra.mxu0 %v951
    %v1011 = vpop.f32.mrf.mxu0
    %v1012 = vadd.f32 %v953, %v1011
    %v1013 = vpop.f32.mrf.mxu0
    %1014 = vdwg.mxu0
    %v1015 = vmul.f32 %v1012, 0.25
    %v1016 = vld [vmem:[#allocation5] sm:$0xff]
    %v1017 = vld [vmem:[#allocation5 + $0x8] sm:$0xff]
    %v1018 = vld [vmem:[#allocation5 + $0x10] sm:$0xff]
    %v1019 = vld [vmem:[#allocation5 + $0x18] sm:$0xff]
    %v1020 = vld [vmem:[#allocation10 + $0x14] sm:$0xff]
    %v1021 = vld [vmem:[#allocation10 + $0x3c] sm:$0xff]
    %v1022 = vld [vmem:[#allocation10 + $0x64] sm:$0xff]
    %v1023 = vld [vmem:[#allocation10 + $0x8c] sm:$0xff]
    %v1024 = vld [vmem:[#allocation10 + $0xb4] sm:$0xff]
    %v1025 = vld [vmem:[#allocation10 + $0xdc] sm:$0xff]
    %v1026 = vld [vmem:[#allocation10 + $0x104] sm:$0xff]
    %v1027 = vld [vmem:[#allocation10 + $0x12c] sm:$0xff]
    %v1028 = vld [vmem:[#allocation10 + $0x154] sm:$0xff]
    %v1029 = vld [vmem:[#allocation10 + $0x17c] sm:$0xff]
    %v1030 = vld [vmem:[#allocation10 + $0x1a4] sm:$0xff]
    %v1031 = vld [vmem:[#allocation10 + $0x1cc] sm:$0xff]
    %v1032 = vld [vmem:[#allocation10 + $0x1f4] sm:$0xff]
    %v1033 = vld [vmem:[#allocation10 + $0x21c] sm:$0xff]
    %v1034 = vld [vmem:[#allocation10 + $0x244] sm:$0xff]
    %v1035 = vld [vmem:[#allocation10 + $0x26c] sm:$0xff]
    %v1036 = vpack.c.bf16 %v1017, %v1016
    %v1037 = vpack.c.bf16 %v1019, %v1018
    %v1054 = vunpack.c.l.b16 %v1020
    %v1055 = vunpack.c.h.b16 %v1020
    %v1056 = vunpack.c.l.b16 %v1021
    %v1057 = vunpack.c.h.b16 %v1021
    %v1058 = vunpack.c.l.b16 %v1022
    %v1059 = vunpack.c.h.b16 %v1022
    %v1060 = vunpack.c.l.b16 %v1023
    %v1061 = vunpack.c.h.b16 %v1023
    %v1062 = vunpack.c.l.b16 %v1024
    %v1063 = vunpack.c.h.b16 %v1024
    %v1064 = vunpack.c.l.b16 %v1025
    %v1065 = vunpack.c.h.b16 %v1025
    %v1066 = vunpack.c.l.b16 %v1026
    %v1067 = vunpack.c.h.b16 %v1026
    %v1068 = vunpack.c.l.b16 %v1027
    %v1069 = vunpack.c.h.b16 %v1027
    %v1070 = vunpack.c.l.b16 %v1028
    %v1071 = vunpack.c.h.b16 %v1028
    %v1072 = vunpack.c.l.b16 %v1029
    %v1073 = vunpack.c.h.b16 %v1029
    %v1074 = vunpack.c.l.b16 %v1030
    %v1075 = vunpack.c.h.b16 %v1030
    %v1076 = vunpack.c.l.b16 %v1031
    %v1077 = vunpack.c.h.b16 %v1031
    %v1078 = vunpack.c.l.b16 %v1032
    %v1079 = vunpack.c.h.b16 %v1032
    %v1080 = vunpack.c.l.b16 %v1033
    %v1081 = vunpack.c.h.b16 %v1033
    %v1082 = vunpack.c.l.b16 %v1034
    %v1083 = vunpack.c.h.b16 %v1034
    %v1084 = vunpack.c.l.b16 %v1035
    %v1085 = vunpack.c.h.b16 %v1035
    %v1086 = vpack.c.b16 %v1056, %v1054
    %v1087 = vpack.c.b16 %v1057, %v1055
    %v1088 = vpack.c.b16 %v1060, %v1058
    %v1089 = vpack.c.b16 %v1061, %v1059
    %v1090 = vpack.c.b16 %v1064, %v1062
    %v1091 = vpack.c.b16 %v1065, %v1063
    %v1092 = vpack.c.b16 %v1068, %v1066
    %v1093 = vpack.c.b16 %v1069, %v1067
    %v1094 = vpack.c.b16 %v1072, %v1070
    %v1095 = vpack.c.b16 %v1073, %v1071
    %v1096 = vpack.c.b16 %v1076, %v1074
    %v1097 = vpack.c.b16 %v1077, %v1075
    %v1098 = vpack.c.b16 %v1080, %v1078
    %v1099 = vpack.c.b16 %v1081, %v1079
    %v1100 = vpack.c.b16 %v1084, %v1082
    %v1101 = vpack.c.b16 %v1085, %v1083
    %1118 = vmatpush.bf16.msra.mxu0 %v1100
    %1119 = vmatpush.bf16.msra.mxu0 %v1098
    %1120 = vmatpush.bf16.msra.mxu0 %v1096
    %1121 = vmatpush.bf16.msra.mxu0 %v1094
    %1122 = vmatpush.bf16.msra.mxu0 %v1092
    %1123 = vmatpush.bf16.msra.mxu0 %v1090
    %1124 = vmatpush.bf16.msra.mxu0 %v1088
    %1125 = vmatpush.bf16.msra.mxu0 %v1086
    %1126 = vmatmul.bf16.gmra.mxu0 %v1036
    %v1127 = vpop.f32.mrf.mxu0
    %v1128 = vadd.f32 0.0, %v1127
    %v1129 = vpop.f32.mrf.mxu0
    %v1130 = vadd.f32 0.0, %v1129
    %1131 = vmatmul.bf16.gmra.mxu0 %v1037
    %v1132 = vpop.f32.mrf.mxu0
    %v1133 = vadd.f32 0.0, %v1132
    %v1134 = vpop.f32.mrf.mxu0
    %v1135 = vadd.f32 0.0, %v1134
    %1136 = vdwg.mxu0
    %1137 = vmatpush.bf16.msra.mxu0 %v1101
    %1138 = vmatpush.bf16.msra.mxu0 %v1099
    %1139 = vmatpush.bf16.msra.mxu0 %v1097
    %1140 = vmatpush.bf16.msra.mxu0 %v1095
    %1141 = vmatpush.bf16.msra.mxu0 %v1093
    %1142 = vmatpush.bf16.msra.mxu0 %v1091
    %1143 = vmatpush.bf16.msra.mxu0 %v1089
    %1144 = vmatpush.bf16.msra.mxu0 %v1087
    %1145 = vmatmul.bf16.gmra.mxu0 %v1036
    %v1146 = vpop.f32.mrf.mxu0
    %v1147 = vadd.f32 0.0, %v1146
    %v1148 = vpop.f32.mrf.mxu0
    %v1149 = vadd.f32 0.0, %v1148
    %1150 = vmatmul.bf16.gmra.mxu0 %v1037
    %v1151 = vpop.f32.mrf.mxu0
    %v1152 = vadd.f32 0.0, %v1151
    %v1153 = vpop.f32.mrf.mxu0
    %v1154 = vadd.f32 0.0, %v1153
    %1155 = vdwg.mxu0
    %v1156 = vld [vmem:[#allocation8 + $0x15] sm:$0x1]
    %v1157 = vperm.slane %v1156, 0
    %v1158 = vadd.f32 %v1128, %v1157
    %v1159 = vadd.f32 %v1130, %v1157
    %v1160 = vadd.f32 %v1133, %v1157
    %v1161 = vadd.f32 %v1135, %v1157
    %v1162 = vld [vmem:[#allocation8 + $0x16] sm:$0x1]
    %v1163 = vperm.slane %v1162, 0
    %v1164 = vadd.f32 %v1147, %v1163
    %v1165 = vadd.f32 %v1149, %v1163
    %v1166 = vadd.f32 %v1152, %v1163
    %v1167 = vadd.f32 %v1154, %v1163
    %v1169 = vrot.slane %v1015, 1
    %v1170 = vperm.slane %v1015, 0
    %v1171 = vperm.slane %v1169, 0
    %v1174 = vmul.f32 %v1158, %v1170
    %v1175 = vmul.f32 %v1159, %v1170
    %v1176 = vmul.f32 %v1160, %v1171
    %v1177 = vmul.f32 %v1161, %v1171
    %1178 = vmatpush.xpose.msra.mxu0 0.0
    %1179 = vmatpush.xpose.msra.mxu0 0.0
    %1180 = vmatpush.xpose.msra.mxu0 0.0
    %1181 = vmatpush.xpose.msra.mxu0 0.0
    %1182 = vmatpush.xpose.msra.mxu0 0.0
    %1183 = vmatpush.xpose.msra.mxu0 0.0
    %1184 = vmatpush.xpose.msra.mxu0 0.0
    %1185 = vmatpush.xpose.msra.mxu0 0.0
    %1186 = vmatpush.xpose.msra.mxu0 0.0
    %1187 = vmatpush.xpose.msra.mxu0 0.0
    %1188 = vmatpush.xpose.msra.mxu0 0.0
    %1189 = vmatpush.xpose.msra.mxu0 0.0
    %1190 = vmatpush.xpose.msra.mxu0 0.0
    %1191 = vmatpush.xpose.msra.mxu0 0.0
    %1192 = vmatpush.xpose.msra.mxu0 0.0
    %1193 = vmatpush.xpose.msra.mxu0 %v97
    %1194 = vmatmul.f32.gmra.mxu0 %v1174
    %v1195 = vpop.f32.mrf.mxu0
    %v1196 = vadd.f32 0.0, %v1195
    %1197 = vmatmul.f32.gmra.mxu0 %v1175
    %v1198 = vpop.f32.mrf.mxu0
    %v1199 = vadd.f32 0.0, %v1198
    %1200 = vmatmul.f32.gmra.mxu0 %v1176
    %v1201 = vpop.f32.mrf.mxu0
    %v1202 = vadd.f32 0.0, %v1201
    %1203 = vmatmul.f32.gmra.mxu0 %v1177
    %v1204 = vpop.f32.mrf.mxu0
    %v1205 = vadd.f32 0.0, %v1204
    %1206 = vdwg.mxu0
    %v1207 = vsel %vm601, %v1196, -inf
    %v1208 = vsel %vm601, %v1199, -inf
    %v1209 = vmax.f32 %v1207, %v1208
    %v1210 = vrot.slane %v1209, 4
    %v1211 = vmax.f32 %v1209, %v1210
    %v1212 = vrot.slane %v1211, 2
    %v1213 = vmax.f32 %v1211, %v1212
    %v1214 = vrot.slane %v1213, 1
    %v1215 = vmax.f32 %v1213, %v1214
    %v1216 = vsel %vm601, %v1202, -inf
    %v1217 = vsel %vm601, %v1205, -inf
    %v1218 = vmax.f32 %v1216, %v1217
    %v1219 = vrot.slane %v1218, 4
    %v1220 = vmax.f32 %v1218, %v1219
    %v1221 = vrot.slane %v1220, 2
    %v1222 = vmax.f32 %v1220, %v1221
    %v1223 = vrot.slane %v1222, 1
    %v1224 = vmax.f32 %v1222, %v1223
    %v1225 = vsub.f32 %v1196, %v1215
    %v1226 = vsub.f32 %v1199, %v1215
    %v1227 = vsub.f32 %v1202, %v1224
    %v1228 = vsub.f32 %v1205, %v1224
    %v1229 = vmul.f32 %v1225, 1.442695
    %v1230 = vpow.pop %v1229
    %v1231 = vmul.f32 %v1226, 1.442695
    %v1232 = vpow.pop %v1231
    %v1233 = vmul.f32 %v1227, 1.442695
    %v1234 = vpow.pop %v1233
    %v1235 = vmul.f32 %v1228, 1.442695
    %v1236 = vpow.pop %v1235
    %v1237 = vsel %vm601, %v1230, 0.0
    %v1238 = vsel %vm601, %v1232, 0.0
    %v1239 = vadd.f32 %v1237, %v1238
    %v1240 = vrot.slane %v1239, 4
    %v1241 = vadd.f32 %v1239, %v1240
    %v1242 = vrot.slane %v1241, 2
    %v1243 = vadd.f32 %v1241, %v1242
    %v1244 = vrot.slane %v1243, 1
    %v1245 = vadd.f32 %v1243, %v1244
    %v1246 = vsel %vm601, %v1234, 0.0
    %v1247 = vsel %vm601, %v1236, 0.0
    %v1248 = vadd.f32 %v1246, %v1247
    %v1249 = vrot.slane %v1248, 4
    %v1250 = vadd.f32 %v1248, %v1249
    %v1251 = vrot.slane %v1250, 2
    %v1252 = vadd.f32 %v1250, %v1251
    %v1253 = vrot.slane %v1252, 1
    %v1254 = vadd.f32 %v1252, %v1253
    %v1255 = vrcp.pop %v1245
    %v1256 = vrcp.pop %v1254
    %1257 = vxpose.xlu0.b32.start [1/16] %v1230, 128
    %1258 = vxpose.xlu0.b32.cont [2/16] %v1232, 128
    %1259 = vxpose.xlu0.b32.cont [3/16] 0.0, 128
    %1260 = vxpose.xlu0.b32.cont [4/16] 0.0, 128
    %1261 = vxpose.xlu0.b32.cont [5/16] 0.0, 128
    %1262 = vxpose.xlu0.b32.cont [6/16] 0.0, 128
    %1263 = vxpose.xlu0.b32.cont [7/16] 0.0, 128
    %1264 = vxpose.xlu0.b32.cont [8/16] 0.0, 128
    %1265 = vxpose.xlu0.b32.cont [9/16] 0.0, 128
    %1266 = vxpose.xlu0.b32.cont [10/16] 0.0, 128
    %1267 = vxpose.xlu0.b32.cont [11/16] 0.0, 128
    %1268 = vxpose.xlu0.b32.cont [12/16] 0.0, 128
    %1269 = vxpose.xlu0.b32.cont [13/16] 0.0, 128
    %1270 = vxpose.xlu0.b32.cont [14/16] 0.0, 128
    %1271 = vxpose.xlu0.b32.cont [15/16] 0.0, 128
    %1272 = vxpose.xlu0.b32.end [16/16] 0.0, 128
    %v1273 = vpop.trf.xlu0
    %v1274 = vpop.trf.xlu0
    %v1275 = vpop.trf.xlu0
    %v1276 = vpop.trf.xlu0
    %v1277 = vpop.trf.xlu0
    %v1278 = vpop.trf.xlu0
    %v1279 = vpop.trf.xlu0
    %v1280 = vpop.trf.xlu0
    %v1281 = vpop.trf.xlu0
    %v1282 = vpop.trf.xlu0
    %v1283 = vpop.trf.xlu0
    %v1284 = vpop.trf.xlu0
    %v1285 = vpop.trf.xlu0
    %v1286 = vpop.trf.xlu0
    %v1287 = vpop.trf.xlu0
    %v1288 = vpop.trf.xlu0
    %vm1289 = vcmask 130048
    %v1291 = vsel %vm1289, %v1273, 0
    %1293 = vmatpush.msra.mxu0 0.0
    %1294 = vmatpush.msra.mxu0 0.0
    %1295 = vmatpush.msra.mxu0 0.0
    %1296 = vmatpush.msra.mxu0 0.0
    %1297 = vmatpush.msra.mxu0 0.0
    %1298 = vmatpush.msra.mxu0 0.0
    %1299 = vmatpush.msra.mxu0 0.0
    %1300 = vmatpush.msra.mxu0 0.0
    %1301 = vmatpush.msra.mxu0 0.0
    %1302 = vmatpush.msra.mxu0 0.0
    %1303 = vmatpush.msra.mxu0 0.0
    %1304 = vmatpush.msra.mxu0 0.0
    %1305 = vmatpush.msra.mxu0 0.0
    %1306 = vmatpush.msra.mxu0 0.0
    %1307 = vmatpush.msra.mxu0 %v1165
    %1308 = vmatpush.msra.mxu0 %v1164
    %1309 = vmatmul.f32.gmra.mxu0 %v1291
    %v1310 = vpop.f32.mrf.mxu0
    %v1311 = vadd.f32 0.0, %v1310
    %1312 = vdwg.mxu0
    %1313 = vxpose.xlu0.b32.start [1/16] %v1234, 128
    %1314 = vxpose.xlu0.b32.cont [2/16] %v1236, 128
    %1315 = vxpose.xlu0.b32.cont [3/16] 0.0, 128
    %1316 = vxpose.xlu0.b32.cont [4/16] 0.0, 128
    %1317 = vxpose.xlu0.b32.cont [5/16] 0.0, 128
    %1318 = vxpose.xlu0.b32.cont [6/16] 0.0, 128
    %1319 = vxpose.xlu0.b32.cont [7/16] 0.0, 128
    %1320 = vxpose.xlu0.b32.cont [8/16] 0.0, 128
    %1321 = vxpose.xlu0.b32.cont [9/16] 0.0, 128
    %1322 = vxpose.xlu0.b32.cont [10/16] 0.0, 128
    %1323 = vxpose.xlu0.b32.cont [11/16] 0.0, 128
    %1324 = vxpose.xlu0.b32.cont [12/16] 0.0, 128
    %1325 = vxpose.xlu0.b32.cont [13/16] 0.0, 128
    %1326 = vxpose.xlu0.b32.cont [14/16] 0.0, 128
    %1327 = vxpose.xlu0.b32.cont [15/16] 0.0, 128
    %1328 = vxpose.xlu0.b32.end [16/16] 0.0, 128
    %v1329 = vpop.trf.xlu0
    %v1330 = vpop.trf.xlu0
    %v1331 = vpop.trf.xlu0
    %v1332 = vpop.trf.xlu0
    %v1333 = vpop.trf.xlu0
    %v1334 = vpop.trf.xlu0
    %v1335 = vpop.trf.xlu0
    %v1336 = vpop.trf.xlu0
    %v1337 = vpop.trf.xlu0
    %v1338 = vpop.trf.xlu0
    %v1339 = vpop.trf.xlu0
    %v1340 = vpop.trf.xlu0
    %v1341 = vpop.trf.xlu0
    %v1342 = vpop.trf.xlu0
    %v1343 = vpop.trf.xlu0
    %v1344 = vpop.trf.xlu0
    %v1346 = vsel %vm1289, %v1329, 0
    %1348 = vmatpush.msra.mxu0 0.0
    %1349 = vmatpush.msra.mxu0 0.0
    %1350 = vmatpush.msra.mxu0 0.0
    %1351 = vmatpush.msra.mxu0 0.0
    %1352 = vmatpush.msra.mxu0 0.0
    %1353 = vmatpush.msra.mxu0 0.0
    %1354 = vmatpush.msra.mxu0 0.0
    %1355 = vmatpush.msra.mxu0 0.0
    %1356 = vmatpush.msra.mxu0 0.0
    %1357 = vmatpush.msra.mxu0 0.0
    %1358 = vmatpush.msra.mxu0 0.0
    %1359 = vmatpush.msra.mxu0 0.0
    %1360 = vmatpush.msra.mxu0 0.0
    %1361 = vmatpush.msra.mxu0 0.0
    %1362 = vmatpush.msra.mxu0 %v1167
    %1363 = vmatpush.msra.mxu0 %v1166
    %1364 = vmatmul.f32.gmra.mxu0 %v1346
    %v1365 = vpop.f32.mrf.mxu0
    %v1366 = vadd.f32 0.0, %v1365
    %1367 = vdwg.mxu0
    %v1368 = vlaneseq
    %v1369 = vshrl.u32 %v1368, 7
    %1371 = vset.pattern.permute.xlu0 %v1369
    %1372 = vperm.xlu0 %1371, %v1255
    %v1373 = vpop.permute.xlu0 %1372
    %v1374 = vlaneseq
    %v1375 = vshrl.u32 %v1374, 7
    %1377 = vset.pattern.permute.xlu0 %v1375
    %1378 = vperm.xlu0 %1377, %v1256
    %v1379 = vpop.permute.xlu0 %1378
    %v1380 = vmul.f32 %v1311, %v1373
    %v1381 = vmul.f32 %v1366, %v1379
    %v1382 = vmul.f32 %v1380, %v97
    %v1383 = vmul.f32 %v1381, %v97
    %v1384 = vrot.slane %v1382, 4
    %v1385 = vadd.f32 %v1382, %v1384
    %v1386 = vrot.slane %v1385, 2
    %v1387 = vadd.f32 %v1385, %v1386
    %v1388 = vrot.slane %v1387, 1
    %v1389 = vadd.f32 %v1387, %v1388
    %v1390 = vrot.slane %v1383, 4
    %v1391 = vadd.f32 %v1383, %v1390
    %v1392 = vrot.slane %v1391, 2
    %v1393 = vadd.f32 %v1391, %v1392
    %v1394 = vrot.slane %v1393, 1
    %v1395 = vadd.f32 %v1393, %v1394
    %v1396 = vld [vmem:[#allocation10 + $0x1c] sm:$0xf]
    %v1397 = vld [vmem:[#allocation10 + $0x44] sm:$0xf]
    %v1398 = vld [vmem:[#allocation10 + $0x6c] sm:$0xf]
    %v1399 = vld [vmem:[#allocation10 + $0x94] sm:$0xf]
    %v1400 = vld [vmem:[#allocation10 + $0xbc] sm:$0xf]
    %v1401 = vld [vmem:[#allocation10 + $0xe4] sm:$0xf]
    %v1402 = vld [vmem:[#allocation10 + $0x10c] sm:$0xf]
    %v1403 = vld [vmem:[#allocation10 + $0x134] sm:$0xf]
    %v1404 = vld [vmem:[#allocation10 + $0x15c] sm:$0xf]
    %v1405 = vld [vmem:[#allocation10 + $0x184] sm:$0xf]
    %v1406 = vld [vmem:[#allocation10 + $0x1ac] sm:$0xf]
    %v1407 = vld [vmem:[#allocation10 + $0x1d4] sm:$0xf]
    %v1408 = vld [vmem:[#allocation10 + $0x1fc] sm:$0xf]
    %v1409 = vld [vmem:[#allocation10 + $0x224] sm:$0xf]
    %v1410 = vld [vmem:[#allocation10 + $0x24c] sm:$0xf]
    %v1411 = vld [vmem:[#allocation10 + $0x274] sm:$0xf]
    %v1412 = vpack.c.bf16 %v1389, %v1389
    %v1413 = vpack.c.bf16 %v1395, %v1395
    %v1416 = vunpack.c.l.b16 %v1412
    %v1417 = vunpack.c.l.b16 %v1413
    %v1418 = vsel %vm630, %v1417, %v1416
    %v1419 = vpack.c.b16 %v1418, %v1418
    %v1437 = vunpack.c.l.b16 %v1396
    %v1438 = vunpack.c.l.b16 %v1397
    %v1439 = vunpack.c.l.b16 %v1398
    %v1440 = vunpack.c.l.b16 %v1399
    %v1441 = vunpack.c.l.b16 %v1400
    %v1442 = vunpack.c.l.b16 %v1401
    %v1443 = vunpack.c.l.b16 %v1402
    %v1444 = vunpack.c.l.b16 %v1403
    %v1445 = vunpack.c.l.b16 %v1404
    %v1446 = vunpack.c.l.b16 %v1405
    %v1447 = vunpack.c.l.b16 %v1406
    %v1448 = vunpack.c.l.b16 %v1407
    %v1449 = vunpack.c.l.b16 %v1408
    %v1450 = vunpack.c.l.b16 %v1409
    %v1451 = vunpack.c.l.b16 %v1410
    %v1452 = vunpack.c.l.b16 %v1411
    %v1453 = vpack.c.b16 %v1438, %v1437
    %v1454 = vpack.c.b16 %v1440, %v1439
    %v1455 = vpack.c.b16 %v1442, %v1441
    %v1456 = vpack.c.b16 %v1444, %v1443
    %v1457 = vpack.c.b16 %v1446, %v1445
    %v1458 = vpack.c.b16 %v1448, %v1447
    %v1459 = vpack.c.b16 %v1450, %v1449
    %v1460 = vpack.c.b16 %v1452, %v1451
    %1469 = vmatpush.bf16.msra.mxu0 %v1460
    %1470 = vmatpush.bf16.msra.mxu0 %v1459
    %1471 = vmatpush.bf16.msra.mxu0 %v1458
    %1472 = vmatpush.bf16.msra.mxu0 %v1457
    %1473 = vmatpush.bf16.msra.mxu0 %v1456
    %1474 = vmatpush.bf16.msra.mxu0 %v1455
    %1475 = vmatpush.bf16.msra.mxu0 %v1454
    %1476 = vmatpush.bf16.msra.mxu0 %v1453
    %1477 = vmatmul.bf16.gmra.mxu0 %v1419
    %v1478 = vpop.f32.mrf.mxu0
    %v1479 = vadd.f32 0.0, %v1478
    %v1480 = vpop.f32.mrf.mxu0
    %1481 = vdwg.mxu0
    %v1482 = vadd.f32 %v905, %v1479
    %v1483 = vld [vmem:[#allocation8 + $0x17] sm:$0x1]
    %v1484 = vperm.slane %v1483, 0
    %v1485 = vadd.f32 %v1482, %v1484
    %v1486 = vld [vmem:[#allocation8 + $0x4] sm:$0x1]
    %v1487 = vld [vmem:[#allocation8 + $0x5] sm:$0x1]
    %v1488 = vsel %vm908, %v1485, 0.0
    %1489 = vadd.xlane.f32.xlu0 %v1488
    %v1490 = vpop.xlane.xlu0 %1489
    %v1491 = vmul.f32 %v1490, %v116
    %v1492 = vsub.f32 %v1485, %v1491
    %v1493 = vmul.f32 %v1492, %v1492
    %v1494 = vsel %vm908, %v1493, 0.0
    %1495 = vadd.xlane.f32.xlu0 %v1494
    %v1496 = vpop.xlane.xlu0 %1495
    %v1497 = vmul.f32 %v1496, %v116
    %v1498 = vadd.f32 %v1497, 1e-05
    %v1499 = vrsqrt.pop %v1498
    %v1500 = vmul.f32 %v1499, %v1498
    %v1501 = vmul.f32 %v1500, %v1499
    %v1502 = vmul.f32 0.5, %v1501
    %v1503 = vsub.f32 1.5, %v1502
    %v1504 = vmul.f32 %v1499, %v1503
    %vm1505 = vweird.f32 %v1498
    %vm1506 = vweird.f32 %v1499
    %vm1507 = vmor %vm1505, %vm1506
    %v1508 = vsel %vm1507, %v1499, %v1504
    %v1509 = vmul.f32 %v1492, %v1508
    %v1510 = vperm.slane %v1486, 0
    %v1511 = vmul.f32 %v1509, %v1510
    %v1512 = vperm.slane %v1487, 0
    %v1513 = vadd.f32 %v1511, %v1512
    %v1514 = vld [vmem:[#allocation10 + $0x20] sm:$0xf]
    %v1515 = vld [vmem:[#allocation10 + $0x48] sm:$0xf]
    %v1516 = vld [vmem:[#allocation10 + $0x70] sm:$0xf]
    %v1517 = vld [vmem:[#allocation10 + $0x98] sm:$0xf]
    %v1518 = vld [vmem:[#allocation10 + $0xc0] sm:$0xf]
    %v1519 = vld [vmem:[#allocation10 + $0xe8] sm:$0xf]
    %v1520 = vld [vmem:[#allocation10 + $0x110] sm:$0xf]
    %v1521 = vld [vmem:[#allocation10 + $0x138] sm:$0xf]
    %v1522 = vld [vmem:[#allocation10 + $0x160] sm:$0xf]
    %v1523 = vld [vmem:[#allocation10 + $0x188] sm:$0xf]
    %v1524 = vld [vmem:[#allocation10 + $0x1b0] sm:$0xf]
    %v1525 = vld [vmem:[#allocation10 + $0x1d8] sm:$0xf]
    %v1526 = vld [vmem:[#allocation10 + $0x200] sm:$0xf]
    %v1527 = vld [vmem:[#allocation10 + $0x228] sm:$0xf]
    %v1528 = vld [vmem:[#allocation10 + $0x250] sm:$0xf]
    %v1529 = vld [vmem:[#allocation10 + $0x278] sm:$0xf]
    %v1530 = vpack.c.bf16 %v1513, %v1513
    %v1531 = vld [vmem:[#allocation8 + $0x18] sm:$0x1]
    %v1532 = vperm.slane %v1531, 0
    %v1549 = vunpack.c.l.b16 %v1514
    %v1550 = vunpack.c.l.b16 %v1515
    %v1551 = vunpack.c.l.b16 %v1516
    %v1552 = vunpack.c.l.b16 %v1517
    %v1553 = vunpack.c.l.b16 %v1518
    %v1554 = vunpack.c.l.b16 %v1519
    %v1555 = vunpack.c.l.b16 %v1520
    %v1556 = vunpack.c.l.b16 %v1521
    %v1557 = vunpack.c.l.b16 %v1522
    %v1558 = vunpack.c.l.b16 %v1523
    %v1559 = vunpack.c.l.b16 %v1524
    %v1560 = vunpack.c.l.b16 %v1525
    %v1561 = vunpack.c.l.b16 %v1526
    %v1562 = vunpack.c.l.b16 %v1527
    %v1563 = vunpack.c.l.b16 %v1528
    %v1564 = vunpack.c.l.b16 %v1529
    %v1565 = vpack.c.b16 %v1550, %v1549
    %v1566 = vpack.c.b16 %v1552, %v1551
    %v1567 = vpack.c.b16 %v1554, %v1553
    %v1568 = vpack.c.b16 %v1556, %v1555
    %v1569 = vpack.c.b16 %v1558, %v1557
    %v1570 = vpack.c.b16 %v1560, %v1559
    %v1571 = vpack.c.b16 %v1562, %v1561
    %v1572 = vpack.c.b16 %v1564, %v1563
    %1581 = vmatpush.bf16.msra.mxu0 %v1572
    %1582 = vmatpush.bf16.msra.mxu0 %v1571
    %1583 = vmatpush.bf16.msra.mxu0 %v1570
    %1584 = vmatpush.bf16.msra.mxu0 %v1569
    %1585 = vmatpush.bf16.msra.mxu0 %v1568
    %1586 = vmatpush.bf16.msra.mxu0 %v1567
    %1587 = vmatpush.bf16.msra.mxu0 %v1566
    %1588 = vmatpush.bf16.msra.mxu0 %v1565
    %1589 = vmatmul.bf16.gmra.mxu0 %v1530
    %v1590 = vpop.f32.mrf.mxu0
    %v1591 = vadd.f32 %v1532, %v1590
    %v1592 = vpop.f32.mrf.mxu0
    %1593 = vdwg.mxu0
    %v1594 = vmul.f32 %v1591, 0.5
    %v1595 = vmul.f32 %v1591, 0.044715
    %v1596 = vmul.f32 %v1595, %v1591
    %v1597 = vmul.f32 %v1596, %v1591
    %v1598 = vadd.f32 %v1591, %v1597
    %v1599 = vmul.f32 %v1598, 0.7978846
    %v1600 = vtanh.pop %v1599
    %v1601 = vadd.f32 %v1600, 1.0
    %v1602 = vmul.f32 %v1594, %v1601
    %v1603 = vld [vmem:[#allocation8 + $0x6] sm:$0x1]
    %v1604 = vld [vmem:[#allocation8 + $0x7] sm:$0x1]
    %v1605 = vsel %vm908, %v1602, 0.0
    %1606 = vadd.xlane.f32.xlu0 %v1605
    %v1607 = vpop.xlane.xlu0 %1606
    %v1608 = vmul.f32 %v1607, %v116
    %v1609 = vsub.f32 %v1602, %v1608
    %v1610 = vmul.f32 %v1609, %v1609
    %v1611 = vsel %vm908, %v1610, 0.0
    %1612 = vadd.xlane.f32.xlu0 %v1611
    %v1613 = vpop.xlane.xlu0 %1612
    %v1614 = vmul.f32 %v1613, %v116
    %v1615 = vadd.f32 %v1614, 1e-05
    %v1616 = vrsqrt.pop %v1615
    %v1617 = vmul.f32 %v1616, %v1615
    %v1618 = vmul.f32 %v1617, %v1616
    %v1619 = vmul.f32 0.5, %v1618
    %v1620 = vsub.f32 1.5, %v1619
    %v1621 = vmul.f32 %v1616, %v1620
    %vm1622 = vweird.f32 %v1615
    %vm1623 = vweird.f32 %v1616
    %vm1624 = vmor %vm1622, %vm1623
    %v1625 = vsel %vm1624, %v1616, %v1621
    %v1626 = vmul.f32 %v1609, %v1625
    %v1627 = vperm.slane %v1603, 0
    %v1628 = vmul.f32 %v1626, %v1627
    %v1629 = vperm.slane %v1604, 0
    %v1630 = vadd.f32 %v1628, %v1629
    %v1631 = vld [vmem:[#allocation10 + $0x24] sm:$0xf]
    %v1632 = vld [vmem:[#allocation10 + $0x4c] sm:$0xf]
    %v1633 = vld [vmem:[#allocation10 + $0x74] sm:$0xf]
    %v1634 = vld [vmem:[#allocation10 + $0x9c] sm:$0xf]
    %v1635 = vld [vmem:[#allocation10 + $0xc4] sm:$0xf]
    %v1636 = vld [vmem:[#allocation10 + $0xec] sm:$0xf]
    %v1637 = vld [vmem:[#allocation10 + $0x114] sm:$0xf]
    %v1638 = vld [vmem:[#allocation10 + $0x13c] sm:$0xf]
    %v1639 = vld [vmem:[#allocation10 + $0x164] sm:$0xf]
    %v1640 = vld [vmem:[#allocation10 + $0x18c] sm:$0xf]
    %v1641 = vld [vmem:[#allocation10 + $0x1b4] sm:$0xf]
    %v1642 = vld [vmem:[#allocation10 + $0x1dc] sm:$0xf]
    %v1643 = vld [vmem:[#allocation10 + $0x204] sm:$0xf]
    %v1644 = vld [vmem:[#allocation10 + $0x22c] sm:$0xf]
    %v1645 = vld [vmem:[#allocation10 + $0x254] sm:$0xf]
    %v1646 = vld [vmem:[#allocation10 + $0x27c] sm:$0xf]
    %v1647 = vpack.c.bf16 %v1630, %v1630
    %v1648 = vld [vmem:[#allocation8 + $0x19] sm:$0x1]
    %v1649 = vperm.slane %v1648, 0
    %v1666 = vunpack.c.l.b16 %v1631
    %v1667 = vunpack.c.l.b16 %v1632
    %v1668 = vunpack.c.l.b16 %v1633
    %v1669 = vunpack.c.l.b16 %v1634
    %v1670 = vunpack.c.l.b16 %v1635
    %v1671 = vunpack.c.l.b16 %v1636
    %v1672 = vunpack.c.l.b16 %v1637
    %v1673 = vunpack.c.l.b16 %v1638
    %v1674 = vunpack.c.l.b16 %v1639
    %v1675 = vunpack.c.l.b16 %v1640
    %v1676 = vunpack.c.l.b16 %v1641
    %v1677 = vunpack.c.l.b16 %v1642
    %v1678 = vunpack.c.l.b16 %v1643
    %v1679 = vunpack.c.l.b16 %v1644
    %v1680 = vunpack.c.l.b16 %v1645
    %v1681 = vunpack.c.l.b16 %v1646
    %v1682 = vpack.c.b16 %v1667, %v1666
    %v1683 = vpack.c.b16 %v1669, %v1668
    %v1684 = vpack.c.b16 %v1671, %v1670
    %v1685 = vpack.c.b16 %v1673, %v1672
    %v1686 = vpack.c.b16 %v1675, %v1674
    %v1687 = vpack.c.b16 %v1677, %v1676
    %v1688 = vpack.c.b16 %v1679, %v1678
    %v1689 = vpack.c.b16 %v1681, %v1680
    %1698 = vmatpush.bf16.msra.mxu0 %v1689
    %1699 = vmatpush.bf16.msra.mxu0 %v1688
    %1700 = vmatpush.bf16.msra.mxu0 %v1687
    %1701 = vmatpush.bf16.msra.mxu0 %v1686
    %1702 = vmatpush.bf16.msra.mxu0 %v1685
    %1703 = vmatpush.bf16.msra.mxu0 %v1684
    %1704 = vmatpush.bf16.msra.mxu0 %v1683
    %1705 = vmatpush.bf16.msra.mxu0 %v1682
    %1706 = vmatmul.bf16.gmra.mxu0 %v1647
    %v1707 = vpop.f32.mrf.mxu0
    %v1708 = vadd.f32 %v1649, %v1707
    %v1709 = vpop.f32.mrf.mxu0
    %1710 = vdwg.mxu0
    %v1711 = vadd.f32 %v1485, %v1708
    %1712 = vst [vmem:[#allocation11] sm:$0x3] %v1711
    // Predicated region
    $region42: #{tpu_custom_call.1} parent=1 // pred_check
      _
    $region43: #{tpu_custom_call.1} parent=1 // pred_check_branch
      %1714 = sbr.rel (0) target = $region45
    $region44: #{tpu_custom_call.1} parent=1 // pred_region
      %1716 = vsyncadd [#allocation4], 0
      %s1718 = sshll.u32 [#allocation11], 4
      %s1719 = int_to_ptr.vmem [resolvable:$true] %s1718
      %s1720 = sshll.u32 %s5, 4
      %s1721 = int_to_ptr.hbm [resolvable:$true] %s1720
      %1723 = dma.vmem_to_hbm [thread:$0]  %s1719, 32, %s1721, [#allocation4]
    $region45: #{tpu_custom_call.1} parent=1 // pred_fallthru
      _
    // Predicated region
    $region46: #{tpu_custom_call.1} parent=1 // pred_check
      _
    $region47: #{tpu_custom_call.1} parent=1 // pred_check_branch
      %1725 = sbr.rel (0) target = $region49
    $region48: #{tpu_custom_call.1} parent=1 // pred_region
      %1727 = dma.done [#allocation4], 32
    $region49: #{tpu_custom_call.1} parent=1 // pred_fallthru
      _
    %1728 = vsyncpa [#allocation3], 1
    %1729 = vsyncpa [#allocation6], 1
    %1730 = vsyncpa [#allocation9], 1
    %1731 = vsyncpa [#allocation4], 1

</llo_original>
